<compile_context>
chip_gen: v7x
topology: tpu7x:2x2x1
jax: 0.10.0
libtpu: 0.0.40
codegen_flags: <defaults>
</compile_context>

<pallas_src>
import math
import functools

import jax
import jax.numpy as jnp
from jax.experimental import pallas as pl
from jax.experimental.pallas import tpu as pltpu

# ----------------------------- config -----------------------------
VOCAB_SIZE = 50
D_MODEL    = 32
NUM_HEADS  = 4
NUM_LAYERS = 2
D_FF       = 64
MAX_LEN    = 64
BATCH      = 2
SEQ        = 8
EPS        = 1e-5   # nn.LayerNorm default

# MXU operand dtype. f32 keeps bit-level parity tight at these tiny shapes;
# set to jnp.bfloat16 on v5e/v6e if the model is ever scaled up (halves weight
# bytes / vreg pressure; accumulation stays f32 via preferred_element_type).
MATMUL_DTYPE = jnp.float32


# ----------------------------- kernel -----------------------------
def _layernorm(x, gamma, beta):
    mean = jnp.mean(x, axis=-1, keepdims=True)
    var = jnp.mean((x - mean) ** 2, axis=-1, keepdims=True)
    return (x - mean) * jax.lax.rsqrt(var + EPS) * gamma + beta


def encoder_kernel(num_layers, num_heads,
                   tok_ref,                       # (B, S) int32  -- SMEM (scalar prefetch)
                   emb_ref, pe_ref,               # (V, D), (S, D) -- VMEM resident
                   wqkv_ref, bqkv_ref, wo_ref, bo_ref,
                   w1_ref, b1_ref, w2_ref, b2_ref,
                   g1_ref, be1_ref, g2_ref, be2_ref,
                   o_ref):                        # (1, S, D)
    b = pl.program_id(0)                          # batch element handled by this step
    vocab = emb_ref.shape[0]
    seq, d_model = pe_ref.shape
    dk = d_model // num_heads

    # ---- fused embedding lookup + positional encoding (one-hot MXU gather) ----
    col_ids = jax.lax.broadcasted_iota(jnp.int32, (seq, vocab), 1)
    tok_mat = jnp.concatenate(
        [jnp.full((1, vocab), tok_ref[b, s], dtype=jnp.int32) for s in range(seq)],
        axis=0)                                   # (S, V): row s == token id
    onehot = (col_ids == tok_mat).astype(jnp.float32)
    x = jnp.dot(onehot, emb_ref[...], preferred_element_type=jnp.float32) + pe_ref[...]

    for l in range(num_layers):                   # static unroll; x never leaves VMEM
        # ---- fused QKV projection (1/sqrt(dk) folded into Q columns & bias) ----
        qkv = jnp.dot(x.astype(MATMUL_DTYPE), wqkv_ref[l],
                      preferred_element_type=jnp.float32) + bqkv_ref[l]   # (S, 3D)

        # head-batched (H, S, dk) layout via static lane slices + leading stack
        qh = jnp.stack([qkv[:, 0 * d_model + h * dk: 0 * d_model + (h + 1) * dk]
                        for h in range(num_heads)], axis=0)
        kh = jnp.stack([qkv[:, 1 * d_model + h * dk: 1 * d_model + (h + 1) * dk]
                        for h in range(num_heads)], axis=0)
        vh = jnp.stack([qkv[:, 2 * d_model + h * dk: 2 * d_model + (h + 1) * dk]
                        for h in range(num_heads)], axis=0)

        # ---- ONE batched score matmul + ONE softmax chain for all heads ----
        scores = jnp.einsum('hqd,hkd->hqk', qh, kh,
                            preferred_element_type=jnp.float32)           # (H, S, S)
        scores = scores - jnp.max(scores, axis=-1, keepdims=True)
        e = jnp.exp(scores)
        p = e * pl.reciprocal(jnp.sum(e, axis=-1, keepdims=True), approx=True)
        ctx = jnp.einsum('hqk,hkd->hqd', p, vh,
                         preferred_element_type=jnp.float32)              # (H, S, dk)

        # ---- output projection: head concat folded into per-head matmul + sum ----
        # wo is pre-reshaped to (H, dk, D) at stacking time -> no lane concat.
        attn = jnp.einsum('hsd,hde->hse', ctx.astype(MATMUL_DTYPE), wo_ref[l],
                          preferred_element_type=jnp.float32).sum(axis=0) + bo_ref[l]

        # ---- residual + LayerNorm 1 ----
        x1 = _layernorm(x + attn, g1_ref[l], be1_ref[l])

        # ---- position-wise feed-forward (dropout == identity) ----
        h1 = jnp.maximum(
            jnp.dot(x1.astype(MATMUL_DTYPE), w1_ref[l],
                    preferred_element_type=jnp.float32) + b1_ref[l], 0.0)
        ff = jnp.dot(h1.astype(MATMUL_DTYPE), w2_ref[l],
                     preferred_element_type=jnp.float32) + b2_ref[l]

        # ---- residual + LayerNorm 2 ----
        x = _layernorm(x1 + ff, g2_ref[l], be2_ref[l])

    o_ref[...] = x[None].astype(o_ref.dtype)


def run_encoder_stack(tokens, emb, pe_s, stacked):
    """tokens: (B, S) int32; emb: (V, D); pe_s: (S, D); stacked: layer-stacked weights."""
    B, S = tokens.shape
    kernel = functools.partial(encoder_kernel, NUM_LAYERS, NUM_HEADS)

    def resident(arr):
        nd = arr.ndim
        # full-array block, same block for every grid step -> stays VMEM-resident
        return pl.BlockSpec(arr.shape, lambda b, tok_ref, _nd=nd: (0,) * _nd)

    in_specs = [resident(emb), resident(pe_s)] + [resident(w) for w in stacked]
    out_specs = pl.BlockSpec((1, S, D_MODEL), lambda b, tok_ref: (b, 0, 0))

    grid_spec = pltpu.PrefetchScalarGridSpec(
        num_scalar_prefetch=1,          # tokens -> SMEM, visible to kernel + index_maps
        grid=(B,),                      # one batch element per grid step
        in_specs=in_specs,
        out_specs=out_specs,
    )
    return pl.pallas_call(
        kernel,
        out_shape=jax.ShapeDtypeStruct((B, S, D_MODEL), jnp.float32),
        grid_spec=grid_spec,
        compiler_params=pltpu.CompilerParams(dimension_semantics=("parallel",)),
    )(tokens, emb, pe_s, *stacked)


# --------------------- params, stacking, positional encoding ---------------------
def make_positional_encoding(max_len, d_model):
    position = jnp.arange(max_len, dtype=jnp.float32)[:, None]
    div_term = jnp.exp(jnp.arange(0, d_model, 2, dtype=jnp.float32)
                       * (-math.log(10000.0) / d_model))
    pe = jnp.zeros((max_len, d_model), dtype=jnp.float32)
    pe = pe.at[:, 0::2].set(jnp.sin(position * div_term))
    pe = pe.at[:, 1::2].set(jnp.cos(position * div_term))
    return pe


def init_params(key):
    keys = jax.random.split(key, 1 + NUM_LAYERS)
    emb = jax.random.normal(keys[0], (VOCAB_SIZE, D_MODEL), jnp.float32)

    layers = []
    for li in range(NUM_LAYERS):
        lk = jax.random.split(keys[1 + li], 12)
        scale_d = 1.0 / math.sqrt(D_MODEL)
        scale_f = 1.0 / math.sqrt(D_FF)
        # weights stored in (in, out) layout => y = x @ W + b
        layers.append({
            "wq": jax.random.uniform(lk[0], (D_MODEL, D_MODEL), jnp.float32, -scale_d, scale_d),
            "bq": jax.random.uniform(lk[1], (1, D_MODEL), jnp.float32, -scale_d, scale_d),
            "wk": jax.random.uniform(lk[2], (D_MODEL, D_MODEL), jnp.float32, -scale_d, scale_d),
            "bk": jax.random.uniform(lk[3], (1, D_MODEL), jnp.float32, -scale_d, scale_d),
            "wv": jax.random.uniform(lk[4], (D_MODEL, D_MODEL), jnp.float32, -scale_d, scale_d),
            "bv": jax.random.uniform(lk[5], (1, D_MODEL), jnp.float32, -scale_d, scale_d),
            "wo": jax.random.uniform(lk[6], (D_MODEL, D_MODEL), jnp.float32, -scale_d, scale_d),
            "bo": jax.random.uniform(lk[7], (1, D_MODEL), jnp.float32, -scale_d, scale_d),
            "w1": jax.random.uniform(lk[8], (D_MODEL, D_FF), jnp.float32, -scale_d, scale_d),
            "b1": jax.random.uniform(lk[9], (1, D_FF), jnp.float32, -scale_d, scale_d),
            "w2": jax.random.uniform(lk[10], (D_FF, D_MODEL), jnp.float32, -scale_f, scale_f),
            "b2": jax.random.uniform(lk[11], (1, D_MODEL), jnp.float32, -scale_f, scale_f),
            "g1": jnp.ones((1, D_MODEL), jnp.float32),
            "be1": jnp.zeros((1, D_MODEL), jnp.float32),
            "g2": jnp.ones((1, D_MODEL), jnp.float32),
            "be2": jnp.zeros((1, D_MODEL), jnp.float32),
        })
    return emb, layers


def stack_layer_params(layers):
    """Stack per-layer params along a leading NUM_LAYERS axis:
       - Q|K|V fused into one (D, 3D) weight; 1/sqrt(dk) folded into wq / bq,
       - wo pre-reshaped to (H, dk, D) so the head concat is a batched matmul + sum."""
    dk = D_MODEL // NUM_HEADS
    inv_sqrt_dk = 1.0 / math.sqrt(dk)
    wqkv = jnp.stack([jnp.concatenate(
        [p["wq"] * inv_sqrt_dk, p["wk"], p["wv"]], axis=1) for p in layers])      # (L, D, 3D)
    bqkv = jnp.stack([jnp.concatenate(
        [p["bq"] * inv_sqrt_dk, p["bk"], p["bv"]], axis=1) for p in layers])      # (L, 1, 3D)
    wo_h = jnp.stack([p["wo"].reshape(NUM_HEADS, dk, D_MODEL) for p in layers])   # (L, H, dk, D)

    def st(name):
        return jnp.stack([p[name] for p in layers])

    return (wqkv.astype(MATMUL_DTYPE), bqkv,
            wo_h.astype(MATMUL_DTYPE), st("bo"),
            st("w1").astype(MATMUL_DTYPE), st("b1"),
            st("w2").astype(MATMUL_DTYPE), st("b2"),
            st("g1"), st("be1"), st("g2"), st("be2"))


def transformer_encoder_pallas(tokens, emb, stacked, pe_s):
    # everything (embedding gather, pos-enc, both encoder layers) is ONE pallas_call
    return run_encoder_stack(tokens, emb, pe_s, stacked)


# ----------------------------- pure-JAX reference (sanity) -----------------------------
def _ref_layer(x, p):
    def ln(y, g, b):
        m = jnp.mean(y, -1, keepdims=True)
        v = jnp.mean((y - m) ** 2, -1, keepdims=True)
        return (y - m) / jnp.sqrt(v + EPS) * g + b

    B, S, D = x.shape
    dk = D // NUM_HEADS
    q = x @ p["wq"] + p["bq"]
    k = x @ p["wk"] + p["bk"]
    v = x @ p["wv"] + p["bv"]
    q = q.reshape(B, S, NUM_HEADS, dk).transpose(0, 2, 1, 3)
    k = k.reshape(B, S, NUM_HEADS, dk).transpose(0, 2, 1, 3)
    v = v.reshape(B, S, NUM_HEADS, dk).transpose(0, 2, 1, 3)
    s = jnp.einsum("bhqd,bhkd->bhqk", q, k) / math.sqrt(dk)
    a = jax.nn.softmax(s, axis=-1)
    o = jnp.einsum("bhqk,bhkd->bhqd", a, v).transpose(0, 2, 1, 3).reshape(B, S, D)
    o = o @ p["wo"] + p["bo"]
    x1 = ln(x + o, p["g1"], p["be1"])
    ff = jnp.maximum(x1 @ p["w1"] + p["b1"], 0.0) @ p["w2"] + p["b2"]
    return ln(x1 + ff, p["g2"], p["be2"])


def _ref_encoder(tokens, emb, layers, pe):
    x = emb[tokens] + pe[None, : tokens.shape[1]]
    for p in layers:
        x = _ref_layer(x, p)
    return x


# ----------------------------- main -----------------------------
if __name__ == "__main__":
    key = jax.random.PRNGKey(0)
    k_tok, k_par = jax.random.split(key)
    tokens = jax.random.randint(k_tok, (BATCH, SEQ), 0, VOCAB_SIZE, dtype=jnp.int32)

    emb, layers = init_params(k_par)
    pe = make_positional_encoding(MAX_LEN, D_MODEL)
    pe_s = pe[:SEQ]                               # (S, D) slab resident in VMEM
    stacked = stack_layer_params(layers)

    out = transformer_encoder_pallas(tokens, emb, stacked, pe_s)
    out = jax.block_until_ready(out)

    ref = _ref_encoder(tokens, emb, layers, pe)
    assert out.shape == (BATCH, SEQ, D_MODEL)
    # slightly looser tolerance than exact-f32: softmax denom uses EUP approx reciprocal
    assert jnp.allclose(out, ref, atol=5e-3, rtol=5e-3), "mismatch vs. JAX reference"

    print("KERNEL_OK")
</pallas_src>

<mosaic_0001>
module attributes {stable_mosaic.version = 11 : i64} {
  func.func @encoder_kernel(%arg0: i32, %arg1: memref<2x8xi32, #tpu.memory_space<smem>>, %arg2: memref<50x32xf32, #tpu.memory_space<vmem>>, %arg3: memref<8x32xf32, #tpu.memory_space<vmem>>, %arg4: memref<2x32x96xf32, #tpu.memory_space<vmem>>, %arg5: memref<2x1x96xf32, #tpu.memory_space<vmem>>, %arg6: memref<2x4x8x32xf32, #tpu.memory_space<vmem>>, %arg7: memref<2x1x32xf32, #tpu.memory_space<vmem>>, %arg8: memref<2x32x64xf32, #tpu.memory_space<vmem>>, %arg9: memref<2x1x64xf32, #tpu.memory_space<vmem>>, %arg10: memref<2x64x32xf32, #tpu.memory_space<vmem>>, %arg11: memref<2x1x32xf32, #tpu.memory_space<vmem>>, %arg12: memref<2x1x32xf32, #tpu.memory_space<vmem>>, %arg13: memref<2x1x32xf32, #tpu.memory_space<vmem>>, %arg14: memref<2x1x32xf32, #tpu.memory_space<vmem>>, %arg15: memref<2x1x32xf32, #tpu.memory_space<vmem>>, %arg16: memref<1x8x32xf32, #tpu.memory_space<vmem>>) attributes {dimension_semantics = [#tpu.dimension_semantics<parallel>], iteration_bounds = array<i64: 2>, scalar_prefetch = 1 : i64, scratch_operands = 0 : i64, tpu.core_type = #tpu.core_type<tc>, window_params = [{pipeline_mode = #tpu.pipeline_mode<synchronous>, transform_indices = @transform_0, window_bounds = array<i64: 50, 32>}, {pipeline_mode = #tpu.pipeline_mode<synchronous>, transform_indices = @transform_1, window_bounds = array<i64: 8, 32>}, {pipeline_mode = #tpu.pipeline_mode<synchronous>, transform_indices = @transform_2, window_bounds = array<i64: 2, 32, 96>}, {pipeline_mode = #tpu.pipeline_mode<synchronous>, transform_indices = @transform_3, window_bounds = array<i64: 2, 1, 96>}, {pipeline_mode = #tpu.pipeline_mode<synchronous>, transform_indices = @transform_4, window_bounds = array<i64: 2, 4, 8, 32>}, {pipeline_mode = #tpu.pipeline_mode<synchronous>, transform_indices = @transform_5, window_bounds = array<i64: 2, 1, 32>}, {pipeline_mode = #tpu.pipeline_mode<synchronous>, transform_indices = @transform_6, window_bounds = array<i64: 2, 32, 64>}, {pipeline_mode = #tpu.pipeline_mode<synchronous>, transform_indices = @transform_7, window_bounds = array<i64: 2, 1, 64>}, {pipeline_mode = #tpu.pipeline_mode<synchronous>, transform_indices = @transform_8, window_bounds = array<i64: 2, 64, 32>}, {pipeline_mode = #tpu.pipeline_mode<synchronous>, transform_indices = @transform_9, window_bounds = array<i64: 2, 1, 32>}, {pipeline_mode = #tpu.pipeline_mode<synchronous>, transform_indices = @transform_10, window_bounds = array<i64: 2, 1, 32>}, {pipeline_mode = #tpu.pipeline_mode<synchronous>, transform_indices = @transform_11, window_bounds = array<i64: 2, 1, 32>}, {pipeline_mode = #tpu.pipeline_mode<synchronous>, transform_indices = @transform_12, window_bounds = array<i64: 2, 1, 32>}, {pipeline_mode = #tpu.pipeline_mode<synchronous>, transform_indices = @transform_13, window_bounds = array<i64: 2, 1, 32>}, {transform_indices = @transform_14, window_bounds = array<i64: 1, 8, 32>}]} {
    %0 = tpu.iota {dimensions = array<i32: 1>} : vector<8x50xi32>
    %1 = arith.index_cast %arg0 : i32 to index
    %c0 = arith.constant 0 : index
    %2 = memref.load %arg1[%1, %c0] : memref<2x8xi32, #tpu.memory_space<smem>>
    %3 = vector.broadcast %2 : i32 to vector<1x50xi32>
    %4 = arith.index_cast %arg0 : i32 to index
    %c1 = arith.constant 1 : index
    %5 = memref.load %arg1[%4, %c1] : memref<2x8xi32, #tpu.memory_space<smem>>
    %6 = vector.broadcast %5 : i32 to vector<1x50xi32>
    %7 = arith.index_cast %arg0 : i32 to index
    %c2 = arith.constant 2 : index
    %8 = memref.load %arg1[%7, %c2] : memref<2x8xi32, #tpu.memory_space<smem>>
    %9 = vector.broadcast %8 : i32 to vector<1x50xi32>
    %10 = arith.index_cast %arg0 : i32 to index
    %c3 = arith.constant 3 : index
    %11 = memref.load %arg1[%10, %c3] : memref<2x8xi32, #tpu.memory_space<smem>>
    %12 = vector.broadcast %11 : i32 to vector<1x50xi32>
    %13 = arith.index_cast %arg0 : i32 to index
    %c4 = arith.constant 4 : index
    %14 = memref.load %arg1[%13, %c4] : memref<2x8xi32, #tpu.memory_space<smem>>
    %15 = vector.broadcast %14 : i32 to vector<1x50xi32>
    %16 = arith.index_cast %arg0 : i32 to index
    %c5 = arith.constant 5 : index
    %17 = memref.load %arg1[%16, %c5] : memref<2x8xi32, #tpu.memory_space<smem>>
    %18 = vector.broadcast %17 : i32 to vector<1x50xi32>
    %19 = arith.index_cast %arg0 : i32 to index
    %c6 = arith.constant 6 : index
    %20 = memref.load %arg1[%19, %c6] : memref<2x8xi32, #tpu.memory_space<smem>>
    %21 = vector.broadcast %20 : i32 to vector<1x50xi32>
    %22 = arith.index_cast %arg0 : i32 to index
    %c7 = arith.constant 7 : index
    %23 = memref.load %arg1[%22, %c7] : memref<2x8xi32, #tpu.memory_space<smem>>
    %24 = vector.broadcast %23 : i32 to vector<1x50xi32>
    %25 = tpu.concatenate %3, %6, %9, %12, %15, %18, %21, %24 in 0 : vector<1x50xi32>, vector<1x50xi32>, vector<1x50xi32>, vector<1x50xi32>, vector<1x50xi32>, vector<1x50xi32>, vector<1x50xi32>, vector<1x50xi32> -> vector<8x50xi32>
    %26 = arith.cmpi eq, %0, %25 : vector<8x50xi32>
    %27 = arith.extui %26 : vector<8x50xi1> to vector<8x50xi32>
    %28 = arith.sitofp %27 : vector<8x50xi32> to vector<8x50xf32>
    %c0_0 = arith.constant 0 : index
    %c0_1 = arith.constant 0 : index
    %29 = vector.load %arg2[%c0_0, %c0_1] : memref<50x32xf32, #tpu.memory_space<vmem>>, vector<50x32xf32>
    %cst = arith.constant dense<0.000000e+00> : vector<8x32xf32>
    %30 = tpu.matmul %28, %29, %cst {dimension_numbers = #tpu.dot_dimension_numbers<[1], [0], [0], [1], [0, 0, 1, 1], [], []>} : vector<8x50xf32>, vector<50x32xf32>, vector<8x32xf32> -> vector<8x32xf32>
    %c0_2 = arith.constant 0 : index
    %c0_3 = arith.constant 0 : index
    %31 = vector.load %arg3[%c0_2, %c0_3] : memref<8x32xf32, #tpu.memory_space<vmem>>, vector<8x32xf32>
    %32 = arith.addf %30, %31 : vector<8x32xf32>
    %c0_4 = arith.constant 0 : index
    %c0_5 = arith.constant 0 : index
    %c0_6 = arith.constant 0 : index
    %33 = vector.load %arg4[%c0_4, %c0_5, %c0_6] : memref<2x32x96xf32, #tpu.memory_space<vmem>>, vector<1x32x96xf32>
    %34 = vector.shape_cast %33 : vector<1x32x96xf32> to vector<32x96xf32>
    %cst_7 = arith.constant dense<0.000000e+00> : vector<8x96xf32>
    %35 = tpu.matmul %32, %34, %cst_7 {dimension_numbers = #tpu.dot_dimension_numbers<[1], [0], [0], [1], [0, 0, 1, 1], [], []>} : vector<8x32xf32>, vector<32x96xf32>, vector<8x96xf32> -> vector<8x96xf32>
    %c0_8 = arith.constant 0 : index
    %c0_9 = arith.constant 0 : index
    %c0_10 = arith.constant 0 : index
    %36 = vector.load %arg5[%c0_8, %c0_9, %c0_10] : memref<2x1x96xf32, #tpu.memory_space<vmem>>, vector<1x1x96xf32>
    %37 = vector.shape_cast %36 : vector<1x1x96xf32> to vector<1x96xf32>
    %38 = vector.broadcast %37 : vector<1x96xf32> to vector<8x96xf32>
    %39 = arith.addf %35, %38 : vector<8x96xf32>
    %40 = vector.extract_strided_slice %39 {offsets = [0, 0], sizes = [8, 8], strides = [1, 1]} : vector<8x96xf32> to vector<8x8xf32>
    %41 = vector.extract_strided_slice %39 {offsets = [0, 8], sizes = [8, 8], strides = [1, 1]} : vector<8x96xf32> to vector<8x8xf32>
    %42 = vector.extract_strided_slice %39 {offsets = [0, 16], sizes = [8, 8], strides = [1, 1]} : vector<8x96xf32> to vector<8x8xf32>
    %43 = vector.extract_strided_slice %39 {offsets = [0, 24], sizes = [8, 8], strides = [1, 1]} : vector<8x96xf32> to vector<8x8xf32>
    %44 = vector.shape_cast %40 : vector<8x8xf32> to vector<1x8x8xf32>
    %45 = vector.shape_cast %41 : vector<8x8xf32> to vector<1x8x8xf32>
    %46 = vector.shape_cast %42 : vector<8x8xf32> to vector<1x8x8xf32>
    %47 = vector.shape_cast %43 : vector<8x8xf32> to vector<1x8x8xf32>
    %48 = tpu.concatenate %44, %45, %46, %47 in 0 : vector<1x8x8xf32>, vector<1x8x8xf32>, vector<1x8x8xf32>, vector<1x8x8xf32> -> vector<4x8x8xf32>
    %49 = vector.extract_strided_slice %39 {offsets = [0, 32], sizes = [8, 8], strides = [1, 1]} : vector<8x96xf32> to vector<8x8xf32>
    %50 = vector.extract_strided_slice %39 {offsets = [0, 40], sizes = [8, 8], strides = [1, 1]} : vector<8x96xf32> to vector<8x8xf32>
    %51 = vector.extract_strided_slice %39 {offsets = [0, 48], sizes = [8, 8], strides = [1, 1]} : vector<8x96xf32> to vector<8x8xf32>
    %52 = vector.extract_strided_slice %39 {offsets = [0, 56], sizes = [8, 8], strides = [1, 1]} : vector<8x96xf32> to vector<8x8xf32>
    %53 = vector.shape_cast %49 : vector<8x8xf32> to vector<1x8x8xf32>
    %54 = vector.shape_cast %50 : vector<8x8xf32> to vector<1x8x8xf32>
    %55 = vector.shape_cast %51 : vector<8x8xf32> to vector<1x8x8xf32>
    %56 = vector.shape_cast %52 : vector<8x8xf32> to vector<1x8x8xf32>
    %57 = tpu.concatenate %53, %54, %55, %56 in 0 : vector<1x8x8xf32>, vector<1x8x8xf32>, vector<1x8x8xf32>, vector<1x8x8xf32> -> vector<4x8x8xf32>
    %58 = vector.extract_strided_slice %39 {offsets = [0, 64], sizes = [8, 8], strides = [1, 1]} : vector<8x96xf32> to vector<8x8xf32>
    %59 = vector.extract_strided_slice %39 {offsets = [0, 72], sizes = [8, 8], strides = [1, 1]} : vector<8x96xf32> to vector<8x8xf32>
    %60 = vector.extract_strided_slice %39 {offsets = [0, 80], sizes = [8, 8], strides = [1, 1]} : vector<8x96xf32> to vector<8x8xf32>
    %61 = vector.extract_strided_slice %39 {offsets = [0, 88], sizes = [8, 8], strides = [1, 1]} : vector<8x96xf32> to vector<8x8xf32>
    %62 = vector.shape_cast %58 : vector<8x8xf32> to vector<1x8x8xf32>
    %63 = vector.shape_cast %59 : vector<8x8xf32> to vector<1x8x8xf32>
    %64 = vector.shape_cast %60 : vector<8x8xf32> to vector<1x8x8xf32>
    %65 = vector.shape_cast %61 : vector<8x8xf32> to vector<1x8x8xf32>
    %66 = tpu.concatenate %62, %63, %64, %65 in 0 : vector<1x8x8xf32>, vector<1x8x8xf32>, vector<1x8x8xf32>, vector<1x8x8xf32> -> vector<4x8x8xf32>
    "tpu.trace_start"() <{level = 10 : i32, message = "hqd,hkd->hqk"}> : () -> ()
    %cst_11 = arith.constant dense<0.000000e+00> : vector<4x8x8xf32>
    %67 = tpu.matmul %48, %57, %cst_11 {dimension_numbers = #tpu.dot_dimension_numbers<[2], [2], [1], [1], [0, 0, 0, 1, 1, 1], [0], [0]>} : vector<4x8x8xf32>, vector<4x8x8xf32>, vector<4x8x8xf32> -> vector<4x8x8xf32>
    "tpu.trace_stop"() : () -> ()
    %cst_12 = arith.constant dense<0xFF800000> : vector<4x8xf32>
    %68 = vector.multi_reduction <maximumf>, %67, %cst_12 [2] : vector<4x8x8xf32> to vector<4x8xf32>
    %69 = vector.shape_cast %68 : vector<4x8xf32> to vector<4x8x1xf32>
    %70 = vector.broadcast %69 : vector<4x8x1xf32> to vector<4x8x8xf32>
    %71 = arith.subf %67, %70 : vector<4x8x8xf32>
    %72 = math.exp %71 : vector<4x8x8xf32>
    %cst_13 = arith.constant dense<0.000000e+00> : vector<4x8xf32>
    %73 = vector.multi_reduction <add>, %72, %cst_13 [2] : vector<4x8x8xf32> to vector<4x8xf32>
    %74 = vector.shape_cast %73 : vector<4x8xf32> to vector<4x8x1xf32>
    %75 = tpu.reciprocal %74 {approx = true} : vector<4x8x1xf32> -> vector<4x8x1xf32>
    %76 = vector.broadcast %75 : vector<4x8x1xf32> to vector<4x8x8xf32>
    %77 = arith.mulf %72, %76 : vector<4x8x8xf32>
    "tpu.trace_start"() <{level = 10 : i32, message = "hqk,hkd->hqd"}> : () -> ()
    %cst_14 = arith.constant dense<0.000000e+00> : vector<4x8x8xf32>
    %78 = tpu.matmul %77, %66, %cst_14 {dimension_numbers = #tpu.dot_dimension_numbers<[2], [1], [1], [2], [0, 0, 0, 1, 1, 2], [0], [0]>} : vector<4x8x8xf32>, vector<4x8x8xf32>, vector<4x8x8xf32> -> vector<4x8x8xf32>
    "tpu.trace_stop"() : () -> ()
    %c0_15 = arith.constant 0 : index
    %c0_16 = arith.constant 0 : index
    %c0_17 = arith.constant 0 : index
    %c0_18 = arith.constant 0 : index
    %79 = vector.load %arg6[%c0_15, %c0_16, %c0_17, %c0_18] : memref<2x4x8x32xf32, #tpu.memory_space<vmem>>, vector<1x4x8x32xf32>
    %80 = vector.shape_cast %79 : vector<1x4x8x32xf32> to vector<4x8x32xf32>
    "tpu.trace_start"() <{level = 10 : i32, message = "hsd,hde->hse"}> : () -> ()
    %cst_19 = arith.constant dense<0.000000e+00> : vector<4x8x32xf32>
    %81 = tpu.matmul %78, %80, %cst_19 {dimension_numbers = #tpu.dot_dimension_numbers<[2], [1], [1], [2], [0, 0, 0, 1, 1, 2], [0], [0]>} : vector<4x8x8xf32>, vector<4x8x32xf32>, vector<4x8x32xf32> -> vector<4x8x32xf32>
    "tpu.trace_stop"() : () -> ()
    %cst_20 = arith.constant dense<0.000000e+00> : vector<8x32xf32>
    %82 = vector.multi_reduction <add>, %81, %cst_20 [0] : vector<4x8x32xf32> to vector<8x32xf32>
    %c0_21 = arith.constant 0 : index
    %c0_22 = arith.constant 0 : index
    %c0_23 = arith.constant 0 : index
    %83 = vector.load %arg7[%c0_21, %c0_22, %c0_23] : memref<2x1x32xf32, #tpu.memory_space<vmem>>, vector<1x1x32xf32>
    %84 = vector.shape_cast %83 : vector<1x1x32xf32> to vector<1x32xf32>
    %85 = vector.broadcast %84 : vector<1x32xf32> to vector<8x32xf32>
    %86 = arith.addf %82, %85 : vector<8x32xf32>
    %87 = arith.addf %32, %86 : vector<8x32xf32>
    %c0_24 = arith.constant 0 : index
    %c0_25 = arith.constant 0 : index
    %c0_26 = arith.constant 0 : index
    %88 = vector.load %arg12[%c0_24, %c0_25, %c0_26] : memref<2x1x32xf32, #tpu.memory_space<vmem>>, vector<1x1x32xf32>
    %89 = vector.shape_cast %88 : vector<1x1x32xf32> to vector<1x32xf32>
    %c0_27 = arith.constant 0 : index
    %c0_28 = arith.constant 0 : index
    %c0_29 = arith.constant 0 : index
    %90 = vector.load %arg13[%c0_27, %c0_28, %c0_29] : memref<2x1x32xf32, #tpu.memory_space<vmem>>, vector<1x1x32xf32>
    %91 = vector.shape_cast %90 : vector<1x1x32xf32> to vector<1x32xf32>
    %cst_30 = arith.constant dense<0.000000e+00> : vector<8xf32>
    %92 = vector.multi_reduction <add>, %87, %cst_30 [1] : vector<8x32xf32> to vector<8xf32>
    %93 = vector.shape_cast %92 : vector<8xf32> to vector<8x1xf32>
    %cst_31 = arith.constant 3.200000e+01 : f32
    %94 = vector.broadcast %cst_31 : f32 to vector<8x1xf32>
    %95 = arith.divf %93, %94 : vector<8x1xf32>
    %96 = vector.broadcast %95 : vector<8x1xf32> to vector<8x32xf32>
    %97 = arith.subf %87, %96 : vector<8x32xf32>
    %98 = arith.mulf %97, %97 : vector<8x32xf32>
    %cst_32 = arith.constant dense<0.000000e+00> : vector<8xf32>
    %99 = vector.multi_reduction <add>, %98, %cst_32 [1] : vector<8x32xf32> to vector<8xf32>
    %100 = vector.shape_cast %99 : vector<8xf32> to vector<8x1xf32>
    %cst_33 = arith.constant 3.200000e+01 : f32
    %101 = vector.broadcast %cst_33 : f32 to vector<8x1xf32>
    %102 = arith.divf %100, %101 : vector<8x1xf32>
    %103 = vector.broadcast %95 : vector<8x1xf32> to vector<8x32xf32>
    %104 = arith.subf %87, %103 : vector<8x32xf32>
    %cst_34 = arith.constant 9.99999974E-6 : f32
    %105 = vector.broadcast %cst_34 : f32 to vector<8x1xf32>
    %106 = arith.addf %102, %105 : vector<8x1xf32>
    %107 = math.rsqrt %106 : vector<8x1xf32>
    %108 = vector.broadcast %107 : vector<8x1xf32> to vector<8x32xf32>
    %109 = arith.mulf %104, %108 : vector<8x32xf32>
    %110 = vector.broadcast %89 : vector<1x32xf32> to vector<8x32xf32>
    %111 = arith.mulf %109, %110 : vector<8x32xf32>
    %112 = vector.broadcast %91 : vector<1x32xf32> to vector<8x32xf32>
    %113 = arith.addf %111, %112 : vector<8x32xf32>
    %c0_35 = arith.constant 0 : index
    %c0_36 = arith.constant 0 : index
    %c0_37 = arith.constant 0 : index
    %114 = vector.load %arg8[%c0_35, %c0_36, %c0_37] : memref<2x32x64xf32, #tpu.memory_space<vmem>>, vector<1x32x64xf32>
    %115 = vector.shape_cast %114 : vector<1x32x64xf32> to vector<32x64xf32>
    %cst_38 = arith.constant dense<0.000000e+00> : vector<8x64xf32>
    %116 = tpu.matmul %113, %115, %cst_38 {dimension_numbers = #tpu.dot_dimension_numbers<[1], [0], [0], [1], [0, 0, 1, 1], [], []>} : vector<8x32xf32>, vector<32x64xf32>, vector<8x64xf32> -> vector<8x64xf32>
    %c0_39 = arith.constant 0 : index
    %c0_40 = arith.constant 0 : index
    %c0_41 = arith.constant 0 : index
    %117 = vector.load %arg9[%c0_39, %c0_40, %c0_41] : memref<2x1x64xf32, #tpu.memory_space<vmem>>, vector<1x1x64xf32>
    %118 = vector.shape_cast %117 : vector<1x1x64xf32> to vector<1x64xf32>
    %119 = vector.broadcast %118 : vector<1x64xf32> to vector<8x64xf32>
    %120 = arith.addf %116, %119 : vector<8x64xf32>
    %cst_42 = arith.constant 0.000000e+00 : f32
    %121 = vector.broadcast %cst_42 : f32 to vector<8x64xf32>
    %122 = arith.maximumf %120, %121 : vector<8x64xf32>
    %c0_43 = arith.constant 0 : index
    %c0_44 = arith.constant 0 : index
    %c0_45 = arith.constant 0 : index
    %123 = vector.load %arg10[%c0_43, %c0_44, %c0_45] : memref<2x64x32xf32, #tpu.memory_space<vmem>>, vector<1x64x32xf32>
    %124 = vector.shape_cast %123 : vector<1x64x32xf32> to vector<64x32xf32>
    %cst_46 = arith.constant dense<0.000000e+00> : vector<8x32xf32>
    %125 = tpu.matmul %122, %124, %cst_46 {dimension_numbers = #tpu.dot_dimension_numbers<[1], [0], [0], [1], [0, 0, 1, 1], [], []>} : vector<8x64xf32>, vector<64x32xf32>, vector<8x32xf32> -> vector<8x32xf32>
    %c0_47 = arith.constant 0 : index
    %c0_48 = arith.constant 0 : index
    %c0_49 = arith.constant 0 : index
    %126 = vector.load %arg11[%c0_47, %c0_48, %c0_49] : memref<2x1x32xf32, #tpu.memory_space<vmem>>, vector<1x1x32xf32>
    %127 = vector.shape_cast %126 : vector<1x1x32xf32> to vector<1x32xf32>
    %128 = vector.broadcast %127 : vector<1x32xf32> to vector<8x32xf32>
    %129 = arith.addf %125, %128 : vector<8x32xf32>
    %130 = arith.addf %113, %129 : vector<8x32xf32>
    %c0_50 = arith.constant 0 : index
    %c0_51 = arith.constant 0 : index
    %c0_52 = arith.constant 0 : index
    %131 = vector.load %arg14[%c0_50, %c0_51, %c0_52] : memref<2x1x32xf32, #tpu.memory_space<vmem>>, vector<1x1x32xf32>
    %132 = vector.shape_cast %131 : vector<1x1x32xf32> to vector<1x32xf32>
    %c0_53 = arith.constant 0 : index
    %c0_54 = arith.constant 0 : index
    %c0_55 = arith.constant 0 : index
    %133 = vector.load %arg15[%c0_53, %c0_54, %c0_55] : memref<2x1x32xf32, #tpu.memory_space<vmem>>, vector<1x1x32xf32>
    %134 = vector.shape_cast %133 : vector<1x1x32xf32> to vector<1x32xf32>
    %cst_56 = arith.constant dense<0.000000e+00> : vector<8xf32>
    %135 = vector.multi_reduction <add>, %130, %cst_56 [1] : vector<8x32xf32> to vector<8xf32>
    %136 = vector.shape_cast %135 : vector<8xf32> to vector<8x1xf32>
    %cst_57 = arith.constant 3.200000e+01 : f32
    %137 = vector.broadcast %cst_57 : f32 to vector<8x1xf32>
    %138 = arith.divf %136, %137 : vector<8x1xf32>
    %139 = vector.broadcast %138 : vector<8x1xf32> to vector<8x32xf32>
    %140 = arith.subf %130, %139 : vector<8x32xf32>
    %141 = arith.mulf %140, %140 : vector<8x32xf32>
    %cst_58 = arith.constant dense<0.000000e+00> : vector<8xf32>
    %142 = vector.multi_reduction <add>, %141, %cst_58 [1] : vector<8x32xf32> to vector<8xf32>
    %143 = vector.shape_cast %142 : vector<8xf32> to vector<8x1xf32>
    %cst_59 = arith.constant 3.200000e+01 : f32
    %144 = vector.broadcast %cst_59 : f32 to vector<8x1xf32>
    %145 = arith.divf %143, %144 : vector<8x1xf32>
    %146 = vector.broadcast %138 : vector<8x1xf32> to vector<8x32xf32>
    %147 = arith.subf %130, %146 : vector<8x32xf32>
    %cst_60 = arith.constant 9.99999974E-6 : f32
    %148 = vector.broadcast %cst_60 : f32 to vector<8x1xf32>
    %149 = arith.addf %145, %148 : vector<8x1xf32>
    %150 = math.rsqrt %149 : vector<8x1xf32>
    %151 = vector.broadcast %150 : vector<8x1xf32> to vector<8x32xf32>
    %152 = arith.mulf %147, %151 : vector<8x32xf32>
    %153 = vector.broadcast %132 : vector<1x32xf32> to vector<8x32xf32>
    %154 = arith.mulf %152, %153 : vector<8x32xf32>
    %155 = vector.broadcast %134 : vector<1x32xf32> to vector<8x32xf32>
    %156 = arith.addf %154, %155 : vector<8x32xf32>
    %c1_61 = arith.constant 1 : index
    %c0_62 = arith.constant 0 : index
    %c0_63 = arith.constant 0 : index
    %157 = vector.load %arg4[%c1_61, %c0_62, %c0_63] : memref<2x32x96xf32, #tpu.memory_space<vmem>>, vector<1x32x96xf32>
    %158 = vector.shape_cast %157 : vector<1x32x96xf32> to vector<32x96xf32>
    %cst_64 = arith.constant dense<0.000000e+00> : vector<8x96xf32>
    %159 = tpu.matmul %156, %158, %cst_64 {dimension_numbers = #tpu.dot_dimension_numbers<[1], [0], [0], [1], [0, 0, 1, 1], [], []>} : vector<8x32xf32>, vector<32x96xf32>, vector<8x96xf32> -> vector<8x96xf32>
    %c1_65 = arith.constant 1 : index
    %c0_66 = arith.constant 0 : index
    %c0_67 = arith.constant 0 : index
    %160 = vector.load %arg5[%c1_65, %c0_66, %c0_67] : memref<2x1x96xf32, #tpu.memory_space<vmem>>, vector<1x1x96xf32>
    %161 = vector.shape_cast %160 : vector<1x1x96xf32> to vector<1x96xf32>
    %162 = vector.broadcast %161 : vector<1x96xf32> to vector<8x96xf32>
    %163 = arith.addf %159, %162 : vector<8x96xf32>
    %164 = vector.extract_strided_slice %163 {offsets = [0, 0], sizes = [8, 8], strides = [1, 1]} : vector<8x96xf32> to vector<8x8xf32>
    %165 = vector.extract_strided_slice %163 {offsets = [0, 8], sizes = [8, 8], strides = [1, 1]} : vector<8x96xf32> to vector<8x8xf32>
    %166 = vector.extract_strided_slice %163 {offsets = [0, 16], sizes = [8, 8], strides = [1, 1]} : vector<8x96xf32> to vector<8x8xf32>
    %167 = vector.extract_strided_slice %163 {offsets = [0, 24], sizes = [8, 8], strides = [1, 1]} : vector<8x96xf32> to vector<8x8xf32>
    %168 = vector.shape_cast %164 : vector<8x8xf32> to vector<1x8x8xf32>
    %169 = vector.shape_cast %165 : vector<8x8xf32> to vector<1x8x8xf32>
    %170 = vector.shape_cast %166 : vector<8x8xf32> to vector<1x8x8xf32>
    %171 = vector.shape_cast %167 : vector<8x8xf32> to vector<1x8x8xf32>
    %172 = tpu.concatenate %168, %169, %170, %171 in 0 : vector<1x8x8xf32>, vector<1x8x8xf32>, vector<1x8x8xf32>, vector<1x8x8xf32> -> vector<4x8x8xf32>
    %173 = vector.extract_strided_slice %163 {offsets = [0, 32], sizes = [8, 8], strides = [1, 1]} : vector<8x96xf32> to vector<8x8xf32>
    %174 = vector.extract_strided_slice %163 {offsets = [0, 40], sizes = [8, 8], strides = [1, 1]} : vector<8x96xf32> to vector<8x8xf32>
    %175 = vector.extract_strided_slice %163 {offsets = [0, 48], sizes = [8, 8], strides = [1, 1]} : vector<8x96xf32> to vector<8x8xf32>
    %176 = vector.extract_strided_slice %163 {offsets = [0, 56], sizes = [8, 8], strides = [1, 1]} : vector<8x96xf32> to vector<8x8xf32>
    %177 = vector.shape_cast %173 : vector<8x8xf32> to vector<1x8x8xf32>
    %178 = vector.shape_cast %174 : vector<8x8xf32> to vector<1x8x8xf32>
    %179 = vector.shape_cast %175 : vector<8x8xf32> to vector<1x8x8xf32>
    %180 = vector.shape_cast %176 : vector<8x8xf32> to vector<1x8x8xf32>
    %181 = tpu.concatenate %177, %178, %179, %180 in 0 : vector<1x8x8xf32>, vector<1x8x8xf32>, vector<1x8x8xf32>, vector<1x8x8xf32> -> vector<4x8x8xf32>
    %182 = vector.extract_strided_slice %163 {offsets = [0, 64], sizes = [8, 8], strides = [1, 1]} : vector<8x96xf32> to vector<8x8xf32>
    %183 = vector.extract_strided_slice %163 {offsets = [0, 72], sizes = [8, 8], strides = [1, 1]} : vector<8x96xf32> to vector<8x8xf32>
    %184 = vector.extract_strided_slice %163 {offsets = [0, 80], sizes = [8, 8], strides = [1, 1]} : vector<8x96xf32> to vector<8x8xf32>
    %185 = vector.extract_strided_slice %163 {offsets = [0, 88], sizes = [8, 8], strides = [1, 1]} : vector<8x96xf32> to vector<8x8xf32>
    %186 = vector.shape_cast %182 : vector<8x8xf32> to vector<1x8x8xf32>
    %187 = vector.shape_cast %183 : vector<8x8xf32> to vector<1x8x8xf32>
    %188 = vector.shape_cast %184 : vector<8x8xf32> to vector<1x8x8xf32>
    %189 = vector.shape_cast %185 : vector<8x8xf32> to vector<1x8x8xf32>
    %190 = tpu.concatenate %186, %187, %188, %189 in 0 : vector<1x8x8xf32>, vector<1x8x8xf32>, vector<1x8x8xf32>, vector<1x8x8xf32> -> vector<4x8x8xf32>
    "tpu.trace_start"() <{level = 10 : i32, message = "hqd,hkd->hqk"}> : () -> ()
    %cst_68 = arith.constant dense<0.000000e+00> : vector<4x8x8xf32>
    %191 = tpu.matmul %172, %181, %cst_68 {dimension_numbers = #tpu.dot_dimension_numbers<[2], [2], [1], [1], [0, 0, 0, 1, 1, 1], [0], [0]>} : vector<4x8x8xf32>, vector<4x8x8xf32>, vector<4x8x8xf32> -> vector<4x8x8xf32>
    "tpu.trace_stop"() : () -> ()
    %cst_69 = arith.constant dense<0xFF800000> : vector<4x8xf32>
    %192 = vector.multi_reduction <maximumf>, %191, %cst_69 [2] : vector<4x8x8xf32> to vector<4x8xf32>
    %193 = vector.shape_cast %192 : vector<4x8xf32> to vector<4x8x1xf32>
    %194 = vector.broadcast %193 : vector<4x8x1xf32> to vector<4x8x8xf32>
    %195 = arith.subf %191, %194 : vector<4x8x8xf32>
    %196 = math.exp %195 : vector<4x8x8xf32>
    %cst_70 = arith.constant dense<0.000000e+00> : vector<4x8xf32>
    %197 = vector.multi_reduction <add>, %196, %cst_70 [2] : vector<4x8x8xf32> to vector<4x8xf32>
    %198 = vector.shape_cast %197 : vector<4x8xf32> to vector<4x8x1xf32>
    %199 = tpu.reciprocal %198 {approx = true} : vector<4x8x1xf32> -> vector<4x8x1xf32>
    %200 = vector.broadcast %199 : vector<4x8x1xf32> to vector<4x8x8xf32>
    %201 = arith.mulf %196, %200 : vector<4x8x8xf32>
    "tpu.trace_start"() <{level = 10 : i32, message = "hqk,hkd->hqd"}> : () -> ()
    %cst_71 = arith.constant dense<0.000000e+00> : vector<4x8x8xf32>
    %202 = tpu.matmul %201, %190, %cst_71 {dimension_numbers = #tpu.dot_dimension_numbers<[2], [1], [1], [2], [0, 0, 0, 1, 1, 2], [0], [0]>} : vector<4x8x8xf32>, vector<4x8x8xf32>, vector<4x8x8xf32> -> vector<4x8x8xf32>
    "tpu.trace_stop"() : () -> ()
    %c1_72 = arith.constant 1 : index
    %c0_73 = arith.constant 0 : index
    %c0_74 = arith.constant 0 : index
    %c0_75 = arith.constant 0 : index
    %203 = vector.load %arg6[%c1_72, %c0_73, %c0_74, %c0_75] : memref<2x4x8x32xf32, #tpu.memory_space<vmem>>, vector<1x4x8x32xf32>
    %204 = vector.shape_cast %203 : vector<1x4x8x32xf32> to vector<4x8x32xf32>
    "tpu.trace_start"() <{level = 10 : i32, message = "hsd,hde->hse"}> : () -> ()
    %cst_76 = arith.constant dense<0.000000e+00> : vector<4x8x32xf32>
    %205 = tpu.matmul %202, %204, %cst_76 {dimension_numbers = #tpu.dot_dimension_numbers<[2], [1], [1], [2], [0, 0, 0, 1, 1, 2], [0], [0]>} : vector<4x8x8xf32>, vector<4x8x32xf32>, vector<4x8x32xf32> -> vector<4x8x32xf32>
    "tpu.trace_stop"() : () -> ()
    %cst_77 = arith.constant dense<0.000000e+00> : vector<8x32xf32>
    %206 = vector.multi_reduction <add>, %205, %cst_77 [0] : vector<4x8x32xf32> to vector<8x32xf32>
    %c1_78 = arith.constant 1 : index
    %c0_79 = arith.constant 0 : index
    %c0_80 = arith.constant 0 : index
    %207 = vector.load %arg7[%c1_78, %c0_79, %c0_80] : memref<2x1x32xf32, #tpu.memory_space<vmem>>, vector<1x1x32xf32>
    %208 = vector.shape_cast %207 : vector<1x1x32xf32> to vector<1x32xf32>
    %209 = vector.broadcast %208 : vector<1x32xf32> to vector<8x32xf32>
    %210 = arith.addf %206, %209 : vector<8x32xf32>
    %211 = arith.addf %156, %210 : vector<8x32xf32>
    %c1_81 = arith.constant 1 : index
    %c0_82 = arith.constant 0 : index
    %c0_83 = arith.constant 0 : index
    %212 = vector.load %arg12[%c1_81, %c0_82, %c0_83] : memref<2x1x32xf32, #tpu.memory_space<vmem>>, vector<1x1x32xf32>
    %213 = vector.shape_cast %212 : vector<1x1x32xf32> to vector<1x32xf32>
    %c1_84 = arith.constant 1 : index
    %c0_85 = arith.constant 0 : index
    %c0_86 = arith.constant 0 : index
    %214 = vector.load %arg13[%c1_84, %c0_85, %c0_86] : memref<2x1x32xf32, #tpu.memory_space<vmem>>, vector<1x1x32xf32>
    %215 = vector.shape_cast %214 : vector<1x1x32xf32> to vector<1x32xf32>
    %cst_87 = arith.constant dense<0.000000e+00> : vector<8xf32>
    %216 = vector.multi_reduction <add>, %211, %cst_87 [1] : vector<8x32xf32> to vector<8xf32>
    %217 = vector.shape_cast %216 : vector<8xf32> to vector<8x1xf32>
    %cst_88 = arith.constant 3.200000e+01 : f32
    %218 = vector.broadcast %cst_88 : f32 to vector<8x1xf32>
    %219 = arith.divf %217, %218 : vector<8x1xf32>
    %220 = vector.broadcast %219 : vector<8x1xf32> to vector<8x32xf32>
    %221 = arith.subf %211, %220 : vector<8x32xf32>
    %222 = arith.mulf %221, %221 : vector<8x32xf32>
    %cst_89 = arith.constant dense<0.000000e+00> : vector<8xf32>
    %223 = vector.multi_reduction <add>, %222, %cst_89 [1] : vector<8x32xf32> to vector<8xf32>
    %224 = vector.shape_cast %223 : vector<8xf32> to vector<8x1xf32>
    %cst_90 = arith.constant 3.200000e+01 : f32
    %225 = vector.broadcast %cst_90 : f32 to vector<8x1xf32>
    %226 = arith.divf %224, %225 : vector<8x1xf32>
    %227 = vector.broadcast %219 : vector<8x1xf32> to vector<8x32xf32>
    %228 = arith.subf %211, %227 : vector<8x32xf32>
    %cst_91 = arith.constant 9.99999974E-6 : f32
    %229 = vector.broadcast %cst_91 : f32 to vector<8x1xf32>
    %230 = arith.addf %226, %229 : vector<8x1xf32>
    %231 = math.rsqrt %230 : vector<8x1xf32>
    %232 = vector.broadcast %231 : vector<8x1xf32> to vector<8x32xf32>
    %233 = arith.mulf %228, %232 : vector<8x32xf32>
    %234 = vector.broadcast %213 : vector<1x32xf32> to vector<8x32xf32>
    %235 = arith.mulf %233, %234 : vector<8x32xf32>
    %236 = vector.broadcast %215 : vector<1x32xf32> to vector<8x32xf32>
    %237 = arith.addf %235, %236 : vector<8x32xf32>
    %c1_92 = arith.constant 1 : index
    %c0_93 = arith.constant 0 : index
    %c0_94 = arith.constant 0 : index
    %238 = vector.load %arg8[%c1_92, %c0_93, %c0_94] : memref<2x32x64xf32, #tpu.memory_space<vmem>>, vector<1x32x64xf32>
    %239 = vector.shape_cast %238 : vector<1x32x64xf32> to vector<32x64xf32>
    %cst_95 = arith.constant dense<0.000000e+00> : vector<8x64xf32>
    %240 = tpu.matmul %237, %239, %cst_95 {dimension_numbers = #tpu.dot_dimension_numbers<[1], [0], [0], [1], [0, 0, 1, 1], [], []>} : vector<8x32xf32>, vector<32x64xf32>, vector<8x64xf32> -> vector<8x64xf32>
    %c1_96 = arith.constant 1 : index
    %c0_97 = arith.constant 0 : index
    %c0_98 = arith.constant 0 : index
    %241 = vector.load %arg9[%c1_96, %c0_97, %c0_98] : memref<2x1x64xf32, #tpu.memory_space<vmem>>, vector<1x1x64xf32>
    %242 = vector.shape_cast %241 : vector<1x1x64xf32> to vector<1x64xf32>
    %243 = vector.broadcast %242 : vector<1x64xf32> to vector<8x64xf32>
    %244 = arith.addf %240, %243 : vector<8x64xf32>
    %cst_99 = arith.constant 0.000000e+00 : f32
    %245 = vector.broadcast %cst_99 : f32 to vector<8x64xf32>
    %246 = arith.maximumf %244, %245 : vector<8x64xf32>
    %c1_100 = arith.constant 1 : index
    %c0_101 = arith.constant 0 : index
    %c0_102 = arith.constant 0 : index
    %247 = vector.load %arg10[%c1_100, %c0_101, %c0_102] : memref<2x64x32xf32, #tpu.memory_space<vmem>>, vector<1x64x32xf32>
    %248 = vector.shape_cast %247 : vector<1x64x32xf32> to vector<64x32xf32>
    %cst_103 = arith.constant dense<0.000000e+00> : vector<8x32xf32>
    %249 = tpu.matmul %246, %248, %cst_103 {dimension_numbers = #tpu.dot_dimension_numbers<[1], [0], [0], [1], [0, 0, 1, 1], [], []>} : vector<8x64xf32>, vector<64x32xf32>, vector<8x32xf32> -> vector<8x32xf32>
    %c1_104 = arith.constant 1 : index
    %c0_105 = arith.constant 0 : index
    %c0_106 = arith.constant 0 : index
    %250 = vector.load %arg11[%c1_104, %c0_105, %c0_106] : memref<2x1x32xf32, #tpu.memory_space<vmem>>, vector<1x1x32xf32>
    %251 = vector.shape_cast %250 : vector<1x1x32xf32> to vector<1x32xf32>
    %252 = vector.broadcast %251 : vector<1x32xf32> to vector<8x32xf32>
    %253 = arith.addf %249, %252 : vector<8x32xf32>
    %254 = arith.addf %237, %253 : vector<8x32xf32>
    %c1_107 = arith.constant 1 : index
    %c0_108 = arith.constant 0 : index
    %c0_109 = arith.constant 0 : index
    %255 = vector.load %arg14[%c1_107, %c0_108, %c0_109] : memref<2x1x32xf32, #tpu.memory_space<vmem>>, vector<1x1x32xf32>
    %256 = vector.shape_cast %255 : vector<1x1x32xf32> to vector<1x32xf32>
    %c1_110 = arith.constant 1 : index
    %c0_111 = arith.constant 0 : index
    %c0_112 = arith.constant 0 : index
    %257 = vector.load %arg15[%c1_110, %c0_111, %c0_112] : memref<2x1x32xf32, #tpu.memory_space<vmem>>, vector<1x1x32xf32>
    %258 = vector.shape_cast %257 : vector<1x1x32xf32> to vector<1x32xf32>
    %cst_113 = arith.constant dense<0.000000e+00> : vector<8xf32>
    %259 = vector.multi_reduction <add>, %254, %cst_113 [1] : vector<8x32xf32> to vector<8xf32>
    %260 = vector.shape_cast %259 : vector<8xf32> to vector<8x1xf32>
    %cst_114 = arith.constant 3.200000e+01 : f32
    %261 = vector.broadcast %cst_114 : f32 to vector<8x1xf32>
    %262 = arith.divf %260, %261 : vector<8x1xf32>
    %263 = vector.broadcast %262 : vector<8x1xf32> to vector<8x32xf32>
    %264 = arith.subf %254, %263 : vector<8x32xf32>
    %265 = arith.mulf %264, %264 : vector<8x32xf32>
    %cst_115 = arith.constant dense<0.000000e+00> : vector<8xf32>
    %266 = vector.multi_reduction <add>, %265, %cst_115 [1] : vector<8x32xf32> to vector<8xf32>
    %267 = vector.shape_cast %266 : vector<8xf32> to vector<8x1xf32>
    %cst_116 = arith.constant 3.200000e+01 : f32
    %268 = vector.broadcast %cst_116 : f32 to vector<8x1xf32>
    %269 = arith.divf %267, %268 : vector<8x1xf32>
    %270 = vector.broadcast %262 : vector<8x1xf32> to vector<8x32xf32>
    %271 = arith.subf %254, %270 : vector<8x32xf32>
    %cst_117 = arith.constant 9.99999974E-6 : f32
    %272 = vector.broadcast %cst_117 : f32 to vector<8x1xf32>
    %273 = arith.addf %269, %272 : vector<8x1xf32>
    %274 = math.rsqrt %273 : vector<8x1xf32>
    %275 = vector.broadcast %274 : vector<8x1xf32> to vector<8x32xf32>
    %276 = arith.mulf %271, %275 : vector<8x32xf32>
    %277 = vector.broadcast %256 : vector<1x32xf32> to vector<8x32xf32>
    %278 = arith.mulf %276, %277 : vector<8x32xf32>
    %279 = vector.broadcast %258 : vector<1x32xf32> to vector<8x32xf32>
    %280 = arith.addf %278, %279 : vector<8x32xf32>
    %281 = vector.shape_cast %280 : vector<8x32xf32> to vector<1x8x32xf32>
    %c0_118 = arith.constant 0 : index
    %c0_119 = arith.constant 0 : index
    %c0_120 = arith.constant 0 : index
    %282 = vector.load %arg16[%c0_118, %c0_119, %c0_120] : memref<1x8x32xf32, #tpu.memory_space<vmem>>, vector<1x8x32xf32>
    tpu.vector_store %arg16[%c0_118, %c0_119, %c0_120], %281 {strides = array<i32>} : memref<1x8x32xf32, #tpu.memory_space<vmem>>, vector<1x8x32xf32>,
    return
  }
  func.func @transform_0(%arg0: i32, %arg1: memref<2x8xi32, #tpu.memory_space<smem>>) -> (i32, i32) {
    %c0_i32 = arith.constant 0 : i32
    %c0_i32_0 = arith.constant 0 : i32
    %c0_i32_1 = arith.constant 0 : i32
    return %c0_i32, %c0_i32_0 : i32, i32
  }
  func.func @transform_1(%arg0: i32, %arg1: memref<2x8xi32, #tpu.memory_space<smem>>) -> (i32, i32) {
    %c0_i32 = arith.constant 0 : i32
    %c0_i32_0 = arith.constant 0 : i32
    %c0_i32_1 = arith.constant 0 : i32
    return %c0_i32, %c0_i32_0 : i32, i32
  }
  func.func @transform_2(%arg0: i32, %arg1: memref<2x8xi32, #tpu.memory_space<smem>>) -> (i32, i32, i32) {
    %c0_i32 = arith.constant 0 : i32
    %c0_i32_0 = arith.constant 0 : i32
    %c0_i32_1 = arith.constant 0 : i32
    %c0_i32_2 = arith.constant 0 : i32
    return %c0_i32, %c0_i32_0, %c0_i32_1 : i32, i32, i32
  }
  func.func @transform_3(%arg0: i32, %arg1: memref<2x8xi32, #tpu.memory_space<smem>>) -> (i32, i32, i32) {
    %c0_i32 = arith.constant 0 : i32
    %c0_i32_0 = arith.constant 0 : i32
    %c0_i32_1 = arith.constant 0 : i32
    %c0_i32_2 = arith.constant 0 : i32
    return %c0_i32, %c0_i32_0, %c0_i32_1 : i32, i32, i32
  }
  func.func @transform_4(%arg0: i32, %arg1: memref<2x8xi32, #tpu.memory_space<smem>>) -> (i32, i32, i32, i32) {
    %c0_i32 = arith.constant 0 : i32
    %c0_i32_0 = arith.constant 0 : i32
    %c0_i32_1 = arith.constant 0 : i32
    %c0_i32_2 = arith.constant 0 : i32
    %c0_i32_3 = arith.constant 0 : i32
    return %c0_i32, %c0_i32_0, %c0_i32_1, %c0_i32_2 : i32, i32, i32, i32
  }
  func.func @transform_5(%arg0: i32, %arg1: memref<2x8xi32, #tpu.memory_space<smem>>) -> (i32, i32, i32) {
    %c0_i32 = arith.constant 0 : i32
    %c0_i32_0 = arith.constant 0 : i32
    %c0_i32_1 = arith.constant 0 : i32
    %c0_i32_2 = arith.constant 0 : i32
    return %c0_i32, %c0_i32_0, %c0_i32_1 : i32, i32, i32
  }
  func.func @transform_6(%arg0: i32, %arg1: memref<2x8xi32, #tpu.memory_space<smem>>) -> (i32, i32, i32) {
    %c0_i32 = arith.constant 0 : i32
    %c0_i32_0 = arith.constant 0 : i32
    %c0_i32_1 = arith.constant 0 : i32
    %c0_i32_2 = arith.constant 0 : i32
    return %c0_i32, %c0_i32_0, %c0_i32_1 : i32, i32, i32
  }
  func.func @transform_7(%arg0: i32, %arg1: memref<2x8xi32, #tpu.memory_space<smem>>) -> (i32, i32, i32) {
    %c0_i32 = arith.constant 0 : i32
    %c0_i32_0 = arith.constant 0 : i32
    %c0_i32_1 = arith.constant 0 : i32
    %c0_i32_2 = arith.constant 0 : i32
    return %c0_i32, %c0_i32_0, %c0_i32_1 : i32, i32, i32
  }
  func.func @transform_8(%arg0: i32, %arg1: memref<2x8xi32, #tpu.memory_space<smem>>) -> (i32, i32, i32) {
    %c0_i32 = arith.constant 0 : i32
    %c0_i32_0 = arith.constant 0 : i32
    %c0_i32_1 = arith.constant 0 : i32
    %c0_i32_2 = arith.constant 0 : i32
    return %c0_i32, %c0_i32_0, %c0_i32_1 : i32, i32, i32
  }
  func.func @transform_9(%arg0: i32, %arg1: memref<2x8xi32, #tpu.memory_space<smem>>) -> (i32, i32, i32) {
    %c0_i32 = arith.constant 0 : i32
    %c0_i32_0 = arith.constant 0 : i32
    %c0_i32_1 = arith.constant 0 : i32
    %c0_i32_2 = arith.constant 0 : i32
    return %c0_i32, %c0_i32_0, %c0_i32_1 : i32, i32, i32
  }
  func.func @transform_10(%arg0: i32, %arg1: memref<2x8xi32, #tpu.memory_space<smem>>) -> (i32, i32, i32) {
    %c0_i32 = arith.constant 0 : i32
    %c0_i32_0 = arith.constant 0 : i32
    %c0_i32_1 = arith.constant 0 : i32
    %c0_i32_2 = arith.constant 0 : i32
    return %c0_i32, %c0_i32_0, %c0_i32_1 : i32, i32, i32
  }
  func.func @transform_11(%arg0: i32, %arg1: memref<2x8xi32, #tpu.memory_space<smem>>) -> (i32, i32, i32) {
    %c0_i32 = arith.constant 0 : i32
    %c0_i32_0 = arith.constant 0 : i32
    %c0_i32_1 = arith.constant 0 : i32
    %c0_i32_2 = arith.constant 0 : i32
    return %c0_i32, %c0_i32_0, %c0_i32_1 : i32, i32, i32
  }
  func.func @transform_12(%arg0: i32, %arg1: memref<2x8xi32, #tpu.memory_space<smem>>) -> (i32, i32, i32) {
    %c0_i32 = arith.constant 0 : i32
    %c0_i32_0 = arith.constant 0 : i32
    %c0_i32_1 = arith.constant 0 : i32
    %c0_i32_2 = arith.constant 0 : i32
    return %c0_i32, %c0_i32_0, %c0_i32_1 : i32, i32, i32
  }
  func.func @transform_13(%arg0: i32, %arg1: memref<2x8xi32, #tpu.memory_space<smem>>) -> (i32, i32, i32) {
    %c0_i32 = arith.constant 0 : i32
    %c0_i32_0 = arith.constant 0 : i32
    %c0_i32_1 = arith.constant 0 : i32
    %c0_i32_2 = arith.constant 0 : i32
    return %c0_i32, %c0_i32_0, %c0_i32_1 : i32, i32, i32
  }
  func.func @transform_14(%arg0: i32, %arg1: memref<2x8xi32, #tpu.memory_space<smem>>) -> (i32, i32, i32) {
    %c0_i32 = arith.constant 0 : i32
    %c0_i32_0 = arith.constant 0 : i32
    %c0_i32_1 = arith.constant 0 : i32
    return %arg0, %c0_i32, %c0_i32_0 : i32, i32, i32
  }
}

</mosaic_0001>

<llo_original>
// kernel: tpu_custom_call.1
$region0: #{tpu_custom_call.1}
  #allocation0 [shape = 'u32[]', space=smem, size = 0x4, offset = 0x4, fixed_abs, tag = 'smem constant byte address 0x4 - core index']
  #allocation1 [shape = 'u32[144,128]{1,0:T(1,128)}', space=vmem, size = 0x12000, scoped, tag = 'internal scratch']
  #allocation2 [shape = 's32[1]{0}', space=sflag, size = 0x4, scoped, tag = 'scoped memory for tpu_custom_call.1']
  #allocation3 [shape = 'u8[1024]{0}', space=smem, size = 0x400, scoped, tag = 'prefetched SMEM operand 0']
  %s0 = inlined_call_operand.vmem [shape: s32[2,8], index: 0, kind: input, shape index: {}]
  %s1 = inlined_call_operand.vmem [shape: f32[50,32], index: 1, kind: input, shape index: {}]
  %s2 = inlined_call_operand.vmem [shape: f32[8,32], index: 2, kind: input, shape index: {}]
  %s3 = inlined_call_operand.vmem [shape: f32[2,32,96], index: 3, kind: input, shape index: {}]
  %s4 = inlined_call_operand.vmem [shape: f32[2,1,96], index: 4, kind: input, shape index: {}]
  %s5 = inlined_call_operand.vmem [shape: f32[2,4,8,32], index: 5, kind: input, shape index: {}]
  %s6 = inlined_call_operand.vmem [shape: f32[2,1,32], index: 6, kind: input, shape index: {}]
  %s7 = inlined_call_operand.vmem [shape: f32[2,32,64], index: 7, kind: input, shape index: {}]
  %s8 = inlined_call_operand.vmem [shape: f32[2,1,64], index: 8, kind: input, shape index: {}]
  %s9 = inlined_call_operand.vmem [shape: f32[2,64,32], index: 9, kind: input, shape index: {}]
  %s10 = inlined_call_operand.vmem [shape: f32[2,1,32], index: 10, kind: input, shape index: {}]
  %s11 = inlined_call_operand.vmem [shape: f32[2,1,32], index: 11, kind: input, shape index: {}]
  %s12 = inlined_call_operand.vmem [shape: f32[2,1,32], index: 12, kind: input, shape index: {}]
  %s13 = inlined_call_operand.vmem [shape: f32[2,1,32], index: 13, kind: input, shape index: {}]
  %s14 = inlined_call_operand.vmem [shape: f32[2,1,32], index: 14, kind: input, shape index: {}]
  %s15 = inlined_call_operand.hbm [shape: f32[2,8,32], index: 15, kind: output, shape index: {}]
  %s16 = sld [smem:[#allocation0]]
  $region89: #{tpu_custom_call.1} parent=0
    _
  %s18 = ssub.s32 1, %s16
  %s19 = scalar_select 0, %s18, %s16
  %s20 = sshll.u32 %s0, 4
  %s21 = int_to_ptr.vmem [resolvable:$true] %s20
  %23 = dma.vmem_to_smem %s21, 32, [#allocation3], [#allocation2]
  %24 = dma.done [#allocation2], 32
  %25 = sfence
  $region1: #{tpu_custom_call.1} parent=0
    #allocation4 [shape = 'u8[8192]{0}', space=vmem, size = 0x2000, scoped, tag = 'output window, operand 0']
    #allocation5 [shape = 's32[2]{0}', space=sflag, size = 0x8, scoped, tag = 'scoped memory for tpu_custom_call.1']
    %26 = vsyncpa [#allocation5], 0
    %s27 = scalar_lea.sflag [#allocation5], 1
    %28 = vsyncpa %s27, 0
    loop: start=0, step=1, limit=4
    $region2: #{tpu_custom_call.1} parent=1 // loop_pre_header
      _
    $region3: #{tpu_custom_call.1} parent=1 // loop_header
      %s30 = sphi 0, %s34
      %p31 = scmp.ge.s32.totalorder %s30, 4
      %s38 = sphi 0, %s38
      %s40 = sphi 0, %s38
      %s41 = sphi 0, %s40
      %s55 = sphi 0, %s41
      %s59 = sphi 0, %s59
      %s61 = sphi 0, %s59
      %s62 = sphi 0, %s61
      %s76 = sphi 0, %s62
      %s80 = sphi 0, %s80
      %s82 = sphi 0, %s80
      %s83 = sphi 0, %s82
      %s97 = sphi 0, %s83
      %s101 = sphi 0, %s101
      %s103 = sphi 0, %s101
      %s104 = sphi 0, %s103
      %s118 = sphi 0, %s104
      %s122 = sphi 0, %s122
      %s124 = sphi 0, %s122
      %s125 = sphi 0, %s124
      %s139 = sphi 0, %s125
      %s143 = sphi 0, %s143
      %s145 = sphi 0, %s143
      %s146 = sphi 0, %s145
      %s160 = sphi 0, %s146
      %s164 = sphi 0, %s164
      %s166 = sphi 0, %s164
      %s167 = sphi 0, %s166
      %s181 = sphi 0, %s167
      %s185 = sphi 0, %s185
      %s187 = sphi 0, %s185
      %s188 = sphi 0, %s187
      %s202 = sphi 0, %s188
      %s206 = sphi 0, %s206
      %s208 = sphi 0, %s206
      %s209 = sphi 0, %s208
      %s223 = sphi 0, %s209
      %s227 = sphi 0, %s227
      %s229 = sphi 0, %s227
      %s230 = sphi 0, %s229
      %s244 = sphi 0, %s230
      %s248 = sphi 0, %s248
      %s250 = sphi 0, %s248
      %s251 = sphi 0, %s250
      %s265 = sphi 0, %s251
      %s269 = sphi 0, %s269
      %s271 = sphi 0, %s269
      %s272 = sphi 0, %s271
      %s286 = sphi 0, %s272
      %s290 = sphi 0, %s290
      %s292 = sphi 0, %s290
      %s293 = sphi 0, %s292
      %s307 = sphi 0, %s293
      %s311 = sphi 0, %s311
      %s313 = sphi 0, %s311
      %s314 = sphi 0, %s313
      %s328 = sphi 0, %s314
      %s334 = sphi 0, %s336
      %s337 = sphi 0, %s334
      %s338 = sphi 0, %s337
      %s354 = sphi 0, %s338
    $region4: #{tpu_custom_call.1} parent=1 // loop_header_branch
      %33 = sbr.rel (%p31) target = $region8
    $region5: #{tpu_custom_call.1} parent=1 // loop_body
      %s35 = ssub.s32 %s30, 1
      %s36 = ssub.s32 %s30, 2
      %s37 = sadd.s32 %s30, 1
      %s39 = sadd.s32 %s38, 1
      %p42 = scmp.eq.s32.totalorder %s30, 1
      %p43 = scmp.ne.s32.totalorder %s38, %s40
      %p44 = scmp.eq.s32.totalorder %s30, 0
      %p45 = por %p43, %p44
      %p46 = scmp.ne.s32.totalorder %s38, %s40
      %p47 = scmp.eq.s32.totalorder %s35, 1
      %p48 = por %p46, %p47
      %p49 = scmp.ne.s32.totalorder %s40, %s41
      %p50 = scmp.eq.s32.totalorder %s35, 0
      %p51 = por %p49, %p50
      %p52 = scmp.ne.s32.totalorder %s40, %s41
      %p53 = scmp.eq.s32.totalorder %s36, 1
      %p54 = por %p52, %p53
      %p56 = scmp.ne.s32.totalorder %s41, %s55
      %p57 = scmp.eq.s32.totalorder %s36, 0
      %p58 = por %p56, %p57
      %s60 = sadd.s32 %s59, 1
      %p63 = scmp.eq.s32.totalorder %s30, 1
      %p64 = scmp.ne.s32.totalorder %s59, %s61
      %p65 = scmp.eq.s32.totalorder %s30, 0
      %p66 = por %p64, %p65
      %p67 = scmp.ne.s32.totalorder %s59, %s61
      %p68 = scmp.eq.s32.totalorder %s35, 1
      %p69 = por %p67, %p68
      %p70 = scmp.ne.s32.totalorder %s61, %s62
      %p71 = scmp.eq.s32.totalorder %s35, 0
      %p72 = por %p70, %p71
      %p73 = scmp.ne.s32.totalorder %s61, %s62
      %p74 = scmp.eq.s32.totalorder %s36, 1
      %p75 = por %p73, %p74
      %p77 = scmp.ne.s32.totalorder %s62, %s76
      %p78 = scmp.eq.s32.totalorder %s36, 0
      %p79 = por %p77, %p78
      %s81 = sadd.s32 %s80, 1
      %p84 = scmp.eq.s32.totalorder %s30, 1
      %p85 = scmp.ne.s32.totalorder %s80, %s82
      %p86 = scmp.eq.s32.totalorder %s30, 0
      %p87 = por %p85, %p86
      %p88 = scmp.ne.s32.totalorder %s80, %s82
      %p89 = scmp.eq.s32.totalorder %s35, 1
      %p90 = por %p88, %p89
      %p91 = scmp.ne.s32.totalorder %s82, %s83
      %p92 = scmp.eq.s32.totalorder %s35, 0
      %p93 = por %p91, %p92
      %p94 = scmp.ne.s32.totalorder %s82, %s83
      %p95 = scmp.eq.s32.totalorder %s36, 1
      %p96 = por %p94, %p95
      %p98 = scmp.ne.s32.totalorder %s83, %s97
      %p99 = scmp.eq.s32.totalorder %s36, 0
      %p100 = por %p98, %p99
      %s102 = sadd.s32 %s101, 1
      %p105 = scmp.eq.s32.totalorder %s30, 1
      %p106 = scmp.ne.s32.totalorder %s101, %s103
      %p107 = scmp.eq.s32.totalorder %s30, 0
      %p108 = por %p106, %p107
      %p109 = scmp.ne.s32.totalorder %s101, %s103
      %p110 = scmp.eq.s32.totalorder %s35, 1
      %p111 = por %p109, %p110
      %p112 = scmp.ne.s32.totalorder %s103, %s104
      %p113 = scmp.eq.s32.totalorder %s35, 0
      %p114 = por %p112, %p113
      %p115 = scmp.ne.s32.totalorder %s103, %s104
      %p116 = scmp.eq.s32.totalorder %s36, 1
      %p117 = por %p115, %p116
      %p119 = scmp.ne.s32.totalorder %s104, %s118
      %p120 = scmp.eq.s32.totalorder %s36, 0
      %p121 = por %p119, %p120
      %s123 = sadd.s32 %s122, 1
      %p126 = scmp.eq.s32.totalorder %s30, 1
      %p127 = scmp.ne.s32.totalorder %s122, %s124
      %p128 = scmp.eq.s32.totalorder %s30, 0
      %p129 = por %p127, %p128
      %p130 = scmp.ne.s32.totalorder %s122, %s124
      %p131 = scmp.eq.s32.totalorder %s35, 1
      %p132 = por %p130, %p131
      %p133 = scmp.ne.s32.totalorder %s124, %s125
      %p134 = scmp.eq.s32.totalorder %s35, 0
      %p135 = por %p133, %p134
      %p136 = scmp.ne.s32.totalorder %s124, %s125
      %p137 = scmp.eq.s32.totalorder %s36, 1
      %p138 = por %p136, %p137
      %p140 = scmp.ne.s32.totalorder %s125, %s139
      %p141 = scmp.eq.s32.totalorder %s36, 0
      %p142 = por %p140, %p141
      %s144 = sadd.s32 %s143, 1
      %p147 = scmp.eq.s32.totalorder %s30, 1
      %p148 = scmp.ne.s32.totalorder %s143, %s145
      %p149 = scmp.eq.s32.totalorder %s30, 0
      %p150 = por %p148, %p149
      %p151 = scmp.ne.s32.totalorder %s143, %s145
      %p152 = scmp.eq.s32.totalorder %s35, 1
      %p153 = por %p151, %p152
      %p154 = scmp.ne.s32.totalorder %s145, %s146
      %p155 = scmp.eq.s32.totalorder %s35, 0
      %p156 = por %p154, %p155
      %p157 = scmp.ne.s32.totalorder %s145, %s146
      %p158 = scmp.eq.s32.totalorder %s36, 1
      %p159 = por %p157, %p158
      %p161 = scmp.ne.s32.totalorder %s146, %s160
      %p162 = scmp.eq.s32.totalorder %s36, 0
      %p163 = por %p161, %p162
      %s165 = sadd.s32 %s164, 1
      %p168 = scmp.eq.s32.totalorder %s30, 1
      %p169 = scmp.ne.s32.totalorder %s164, %s166
      %p170 = scmp.eq.s32.totalorder %s30, 0
      %p171 = por %p169, %p170
      %p172 = scmp.ne.s32.totalorder %s164, %s166
      %p173 = scmp.eq.s32.totalorder %s35, 1
      %p174 = por %p172, %p173
      %p175 = scmp.ne.s32.totalorder %s166, %s167
      %p176 = scmp.eq.s32.totalorder %s35, 0
      %p177 = por %p175, %p176
      %p178 = scmp.ne.s32.totalorder %s166, %s167
      %p179 = scmp.eq.s32.totalorder %s36, 1
      %p180 = por %p178, %p179
      %p182 = scmp.ne.s32.totalorder %s167, %s181
      %p183 = scmp.eq.s32.totalorder %s36, 0
      %p184 = por %p182, %p183
      %s186 = sadd.s32 %s185, 1
      %p189 = scmp.eq.s32.totalorder %s30, 1
      %p190 = scmp.ne.s32.totalorder %s185, %s187
      %p191 = scmp.eq.s32.totalorder %s30, 0
      %p192 = por %p190, %p191
      %p193 = scmp.ne.s32.totalorder %s185, %s187
      %p194 = scmp.eq.s32.totalorder %s35, 1
      %p195 = por %p193, %p194
      %p196 = scmp.ne.s32.totalorder %s187, %s188
      %p197 = scmp.eq.s32.totalorder %s35, 0
      %p198 = por %p196, %p197
      %p199 = scmp.ne.s32.totalorder %s187, %s188
      %p200 = scmp.eq.s32.totalorder %s36, 1
      %p201 = por %p199, %p200
      %p203 = scmp.ne.s32.totalorder %s188, %s202
      %p204 = scmp.eq.s32.totalorder %s36, 0
      %p205 = por %p203, %p204
      %s207 = sadd.s32 %s206, 1
      %p210 = scmp.eq.s32.totalorder %s30, 1
      %p211 = scmp.ne.s32.totalorder %s206, %s208
      %p212 = scmp.eq.s32.totalorder %s30, 0
      %p213 = por %p211, %p212
      %p214 = scmp.ne.s32.totalorder %s206, %s208
      %p215 = scmp.eq.s32.totalorder %s35, 1
      %p216 = por %p214, %p215
      %p217 = scmp.ne.s32.totalorder %s208, %s209
      %p218 = scmp.eq.s32.totalorder %s35, 0
      %p219 = por %p217, %p218
      %p220 = scmp.ne.s32.totalorder %s208, %s209
      %p221 = scmp.eq.s32.totalorder %s36, 1
      %p222 = por %p220, %p221
      %p224 = scmp.ne.s32.totalorder %s209, %s223
      %p225 = scmp.eq.s32.totalorder %s36, 0
      %p226 = por %p224, %p225
      %s228 = sadd.s32 %s227, 1
      %p231 = scmp.eq.s32.totalorder %s30, 1
      %p232 = scmp.ne.s32.totalorder %s227, %s229
      %p233 = scmp.eq.s32.totalorder %s30, 0
      %p234 = por %p232, %p233
      %p235 = scmp.ne.s32.totalorder %s227, %s229
      %p236 = scmp.eq.s32.totalorder %s35, 1
      %p237 = por %p235, %p236
      %p238 = scmp.ne.s32.totalorder %s229, %s230
      %p239 = scmp.eq.s32.totalorder %s35, 0
      %p240 = por %p238, %p239
      %p241 = scmp.ne.s32.totalorder %s229, %s230
      %p242 = scmp.eq.s32.totalorder %s36, 1
      %p243 = por %p241, %p242
      %p245 = scmp.ne.s32.totalorder %s230, %s244
      %p246 = scmp.eq.s32.totalorder %s36, 0
      %p247 = por %p245, %p246
      %s249 = sadd.s32 %s248, 1
      %p252 = scmp.eq.s32.totalorder %s30, 1
      %p253 = scmp.ne.s32.totalorder %s248, %s250
      %p254 = scmp.eq.s32.totalorder %s30, 0
      %p255 = por %p253, %p254
      %p256 = scmp.ne.s32.totalorder %s248, %s250
      %p257 = scmp.eq.s32.totalorder %s35, 1
      %p258 = por %p256, %p257
      %p259 = scmp.ne.s32.totalorder %s250, %s251
      %p260 = scmp.eq.s32.totalorder %s35, 0
      %p261 = por %p259, %p260
      %p262 = scmp.ne.s32.totalorder %s250, %s251
      %p263 = scmp.eq.s32.totalorder %s36, 1
      %p264 = por %p262, %p263
      %p266 = scmp.ne.s32.totalorder %s251, %s265
      %p267 = scmp.eq.s32.totalorder %s36, 0
      %p268 = por %p266, %p267
      %s270 = sadd.s32 %s269, 1
      %p273 = scmp.eq.s32.totalorder %s30, 1
      %p274 = scmp.ne.s32.totalorder %s269, %s271
      %p275 = scmp.eq.s32.totalorder %s30, 0
      %p276 = por %p274, %p275
      %p277 = scmp.ne.s32.totalorder %s269, %s271
      %p278 = scmp.eq.s32.totalorder %s35, 1
      %p279 = por %p277, %p278
      %p280 = scmp.ne.s32.totalorder %s271, %s272
      %p281 = scmp.eq.s32.totalorder %s35, 0
      %p282 = por %p280, %p281
      %p283 = scmp.ne.s32.totalorder %s271, %s272
      %p284 = scmp.eq.s32.totalorder %s36, 1
      %p285 = por %p283, %p284
      %p287 = scmp.ne.s32.totalorder %s272, %s286
      %p288 = scmp.eq.s32.totalorder %s36, 0
      %p289 = por %p287, %p288
      %s291 = sadd.s32 %s290, 1
      %p294 = scmp.eq.s32.totalorder %s30, 1
      %p295 = scmp.ne.s32.totalorder %s290, %s292
      %p296 = scmp.eq.s32.totalorder %s30, 0
      %p297 = por %p295, %p296
      %p298 = scmp.ne.s32.totalorder %s290, %s292
      %p299 = scmp.eq.s32.totalorder %s35, 1
      %p300 = por %p298, %p299
      %p301 = scmp.ne.s32.totalorder %s292, %s293
      %p302 = scmp.eq.s32.totalorder %s35, 0
      %p303 = por %p301, %p302
      %p304 = scmp.ne.s32.totalorder %s292, %s293
      %p305 = scmp.eq.s32.totalorder %s36, 1
      %p306 = por %p304, %p305
      %p308 = scmp.ne.s32.totalorder %s293, %s307
      %p309 = scmp.eq.s32.totalorder %s36, 0
      %p310 = por %p308, %p309
      %s312 = sadd.s32 %s311, 1
      %p315 = scmp.eq.s32.totalorder %s30, 1
      %p316 = scmp.ne.s32.totalorder %s311, %s313
      %p317 = scmp.eq.s32.totalorder %s30, 0
      %p318 = por %p316, %p317
      %p319 = scmp.ne.s32.totalorder %s311, %s313
      %p320 = scmp.eq.s32.totalorder %s35, 1
      %p321 = por %p319, %p320
      %p322 = scmp.ne.s32.totalorder %s313, %s314
      %p323 = scmp.eq.s32.totalorder %s35, 0
      %p324 = por %p322, %p323
      %p325 = scmp.ne.s32.totalorder %s313, %s314
      %p326 = scmp.eq.s32.totalorder %s36, 1
      %p327 = por %p325, %p326
      %p329 = scmp.ne.s32.totalorder %s314, %s328
      %p330 = scmp.eq.s32.totalorder %s36, 0
      %p331 = por %p329, %p330
      %s332 = ssub.s32 %s30, %s37
      %p333 = scmp.eq.s32.totalorder %s332, 0
      %s335 = sadd.s32 %s334, 1
      %s336 = scalar_select %p333, %s334, %s335
      %p339 = pneg %p333
      %p340 = scmp.eq.s32.totalorder %s30, 1
      %p341 = por %p339, %p340
      %p342 = scmp.ne.s32.totalorder %s334, %s337
      %p343 = scmp.eq.s32.totalorder %s30, 0
      %p344 = por %p342, %p343
      %p345 = scmp.ne.s32.totalorder %s334, %s337
      %p346 = scmp.eq.s32.totalorder %s35, 1
      %p347 = por %p345, %p346
      %p348 = scmp.ne.s32.totalorder %s337, %s338
      %p349 = scmp.eq.s32.totalorder %s35, 0
      %p350 = por %p348, %p349
      %p351 = scmp.ne.s32.totalorder %s337, %s338
      %p352 = scmp.eq.s32.totalorder %s36, 1
      %p353 = por %p351, %p352
      %p355 = scmp.ne.s32.totalorder %s338, %s354
      %p356 = scmp.eq.s32.totalorder %s36, 0
      %p357 = por %p355, %p356
      %p358 = scmp.le.s32.totalorder 1, %s30
      %p359 = scmp.lt.s32.totalorder %s30, 3
      %p360 = pnand %p358, %p359
      %p361 = pneg %p360
      // Predicated region
      $region9: #{tpu_custom_call.1} parent=5 // pred_check
        _
      $region10: #{tpu_custom_call.1} parent=5 // pred_check_branch
        %363 = sbr.rel (%p360) target = $region12
      $region11: #{tpu_custom_call.1} parent=5 // pred_region
        %s364 = ssub.s32 %s30, 1
        // Predicated region
        $region13: #{tpu_custom_call.1} parent=11 // pred_check
          %p365 = pneg %p51
        $region14: #{tpu_custom_call.1} parent=11 // pred_check_branch
          %367 = sbr.rel (%p365) target = $region16
        $region15: #{tpu_custom_call.1} parent=11 // pred_region
          _
        $region16: #{tpu_custom_call.1} parent=11 // pred_fallthru
          _
        // Predicated region
        $region17: #{tpu_custom_call.1} parent=11 // pred_check
          %p368 = pneg %p72
        $region18: #{tpu_custom_call.1} parent=11 // pred_check_branch
          %370 = sbr.rel (%p368) target = $region20
        $region19: #{tpu_custom_call.1} parent=11 // pred_region
          _
        $region20: #{tpu_custom_call.1} parent=11 // pred_fallthru
          _
        // Predicated region
        $region21: #{tpu_custom_call.1} parent=11 // pred_check
          %p371 = pneg %p93
        $region22: #{tpu_custom_call.1} parent=11 // pred_check_branch
          %373 = sbr.rel (%p371) target = $region24
        $region23: #{tpu_custom_call.1} parent=11 // pred_region
          _
        $region24: #{tpu_custom_call.1} parent=11 // pred_fallthru
          _
        // Predicated region
        $region25: #{tpu_custom_call.1} parent=11 // pred_check
          %p374 = pneg %p114
        $region26: #{tpu_custom_call.1} parent=11 // pred_check_branch
          %376 = sbr.rel (%p374) target = $region28
        $region27: #{tpu_custom_call.1} parent=11 // pred_region
          _
        $region28: #{tpu_custom_call.1} parent=11 // pred_fallthru
          _
        // Predicated region
        $region29: #{tpu_custom_call.1} parent=11 // pred_check
          %p377 = pneg %p135
        $region30: #{tpu_custom_call.1} parent=11 // pred_check_branch
          %379 = sbr.rel (%p377) target = $region32
        $region31: #{tpu_custom_call.1} parent=11 // pred_region
          _
        $region32: #{tpu_custom_call.1} parent=11 // pred_fallthru
          _
        // Predicated region
        $region33: #{tpu_custom_call.1} parent=11 // pred_check
          %p380 = pneg %p156
        $region34: #{tpu_custom_call.1} parent=11 // pred_check_branch
          %382 = sbr.rel (%p380) target = $region36
        $region35: #{tpu_custom_call.1} parent=11 // pred_region
          _
        $region36: #{tpu_custom_call.1} parent=11 // pred_fallthru
          _
        // Predicated region
        $region37: #{tpu_custom_call.1} parent=11 // pred_check
          %p383 = pneg %p177
        $region38: #{tpu_custom_call.1} parent=11 // pred_check_branch
          %385 = sbr.rel (%p383) target = $region40
        $region39: #{tpu_custom_call.1} parent=11 // pred_region
          _
        $region40: #{tpu_custom_call.1} parent=11 // pred_fallthru
          _
        // Predicated region
        $region41: #{tpu_custom_call.1} parent=11 // pred_check
          %p386 = pneg %p198
        $region42: #{tpu_custom_call.1} parent=11 // pred_check_branch
          %388 = sbr.rel (%p386) target = $region44
        $region43: #{tpu_custom_call.1} parent=11 // pred_region
          _
        $region44: #{tpu_custom_call.1} parent=11 // pred_fallthru
          _
        // Predicated region
        $region45: #{tpu_custom_call.1} parent=11 // pred_check
          %p389 = pneg %p219
        $region46: #{tpu_custom_call.1} parent=11 // pred_check_branch
          %391 = sbr.rel (%p389) target = $region48
        $region47: #{tpu_custom_call.1} parent=11 // pred_region
          _
        $region48: #{tpu_custom_call.1} parent=11 // pred_fallthru
          _
        // Predicated region
        $region49: #{tpu_custom_call.1} parent=11 // pred_check
          %p392 = pneg %p240
        $region50: #{tpu_custom_call.1} parent=11 // pred_check_branch
          %394 = sbr.rel (%p392) target = $region52
        $region51: #{tpu_custom_call.1} parent=11 // pred_region
          _
        $region52: #{tpu_custom_call.1} parent=11 // pred_fallthru
          _
        // Predicated region
        $region53: #{tpu_custom_call.1} parent=11 // pred_check
          %p395 = pneg %p261
        $region54: #{tpu_custom_call.1} parent=11 // pred_check_branch
          %397 = sbr.rel (%p395) target = $region56
        $region55: #{tpu_custom_call.1} parent=11 // pred_region
          _
        $region56: #{tpu_custom_call.1} parent=11 // pred_fallthru
          _
        // Predicated region
        $region57: #{tpu_custom_call.1} parent=11 // pred_check
          %p398 = pneg %p282
        $region58: #{tpu_custom_call.1} parent=11 // pred_check_branch
          %400 = sbr.rel (%p398) target = $region60
        $region59: #{tpu_custom_call.1} parent=11 // pred_region
          _
        $region60: #{tpu_custom_call.1} parent=11 // pred_fallthru
          _
        // Predicated region
        $region61: #{tpu_custom_call.1} parent=11 // pred_check
          %p401 = pneg %p303
        $region62: #{tpu_custom_call.1} parent=11 // pred_check_branch
          %403 = sbr.rel (%p401) target = $region64
        $region63: #{tpu_custom_call.1} parent=11 // pred_region
          _
        $region64: #{tpu_custom_call.1} parent=11 // pred_fallthru
          _
        // Predicated region
        $region65: #{tpu_custom_call.1} parent=11 // pred_check
          %p404 = pneg %p324
        $region66: #{tpu_custom_call.1} parent=11 // pred_check_branch
          %406 = sbr.rel (%p404) target = $region68
        $region67: #{tpu_custom_call.1} parent=11 // pred_region
          _
        $region68: #{tpu_custom_call.1} parent=11 // pred_fallthru
          _
      $region12: #{tpu_custom_call.1} parent=5 // pred_fallthru
        _
      %p407 = scmp.lt.s32.totalorder %s30, 2
      // Predicated region
      $region69: #{tpu_custom_call.1} parent=5 // pred_check
        %p408 = pneg %p407
      $region70: #{tpu_custom_call.1} parent=5 // pred_check_branch
        %410 = sbr.rel (%p408) target = $region72
      $region71: #{tpu_custom_call.1} parent=5 // pred_region
        _
      $region72: #{tpu_custom_call.1} parent=5 // pred_fallthru
        _
      %p411 = scmp.le.s32.totalorder 1, %s30
      %p412 = scmp.lt.s32.totalorder %s30, 3
      %p413 = pnand %p411, %p412
      %p414 = pneg %p413
      // Predicated region
      $region73: #{tpu_custom_call.1} parent=5 // pred_check
        _
      $region74: #{tpu_custom_call.1} parent=5 // pred_check_branch
        %416 = sbr.rel (%p413) target = $region76
      $region75: #{tpu_custom_call.1} parent=5 // pred_region
        %s417 = ssub.s32 %s30, 1
        %p418 = pneg %p51
        %p419 = pneg %p48
        %p420 = pneg %p72
        %p421 = pneg %p69
        %p422 = pneg %p93
        %p423 = pneg %p90
        %p424 = pneg %p114
        %p425 = pneg %p111
        %p426 = pneg %p135
        %p427 = pneg %p132
        %p428 = pneg %p156
        %p429 = pneg %p153
        %p430 = pneg %p177
        %p431 = pneg %p174
        %p432 = pneg %p198
        %p433 = pneg %p195
        %p434 = pneg %p219
        %p435 = pneg %p216
        %p436 = pneg %p240
        %p437 = pneg %p237
        %p438 = pneg %p261
        %p439 = pneg %p258
        %p440 = pneg %p282
        %p441 = pneg %p279
        %p442 = pneg %p303
        %p443 = pneg %p300
        %p444 = pneg %p324
        %p445 = pneg %p321
        %p446 = pneg %p350
        %p447 = pneg %p347
        %s448 = sand.u32 %s337, 1
        %s449 = scalar_lea.sflag [#allocation5], %s448
        %s450 = sand.u32 %s337, 1
        %s451 = smul.addr %s450, 8
        %s452 = scalar_lea.vmem [#allocation4], %s451
        %v453 = vlaneseq
        %v454 = vand.u32 %v453, 127
        %s455 = smul.u32 %s35, 128
        %s456 = sld [smem:[#allocation3 + %s455]]
        %v457 = vstv %s456
        %s458 = sadd.s32 %s455, 1
        %s459 = sld [smem:[#allocation3 + %s458]]
        %v460 = vstv %s459
        %s461 = sadd.s32 %s455, 2
        %s462 = sld [smem:[#allocation3 + %s461]]
        %v463 = vstv %s462
        %s464 = sadd.s32 %s455, 3
        %s465 = sld [smem:[#allocation3 + %s464]]
        %v466 = vstv %s465
        %s467 = sadd.s32 %s455, 4
        %s468 = sld [smem:[#allocation3 + %s467]]
        %v469 = vstv %s468
        %s470 = sadd.s32 %s455, 5
        %s471 = sld [smem:[#allocation3 + %s470]]
        %v472 = vstv %s471
        %s473 = sadd.s32 %s455, 6
        %s474 = sld [smem:[#allocation3 + %s473]]
        %v475 = vstv %s474
        %s476 = sadd.s32 %s455, 7
        %s477 = sld [smem:[#allocation3 + %s476]]
        %v478 = vstv %s477
        %vm479 = vcmask 1040384
        %v480 = vsel %vm479, %v457, %v460
        %vm481 = vcmask 1041408
        %v482 = vsel %vm481, %v480, %v463
        %vm483 = vcmask 1042432
        %v484 = vsel %vm483, %v482, %v466
        %vm485 = vcmask 1043456
        %v486 = vsel %vm485, %v484, %v469
        %vm487 = vcmask 1044480
        %v488 = vsel %vm487, %v486, %v472
        %vm489 = vcmask 1045504
        %v490 = vsel %vm489, %v488, %v475
        %vm491 = vcmask 1046528
        %v492 = vsel %vm491, %v490, %v478
        %vm493 = vcmp.eq.s32.totalorder %v454, %v492
        %v494 = vsel %vm493, 1, 0
        %v495 = vcvt.s32.f32 %v494
        %v496 = vld [vmem:[%s1] sm:$0xff]
        %v497 = vld [vmem:[%s1 + $0x8] sm:$0xff]
        %v498 = vld [vmem:[%s1 + $0x10] sm:$0xff]
        %v499 = vld [vmem:[%s1 + $0x18] sm:$0xff]
        %v500 = vld [vmem:[%s1 + $0x20] sm:$0xff]
        %v501 = vld [vmem:[%s1 + $0x28] sm:$0xff]
        %v502 = vld [vmem:[%s1 + $0x30] sm:$0x3]
        %v503 = vld [vmem:[%s2] sm:$0xff]
        %vm504 = vcmask 408576
        %v506 = vsel %vm504, %v495, 0
        %v509 = vsel %vm481, %v502, 0
        %511 = vmatprep.subr.mxu0 0.0
        %512 = vmatpush1.msra.mxu0 %v496
        %513 = vmatprep.subr.mxu0 0.0
        %514 = vmatpush1.msra.mxu0 %v497
        %515 = vmatprep.subr.mxu0 0.0
        %516 = vmatpush1.msra.mxu0 %v498
        %517 = vmatprep.subr.mxu0 0.0
        %518 = vmatpush1.msra.mxu0 %v499
        %519 = vmatprep.subr.mxu0 0.0
        %520 = vmatpush1.msra.mxu0 %v500
        %521 = vmatprep.subr.mxu0 0.0
        %522 = vmatpush1.msra.mxu0 %v501
        %523 = vmatprep.subr.mxu0 0.0
        %524 = vmatpush1.msra.mxu0 %v509
        %525 = vmatprep.subr.mxu0 0.0
        %526 = vmatpush1.msra.mxu0 0.0
        %527 = vmatprep.subr.mxu0 0.0
        %528 = vmatpush1.msra.mxu0 0.0
        %529 = vmatprep.subr.mxu0 0.0
        %530 = vmatpush1.msra.mxu0 0.0
        %531 = vmatprep.subr.mxu0 0.0
        %532 = vmatpush1.msra.mxu0 0.0
        %533 = vmatprep.subr.mxu0 0.0
        %534 = vmatpush1.msra.mxu0 0.0
        %535 = vmatprep.subr.mxu0 0.0
        %536 = vmatpush1.msra.mxu0 0.0
        %537 = vmatprep.subr.mxu0 0.0
        %538 = vmatpush1.msra.mxu0 0.0
        %539 = vmatprep.subr.mxu0 0.0
        %540 = vmatpush1.msra.mxu0 0.0
        %541 = vmatprep.subr.mxu0 0.0
        %542 = vmatpush1.msra.mxu0 0.0
        %543 = vmatprep.subr.mxu0 0.0
        %544 = vmatpush1.msra.mxu0 0.0
        %545 = vmatprep.subr.mxu0 0.0
        %546 = vmatpush1.msra.mxu0 0.0
        %547 = vmatprep.subr.mxu0 0.0
        %548 = vmatpush1.msra.mxu0 0.0
        %549 = vmatprep.subr.mxu0 0.0
        %550 = vmatpush1.msra.mxu0 0.0
        %551 = vmatprep.subr.mxu0 0.0
        %552 = vmatpush1.msra.mxu0 0.0
        %553 = vmatprep.subr.mxu0 0.0
        %554 = vmatpush1.msra.mxu0 0.0
        %555 = vmatprep.subr.mxu0 0.0
        %556 = vmatpush1.msra.mxu0 0.0
        %557 = vmatprep.subr.mxu0 0.0
        %558 = vmatpush1.msra.mxu0 0.0
        %559 = vmatprep.subr.mxu0 0.0
        %560 = vmatpush1.msra.mxu0 0.0
        %561 = vmatprep.subr.mxu0 0.0
        %562 = vmatpush1.msra.mxu0 0.0
        %563 = vmatprep.subr.mxu0 0.0
        %564 = vmatpush1.msra.mxu0 0.0
        %565 = vmatprep.subr.mxu0 0.0
        %566 = vmatpush1.msra.mxu0 0.0
        %567 = vmatprep.subr.mxu0 0.0
        %568 = vmatpush1.msra.mxu0 0.0
        %569 = vmatprep.subr.mxu0 0.0
        %570 = vmatpush1.msra.mxu0 0.0
        %571 = vmatprep.subr.mxu0 0.0
        %572 = vmatpush1.msra.mxu0 0.0
        %573 = vmatprep.subr.mxu0 0.0
        %574 = vmatpush1.msra.mxu0 0.0
        %575 = vmatprep.mubr.f32.mxu0 0.0
        %576 = vmatmul.mubr.f32.gmra.mrb[0].mxu0 %v506
        %v577 = vpop.f32.mrb[0].mxu0
        %v578 = vadd.f32 %v503, %v577
        %v579 = vpop.f32.mrb[0].mxu0
        %580 = vdwg.mxu0
        %v581 = vld [vmem:[%s3] sm:$0xff]
        %v582 = vld [vmem:[%s3 + $0x8] sm:$0xff]
        %v583 = vld [vmem:[%s3 + $0x10] sm:$0xff]
        %v584 = vld [vmem:[%s3 + $0x18] sm:$0xff]
        %v585 = vld [vmem:[%s4] sm:$0x1]
        %v587 = vlaneseq
        %v588 = vshrl.u32 %v587, 7
        %v589 = vsub.s32 0, %v588
        %v590 = vrot.slane %v585, %v589
        %vm592 = vcmask 261120
        %v594 = vsel %vm592, %v578, 0
        %596 = vmatprep.subr.mxu0 0.0
        %597 = vmatpush1.msra.mxu0 %v581
        %598 = vmatprep.subr.mxu0 0.0
        %599 = vmatpush1.msra.mxu0 %v582
        %600 = vmatprep.subr.mxu0 0.0
        %601 = vmatpush1.msra.mxu0 %v583
        %602 = vmatprep.subr.mxu0 0.0
        %603 = vmatpush1.msra.mxu0 %v584
        %604 = vmatprep.subr.mxu0 0.0
        %605 = vmatpush1.msra.mxu0 0.0
        %606 = vmatprep.subr.mxu0 0.0
        %607 = vmatpush1.msra.mxu0 0.0
        %608 = vmatprep.subr.mxu0 0.0
        %609 = vmatpush1.msra.mxu0 0.0
        %610 = vmatprep.subr.mxu0 0.0
        %611 = vmatpush1.msra.mxu0 0.0
        %612 = vmatprep.subr.mxu0 0.0
        %613 = vmatpush1.msra.mxu0 0.0
        %614 = vmatprep.subr.mxu0 0.0
        %615 = vmatpush1.msra.mxu0 0.0
        %616 = vmatprep.subr.mxu0 0.0
        %617 = vmatpush1.msra.mxu0 0.0
        %618 = vmatprep.subr.mxu0 0.0
        %619 = vmatpush1.msra.mxu0 0.0
        %620 = vmatprep.subr.mxu0 0.0
        %621 = vmatpush1.msra.mxu0 0.0
        %622 = vmatprep.subr.mxu0 0.0
        %623 = vmatpush1.msra.mxu0 0.0
        %624 = vmatprep.subr.mxu0 0.0
        %625 = vmatpush1.msra.mxu0 0.0
        %626 = vmatprep.subr.mxu0 0.0
        %627 = vmatpush1.msra.mxu0 0.0
        %628 = vmatprep.subr.mxu0 0.0
        %629 = vmatpush1.msra.mxu0 0.0
        %630 = vmatprep.subr.mxu0 0.0
        %631 = vmatpush1.msra.mxu0 0.0
        %632 = vmatprep.subr.mxu0 0.0
        %633 = vmatpush1.msra.mxu0 0.0
        %634 = vmatprep.subr.mxu0 0.0
        %635 = vmatpush1.msra.mxu0 0.0
        %636 = vmatprep.subr.mxu0 0.0
        %637 = vmatpush1.msra.mxu0 0.0
        %638 = vmatprep.subr.mxu0 0.0
        %639 = vmatpush1.msra.mxu0 0.0
        %640 = vmatprep.subr.mxu0 0.0
        %641 = vmatpush1.msra.mxu0 0.0
        %642 = vmatprep.subr.mxu0 0.0
        %643 = vmatpush1.msra.mxu0 0.0
        %644 = vmatprep.subr.mxu0 0.0
        %645 = vmatpush1.msra.mxu0 0.0
        %646 = vmatprep.subr.mxu0 0.0
        %647 = vmatpush1.msra.mxu0 0.0
        %648 = vmatprep.subr.mxu0 0.0
        %649 = vmatpush1.msra.mxu0 0.0
        %650 = vmatprep.subr.mxu0 0.0
        %651 = vmatpush1.msra.mxu0 0.0
        %652 = vmatprep.subr.mxu0 0.0
        %653 = vmatpush1.msra.mxu0 0.0
        %654 = vmatprep.subr.mxu0 0.0
        %655 = vmatpush1.msra.mxu0 0.0
        %656 = vmatprep.subr.mxu0 0.0
        %657 = vmatpush1.msra.mxu0 0.0
        %658 = vmatprep.subr.mxu0 0.0
        %659 = vmatpush1.msra.mxu0 0.0
        %660 = vmatprep.mubr.f32.mxu0 0.0
        %661 = vmatmul.mubr.f32.gmra.mrb[0].mxu0 %v594
        %v662 = vpop.f32.mrb[0].mxu0
        %v663 = vadd.f32 %v590, %v662
        %v664 = vpop.f32.mrb[0].mxu0
        %665 = vdwg.mxu0
        %667 = vrot.lane.b32.xlu0 %v663, 120
        %v668 = vpop.permute.xlu0 %667
        %669 = vrot.lane.b32.xlu0 %v663, 112
        %v670 = vpop.permute.xlu0 %669
        %671 = vrot.lane.b32.xlu0 %v663, 104
        %v672 = vpop.permute.xlu0 %671
        %673 = vrot.lane.b32.xlu0 %v663, 96
        %v674 = vpop.permute.xlu0 %673
        %vm675 = vcmask 64512
        %v676 = vsel %vm675, %v663, 0
        %v678 = vsel %vm675, %v674, 0
        %680 = vmatprep.subr.mxu0 0.0
        %681 = vmatpush1.xpose.msra.mxu0 %v678
        %682 = vmatprep.subr.mxu0 0.0
        %683 = vmatpush1.xpose.msra.mxu0 0.0
        %684 = vmatprep.subr.mxu0 0.0
        %685 = vmatpush1.xpose.msra.mxu0 0.0
        %686 = vmatprep.subr.mxu0 0.0
        %687 = vmatpush1.xpose.msra.mxu0 0.0
        %688 = vmatprep.subr.mxu0 0.0
        %689 = vmatpush1.xpose.msra.mxu0 0.0
        %690 = vmatprep.subr.mxu0 0.0
        %691 = vmatpush1.xpose.msra.mxu0 0.0
        %692 = vmatprep.subr.mxu0 0.0
        %693 = vmatpush1.xpose.msra.mxu0 0.0
        %694 = vmatprep.subr.mxu0 0.0
        %695 = vmatpush1.xpose.msra.mxu0 0.0
        %696 = vmatprep.subr.mxu0 0.0
        %697 = vmatpush1.xpose.msra.mxu0 0.0
        %698 = vmatprep.subr.mxu0 0.0
        %699 = vmatpush1.xpose.msra.mxu0 0.0
        %700 = vmatprep.subr.mxu0 0.0
        %701 = vmatpush1.xpose.msra.mxu0 0.0
        %702 = vmatprep.subr.mxu0 0.0
        %703 = vmatpush1.xpose.msra.mxu0 0.0
        %704 = vmatprep.subr.mxu0 0.0
        %705 = vmatpush1.xpose.msra.mxu0 0.0
        %706 = vmatprep.subr.mxu0 0.0
        %707 = vmatpush1.xpose.msra.mxu0 0.0
        %708 = vmatprep.subr.mxu0 0.0
        %709 = vmatpush1.xpose.msra.mxu0 0.0
        %710 = vmatprep.subr.mxu0 0.0
        %711 = vmatpush1.xpose.msra.mxu0 0.0
        %712 = vmatprep.subr.mxu0 0.0
        %713 = vmatpush1.xpose.msra.mxu0 0.0
        %714 = vmatprep.subr.mxu0 0.0
        %715 = vmatpush1.xpose.msra.mxu0 0.0
        %716 = vmatprep.subr.mxu0 0.0
        %717 = vmatpush1.xpose.msra.mxu0 0.0
        %718 = vmatprep.subr.mxu0 0.0
        %719 = vmatpush1.xpose.msra.mxu0 0.0
        %720 = vmatprep.subr.mxu0 0.0
        %721 = vmatpush1.xpose.msra.mxu0 0.0
        %722 = vmatprep.subr.mxu0 0.0
        %723 = vmatpush1.xpose.msra.mxu0 0.0
        %724 = vmatprep.subr.mxu0 0.0
        %725 = vmatpush1.xpose.msra.mxu0 0.0
        %726 = vmatprep.subr.mxu0 0.0
        %727 = vmatpush1.xpose.msra.mxu0 0.0
        %728 = vmatprep.subr.mxu0 0.0
        %729 = vmatpush1.xpose.msra.mxu0 0.0
        %730 = vmatprep.subr.mxu0 0.0
        %731 = vmatpush1.xpose.msra.mxu0 0.0
        %732 = vmatprep.subr.mxu0 0.0
        %733 = vmatpush1.xpose.msra.mxu0 0.0
        %734 = vmatprep.subr.mxu0 0.0
        %735 = vmatpush1.xpose.msra.mxu0 0.0
        %736 = vmatprep.subr.mxu0 0.0
        %737 = vmatpush1.xpose.msra.mxu0 0.0
        %738 = vmatprep.subr.mxu0 0.0
        %739 = vmatpush1.xpose.msra.mxu0 0.0
        %740 = vmatprep.subr.mxu0 0.0
        %741 = vmatpush1.xpose.msra.mxu0 0.0
        %742 = vmatprep.subr.mxu0 0.0
        %743 = vmatpush1.xpose.msra.mxu0 0.0
        %744 = vmatprep.mubr.f32.mxu0 0.0
        %745 = vmatmul.mubr.f32.gmra.mrb[0].mxu0 %v676
        %v746 = vpop.f32.mrb[0].mxu0
        %v747 = vadd.f32 0.0, %v746
        %v748 = vpop.f32.mrb[0].mxu0
        %749 = vdwg.mxu0
        %750 = vrot.lane.b32.xlu0 %v668, 96
        %v751 = vpop.permute.xlu0 %750
        %v752 = vsel %vm675, %v668, 0
        %v754 = vsel %vm675, %v751, 0
        %756 = vmatprep.subr.mxu0 0.0
        %757 = vmatpush1.xpose.msra.mxu0 %v754
        %758 = vmatprep.subr.mxu0 0.0
        %759 = vmatpush1.xpose.msra.mxu0 0.0
        %760 = vmatprep.subr.mxu0 0.0
        %761 = vmatpush1.xpose.msra.mxu0 0.0
        %762 = vmatprep.subr.mxu0 0.0
        %763 = vmatpush1.xpose.msra.mxu0 0.0
        %764 = vmatprep.subr.mxu0 0.0
        %765 = vmatpush1.xpose.msra.mxu0 0.0
        %766 = vmatprep.subr.mxu0 0.0
        %767 = vmatpush1.xpose.msra.mxu0 0.0
        %768 = vmatprep.subr.mxu0 0.0
        %769 = vmatpush1.xpose.msra.mxu0 0.0
        %770 = vmatprep.subr.mxu0 0.0
        %771 = vmatpush1.xpose.msra.mxu0 0.0
        %772 = vmatprep.subr.mxu0 0.0
        %773 = vmatpush1.xpose.msra.mxu0 0.0
        %774 = vmatprep.subr.mxu0 0.0
        %775 = vmatpush1.xpose.msra.mxu0 0.0
        %776 = vmatprep.subr.mxu0 0.0
        %777 = vmatpush1.xpose.msra.mxu0 0.0
        %778 = vmatprep.subr.mxu0 0.0
        %779 = vmatpush1.xpose.msra.mxu0 0.0
        %780 = vmatprep.subr.mxu0 0.0
        %781 = vmatpush1.xpose.msra.mxu0 0.0
        %782 = vmatprep.subr.mxu0 0.0
        %783 = vmatpush1.xpose.msra.mxu0 0.0
        %784 = vmatprep.subr.mxu0 0.0
        %785 = vmatpush1.xpose.msra.mxu0 0.0
        %786 = vmatprep.subr.mxu0 0.0
        %787 = vmatpush1.xpose.msra.mxu0 0.0
        %788 = vmatprep.subr.mxu0 0.0
        %789 = vmatpush1.xpose.msra.mxu0 0.0
        %790 = vmatprep.subr.mxu0 0.0
        %791 = vmatpush1.xpose.msra.mxu0 0.0
        %792 = vmatprep.subr.mxu0 0.0
        %793 = vmatpush1.xpose.msra.mxu0 0.0
        %794 = vmatprep.subr.mxu0 0.0
        %795 = vmatpush1.xpose.msra.mxu0 0.0
        %796 = vmatprep.subr.mxu0 0.0
        %797 = vmatpush1.xpose.msra.mxu0 0.0
        %798 = vmatprep.subr.mxu0 0.0
        %799 = vmatpush1.xpose.msra.mxu0 0.0
        %800 = vmatprep.subr.mxu0 0.0
        %801 = vmatpush1.xpose.msra.mxu0 0.0
        %802 = vmatprep.subr.mxu0 0.0
        %803 = vmatpush1.xpose.msra.mxu0 0.0
        %804 = vmatprep.subr.mxu0 0.0
        %805 = vmatpush1.xpose.msra.mxu0 0.0
        %806 = vmatprep.subr.mxu0 0.0
        %807 = vmatpush1.xpose.msra.mxu0 0.0
        %808 = vmatprep.subr.mxu0 0.0
        %809 = vmatpush1.xpose.msra.mxu0 0.0
        %810 = vmatprep.subr.mxu0 0.0
        %811 = vmatpush1.xpose.msra.mxu0 0.0
        %812 = vmatprep.subr.mxu0 0.0
        %813 = vmatpush1.xpose.msra.mxu0 0.0
        %814 = vmatprep.subr.mxu0 0.0
        %815 = vmatpush1.xpose.msra.mxu0 0.0
        %816 = vmatprep.subr.mxu0 0.0
        %817 = vmatpush1.xpose.msra.mxu0 0.0
        %818 = vmatprep.subr.mxu0 0.0
        %819 = vmatpush1.xpose.msra.mxu0 0.0
        %820 = vmatprep.mubr.f32.mxu0 0.0
        %821 = vmatmul.mubr.f32.gmra.mrb[0].mxu0 %v752
        %v822 = vpop.f32.mrb[0].mxu0
        %v823 = vadd.f32 0.0, %v822
        %v824 = vpop.f32.mrb[0].mxu0
        %825 = vdwg.mxu0
        %826 = vrot.lane.b32.xlu0 %v670, 96
        %v827 = vpop.permute.xlu0 %826
        %v828 = vsel %vm675, %v670, 0
        %v830 = vsel %vm675, %v827, 0
        %832 = vmatprep.subr.mxu0 0.0
        %833 = vmatpush1.xpose.msra.mxu0 %v830
        %834 = vmatprep.subr.mxu0 0.0
        %835 = vmatpush1.xpose.msra.mxu0 0.0
        %836 = vmatprep.subr.mxu0 0.0
        %837 = vmatpush1.xpose.msra.mxu0 0.0
        %838 = vmatprep.subr.mxu0 0.0
        %839 = vmatpush1.xpose.msra.mxu0 0.0
        %840 = vmatprep.subr.mxu0 0.0
        %841 = vmatpush1.xpose.msra.mxu0 0.0
        %842 = vmatprep.subr.mxu0 0.0
        %843 = vmatpush1.xpose.msra.mxu0 0.0
        %844 = vmatprep.subr.mxu0 0.0
        %845 = vmatpush1.xpose.msra.mxu0 0.0
        %846 = vmatprep.subr.mxu0 0.0
        %847 = vmatpush1.xpose.msra.mxu0 0.0
        %848 = vmatprep.subr.mxu0 0.0
        %849 = vmatpush1.xpose.msra.mxu0 0.0
        %850 = vmatprep.subr.mxu0 0.0
        %851 = vmatpush1.xpose.msra.mxu0 0.0
        %852 = vmatprep.subr.mxu0 0.0
        %853 = vmatpush1.xpose.msra.mxu0 0.0
        %854 = vmatprep.subr.mxu0 0.0
        %855 = vmatpush1.xpose.msra.mxu0 0.0
        %856 = vmatprep.subr.mxu0 0.0
        %857 = vmatpush1.xpose.msra.mxu0 0.0
        %858 = vmatprep.subr.mxu0 0.0
        %859 = vmatpush1.xpose.msra.mxu0 0.0
        %860 = vmatprep.subr.mxu0 0.0
        %861 = vmatpush1.xpose.msra.mxu0 0.0
        %862 = vmatprep.subr.mxu0 0.0
        %863 = vmatpush1.xpose.msra.mxu0 0.0
        %864 = vmatprep.subr.mxu0 0.0
        %865 = vmatpush1.xpose.msra.mxu0 0.0
        %866 = vmatprep.subr.mxu0 0.0
        %867 = vmatpush1.xpose.msra.mxu0 0.0
        %868 = vmatprep.subr.mxu0 0.0
        %869 = vmatpush1.xpose.msra.mxu0 0.0
        %870 = vmatprep.subr.mxu0 0.0
        %871 = vmatpush1.xpose.msra.mxu0 0.0
        %872 = vmatprep.subr.mxu0 0.0
        %873 = vmatpush1.xpose.msra.mxu0 0.0
        %874 = vmatprep.subr.mxu0 0.0
        %875 = vmatpush1.xpose.msra.mxu0 0.0
        %876 = vmatprep.subr.mxu0 0.0
        %877 = vmatpush1.xpose.msra.mxu0 0.0
        %878 = vmatprep.subr.mxu0 0.0
        %879 = vmatpush1.xpose.msra.mxu0 0.0
        %880 = vmatprep.subr.mxu0 0.0
        %881 = vmatpush1.xpose.msra.mxu0 0.0
        %882 = vmatprep.subr.mxu0 0.0
        %883 = vmatpush1.xpose.msra.mxu0 0.0
        %884 = vmatprep.subr.mxu0 0.0
        %885 = vmatpush1.xpose.msra.mxu0 0.0
        %886 = vmatprep.subr.mxu0 0.0
        %887 = vmatpush1.xpose.msra.mxu0 0.0
        %888 = vmatprep.subr.mxu0 0.0
        %889 = vmatpush1.xpose.msra.mxu0 0.0
        %890 = vmatprep.subr.mxu0 0.0
        %891 = vmatpush1.xpose.msra.mxu0 0.0
        %892 = vmatprep.subr.mxu0 0.0
        %893 = vmatpush1.xpose.msra.mxu0 0.0
        %894 = vmatprep.subr.mxu0 0.0
        %895 = vmatpush1.xpose.msra.mxu0 0.0
        %896 = vmatprep.mubr.f32.mxu0 0.0
        %897 = vmatmul.mubr.f32.gmra.mrb[0].mxu0 %v828
        %v898 = vpop.f32.mrb[0].mxu0
        %v899 = vadd.f32 0.0, %v898
        %v900 = vpop.f32.mrb[0].mxu0
        %901 = vdwg.mxu0
        %902 = vrot.lane.b32.xlu0 %v672, 96
        %v903 = vpop.permute.xlu0 %902
        %v904 = vsel %vm675, %v672, 0
        %v906 = vsel %vm675, %v903, 0
        %908 = vmatprep.subr.mxu0 0.0
        %909 = vmatpush1.xpose.msra.mxu0 %v906
        %910 = vmatprep.subr.mxu0 0.0
        %911 = vmatpush1.xpose.msra.mxu0 0.0
        %912 = vmatprep.subr.mxu0 0.0
        %913 = vmatpush1.xpose.msra.mxu0 0.0
        %914 = vmatprep.subr.mxu0 0.0
        %915 = vmatpush1.xpose.msra.mxu0 0.0
        %916 = vmatprep.subr.mxu0 0.0
        %917 = vmatpush1.xpose.msra.mxu0 0.0
        %918 = vmatprep.subr.mxu0 0.0
        %919 = vmatpush1.xpose.msra.mxu0 0.0
        %920 = vmatprep.subr.mxu0 0.0
        %921 = vmatpush1.xpose.msra.mxu0 0.0
        %922 = vmatprep.subr.mxu0 0.0
        %923 = vmatpush1.xpose.msra.mxu0 0.0
        %924 = vmatprep.subr.mxu0 0.0
        %925 = vmatpush1.xpose.msra.mxu0 0.0
        %926 = vmatprep.subr.mxu0 0.0
        %927 = vmatpush1.xpose.msra.mxu0 0.0
        %928 = vmatprep.subr.mxu0 0.0
        %929 = vmatpush1.xpose.msra.mxu0 0.0
        %930 = vmatprep.subr.mxu0 0.0
        %931 = vmatpush1.xpose.msra.mxu0 0.0
        %932 = vmatprep.subr.mxu0 0.0
        %933 = vmatpush1.xpose.msra.mxu0 0.0
        %934 = vmatprep.subr.mxu0 0.0
        %935 = vmatpush1.xpose.msra.mxu0 0.0
        %936 = vmatprep.subr.mxu0 0.0
        %937 = vmatpush1.xpose.msra.mxu0 0.0
        %938 = vmatprep.subr.mxu0 0.0
        %939 = vmatpush1.xpose.msra.mxu0 0.0
        %940 = vmatprep.subr.mxu0 0.0
        %941 = vmatpush1.xpose.msra.mxu0 0.0
        %942 = vmatprep.subr.mxu0 0.0
        %943 = vmatpush1.xpose.msra.mxu0 0.0
        %944 = vmatprep.subr.mxu0 0.0
        %945 = vmatpush1.xpose.msra.mxu0 0.0
        %946 = vmatprep.subr.mxu0 0.0
        %947 = vmatpush1.xpose.msra.mxu0 0.0
        %948 = vmatprep.subr.mxu0 0.0
        %949 = vmatpush1.xpose.msra.mxu0 0.0
        %950 = vmatprep.subr.mxu0 0.0
        %951 = vmatpush1.xpose.msra.mxu0 0.0
        %952 = vmatprep.subr.mxu0 0.0
        %953 = vmatpush1.xpose.msra.mxu0 0.0
        %954 = vmatprep.subr.mxu0 0.0
        %955 = vmatpush1.xpose.msra.mxu0 0.0
        %956 = vmatprep.subr.mxu0 0.0
        %957 = vmatpush1.xpose.msra.mxu0 0.0
        %958 = vmatprep.subr.mxu0 0.0
        %959 = vmatpush1.xpose.msra.mxu0 0.0
        %960 = vmatprep.subr.mxu0 0.0
        %961 = vmatpush1.xpose.msra.mxu0 0.0
        %962 = vmatprep.subr.mxu0 0.0
        %963 = vmatpush1.xpose.msra.mxu0 0.0
        %964 = vmatprep.subr.mxu0 0.0
        %965 = vmatpush1.xpose.msra.mxu0 0.0
        %966 = vmatprep.subr.mxu0 0.0
        %967 = vmatpush1.xpose.msra.mxu0 0.0
        %968 = vmatprep.subr.mxu0 0.0
        %969 = vmatpush1.xpose.msra.mxu0 0.0
        %970 = vmatprep.subr.mxu0 0.0
        %971 = vmatpush1.xpose.msra.mxu0 0.0
        %972 = vmatprep.mubr.f32.mxu0 0.0
        %973 = vmatmul.mubr.f32.gmra.mrb[0].mxu0 %v904
        %v974 = vpop.f32.mrb[0].mxu0
        %v975 = vadd.f32 0.0, %v974
        %v976 = vpop.f32.mrb[0].mxu0
        %977 = vdwg.mxu0
        %v978 = vsel %vm675, %v747, -inf
        %979 = vmax.xlane.f32.xlu0 %v978
        %v980 = vpop.xlane.xlu0 %979
        %v981 = vsel %vm675, %v823, -inf
        %982 = vmax.xlane.f32.xlu0 %v981
        %v983 = vpop.xlane.xlu0 %982
        %v984 = vsel %vm675, %v899, -inf
        %985 = vmax.xlane.f32.xlu0 %v984
        %v986 = vpop.xlane.xlu0 %985
        %v987 = vsel %vm675, %v975, -inf
        %988 = vmax.xlane.f32.xlu0 %v987
        %v989 = vpop.xlane.xlu0 %988
        %v990 = vsub.f32 %v747, %v980
        %v991 = vsub.f32 %v823, %v983
        %v992 = vsub.f32 %v899, %v986
        %v993 = vsub.f32 %v975, %v989
        %v994 = vmul.f32 %v990, 1.442695
        %v995 = vpow.pop %v994
        %v996 = vmul.f32 %v991, 1.442695
        %v997 = vpow.pop %v996
        %v998 = vmul.f32 %v992, 1.442695
        %v999 = vpow.pop %v998
        %v1000 = vmul.f32 %v993, 1.442695
        %v1001 = vpow.pop %v1000
        %v1002 = vsel %vm675, %v995, 0.0
        %1003 = vadd.xlane.f32.xlu0 %v1002
        %v1004 = vpop.xlane.xlu0 %1003
        %v1005 = vsel %vm675, %v997, 0.0
        %1006 = vadd.xlane.f32.xlu0 %v1005
        %v1007 = vpop.xlane.xlu0 %1006
        %v1008 = vsel %vm675, %v999, 0.0
        %1009 = vadd.xlane.f32.xlu0 %v1008
        %v1010 = vpop.xlane.xlu0 %1009
        %v1011 = vsel %vm675, %v1001, 0.0
        %1012 = vadd.xlane.f32.xlu0 %v1011
        %v1013 = vpop.xlane.xlu0 %1012
        %v1014 = vrcp.pop %v1004
        %v1015 = vrcp.pop %v1007
        %v1016 = vrcp.pop %v1010
        %v1017 = vrcp.pop %v1013
        %v1018 = vmul.f32 %v995, %v1014
        %v1019 = vmul.f32 %v997, %v1015
        %v1020 = vmul.f32 %v999, %v1016
        %v1021 = vmul.f32 %v1001, %v1017
        %1022 = vrot.lane.b32.xlu0 %v663, 64
        %v1023 = vpop.permute.xlu0 %1022
        %v1026 = vsel %vm675, %v1018, 0
        %1028 = vmatprep.subr.mxu0 0.0
        %1029 = vmatpush1.msra.mxu0 %v1023
        %1030 = vmatprep.subr.mxu0 0.0
        %1031 = vmatpush1.msra.mxu0 0.0
        %1032 = vmatprep.subr.mxu0 0.0
        %1033 = vmatpush1.msra.mxu0 0.0
        %1034 = vmatprep.subr.mxu0 0.0
        %1035 = vmatpush1.msra.mxu0 0.0
        %1036 = vmatprep.subr.mxu0 0.0
        %1037 = vmatpush1.msra.mxu0 0.0
        %1038 = vmatprep.subr.mxu0 0.0
        %1039 = vmatpush1.msra.mxu0 0.0
        %1040 = vmatprep.subr.mxu0 0.0
        %1041 = vmatpush1.msra.mxu0 0.0
        %1042 = vmatprep.subr.mxu0 0.0
        %1043 = vmatpush1.msra.mxu0 0.0
        %1044 = vmatprep.subr.mxu0 0.0
        %1045 = vmatpush1.msra.mxu0 0.0
        %1046 = vmatprep.subr.mxu0 0.0
        %1047 = vmatpush1.msra.mxu0 0.0
        %1048 = vmatprep.subr.mxu0 0.0
        %1049 = vmatpush1.msra.mxu0 0.0
        %1050 = vmatprep.subr.mxu0 0.0
        %1051 = vmatpush1.msra.mxu0 0.0
        %1052 = vmatprep.subr.mxu0 0.0
        %1053 = vmatpush1.msra.mxu0 0.0
        %1054 = vmatprep.subr.mxu0 0.0
        %1055 = vmatpush1.msra.mxu0 0.0
        %1056 = vmatprep.subr.mxu0 0.0
        %1057 = vmatpush1.msra.mxu0 0.0
        %1058 = vmatprep.subr.mxu0 0.0
        %1059 = vmatpush1.msra.mxu0 0.0
        %1060 = vmatprep.subr.mxu0 0.0
        %1061 = vmatpush1.msra.mxu0 0.0
        %1062 = vmatprep.subr.mxu0 0.0
        %1063 = vmatpush1.msra.mxu0 0.0
        %1064 = vmatprep.subr.mxu0 0.0
        %1065 = vmatpush1.msra.mxu0 0.0
        %1066 = vmatprep.subr.mxu0 0.0
        %1067 = vmatpush1.msra.mxu0 0.0
        %1068 = vmatprep.subr.mxu0 0.0
        %1069 = vmatpush1.msra.mxu0 0.0
        %1070 = vmatprep.subr.mxu0 0.0
        %1071 = vmatpush1.msra.mxu0 0.0
        %1072 = vmatprep.subr.mxu0 0.0
        %1073 = vmatpush1.msra.mxu0 0.0
        %1074 = vmatprep.subr.mxu0 0.0
        %1075 = vmatpush1.msra.mxu0 0.0
        %1076 = vmatprep.subr.mxu0 0.0
        %1077 = vmatpush1.msra.mxu0 0.0
        %1078 = vmatprep.subr.mxu0 0.0
        %1079 = vmatpush1.msra.mxu0 0.0
        %1080 = vmatprep.subr.mxu0 0.0
        %1081 = vmatpush1.msra.mxu0 0.0
        %1082 = vmatprep.subr.mxu0 0.0
        %1083 = vmatpush1.msra.mxu0 0.0
        %1084 = vmatprep.subr.mxu0 0.0
        %1085 = vmatpush1.msra.mxu0 0.0
        %1086 = vmatprep.subr.mxu0 0.0
        %1087 = vmatpush1.msra.mxu0 0.0
        %1088 = vmatprep.subr.mxu0 0.0
        %1089 = vmatpush1.msra.mxu0 0.0
        %1090 = vmatprep.subr.mxu0 0.0
        %1091 = vmatpush1.msra.mxu0 0.0
        %1092 = vmatprep.mubr.f32.mxu0 0.0
        %1093 = vmatmul.mubr.f32.gmra.mrb[0].mxu0 %v1026
        %v1094 = vpop.f32.mrb[0].mxu0
        %v1095 = vadd.f32 0.0, %v1094
        %v1096 = vpop.f32.mrb[0].mxu0
        %1097 = vdwg.mxu0
        %1098 = vrot.lane.b32.xlu0 %v668, 64
        %v1099 = vpop.permute.xlu0 %1098
        %v1102 = vsel %vm675, %v1019, 0
        %1104 = vmatprep.subr.mxu0 0.0
        %1105 = vmatpush1.msra.mxu0 %v1099
        %1106 = vmatprep.subr.mxu0 0.0
        %1107 = vmatpush1.msra.mxu0 0.0
        %1108 = vmatprep.subr.mxu0 0.0
        %1109 = vmatpush1.msra.mxu0 0.0
        %1110 = vmatprep.subr.mxu0 0.0
        %1111 = vmatpush1.msra.mxu0 0.0
        %1112 = vmatprep.subr.mxu0 0.0
        %1113 = vmatpush1.msra.mxu0 0.0
        %1114 = vmatprep.subr.mxu0 0.0
        %1115 = vmatpush1.msra.mxu0 0.0
        %1116 = vmatprep.subr.mxu0 0.0
        %1117 = vmatpush1.msra.mxu0 0.0
        %1118 = vmatprep.subr.mxu0 0.0
        %1119 = vmatpush1.msra.mxu0 0.0
        %1120 = vmatprep.subr.mxu0 0.0
        %1121 = vmatpush1.msra.mxu0 0.0
        %1122 = vmatprep.subr.mxu0 0.0
        %1123 = vmatpush1.msra.mxu0 0.0
        %1124 = vmatprep.subr.mxu0 0.0
        %1125 = vmatpush1.msra.mxu0 0.0
        %1126 = vmatprep.subr.mxu0 0.0
        %1127 = vmatpush1.msra.mxu0 0.0
        %1128 = vmatprep.subr.mxu0 0.0
        %1129 = vmatpush1.msra.mxu0 0.0
        %1130 = vmatprep.subr.mxu0 0.0
        %1131 = vmatpush1.msra.mxu0 0.0
        %1132 = vmatprep.subr.mxu0 0.0
        %1133 = vmatpush1.msra.mxu0 0.0
        %1134 = vmatprep.subr.mxu0 0.0
        %1135 = vmatpush1.msra.mxu0 0.0
        %1136 = vmatprep.subr.mxu0 0.0
        %1137 = vmatpush1.msra.mxu0 0.0
        %1138 = vmatprep.subr.mxu0 0.0
        %1139 = vmatpush1.msra.mxu0 0.0
        %1140 = vmatprep.subr.mxu0 0.0
        %1141 = vmatpush1.msra.mxu0 0.0
        %1142 = vmatprep.subr.mxu0 0.0
        %1143 = vmatpush1.msra.mxu0 0.0
        %1144 = vmatprep.subr.mxu0 0.0
        %1145 = vmatpush1.msra.mxu0 0.0
        %1146 = vmatprep.subr.mxu0 0.0
        %1147 = vmatpush1.msra.mxu0 0.0
        %1148 = vmatprep.subr.mxu0 0.0
        %1149 = vmatpush1.msra.mxu0 0.0
        %1150 = vmatprep.subr.mxu0 0.0
        %1151 = vmatpush1.msra.mxu0 0.0
        %1152 = vmatprep.subr.mxu0 0.0
        %1153 = vmatpush1.msra.mxu0 0.0
        %1154 = vmatprep.subr.mxu0 0.0
        %1155 = vmatpush1.msra.mxu0 0.0
        %1156 = vmatprep.subr.mxu0 0.0
        %1157 = vmatpush1.msra.mxu0 0.0
        %1158 = vmatprep.subr.mxu0 0.0
        %1159 = vmatpush1.msra.mxu0 0.0
        %1160 = vmatprep.subr.mxu0 0.0
        %1161 = vmatpush1.msra.mxu0 0.0
        %1162 = vmatprep.subr.mxu0 0.0
        %1163 = vmatpush1.msra.mxu0 0.0
        %1164 = vmatprep.subr.mxu0 0.0
        %1165 = vmatpush1.msra.mxu0 0.0
        %1166 = vmatprep.subr.mxu0 0.0
        %1167 = vmatpush1.msra.mxu0 0.0
        %1168 = vmatprep.mubr.f32.mxu0 0.0
        %1169 = vmatmul.mubr.f32.gmra.mrb[0].mxu0 %v1102
        %v1170 = vpop.f32.mrb[0].mxu0
        %v1171 = vadd.f32 0.0, %v1170
        %v1172 = vpop.f32.mrb[0].mxu0
        %1173 = vdwg.mxu0
        %1174 = vrot.lane.b32.xlu0 %v670, 64
        %v1175 = vpop.permute.xlu0 %1174
        %v1178 = vsel %vm675, %v1020, 0
        %1180 = vmatprep.subr.mxu0 0.0
        %1181 = vmatpush1.msra.mxu0 %v1175
        %1182 = vmatprep.subr.mxu0 0.0
        %1183 = vmatpush1.msra.mxu0 0.0
        %1184 = vmatprep.subr.mxu0 0.0
        %1185 = vmatpush1.msra.mxu0 0.0
        %1186 = vmatprep.subr.mxu0 0.0
        %1187 = vmatpush1.msra.mxu0 0.0
        %1188 = vmatprep.subr.mxu0 0.0
        %1189 = vmatpush1.msra.mxu0 0.0
        %1190 = vmatprep.subr.mxu0 0.0
        %1191 = vmatpush1.msra.mxu0 0.0
        %1192 = vmatprep.subr.mxu0 0.0
        %1193 = vmatpush1.msra.mxu0 0.0
        %1194 = vmatprep.subr.mxu0 0.0
        %1195 = vmatpush1.msra.mxu0 0.0
        %1196 = vmatprep.subr.mxu0 0.0
        %1197 = vmatpush1.msra.mxu0 0.0
        %1198 = vmatprep.subr.mxu0 0.0
        %1199 = vmatpush1.msra.mxu0 0.0
        %1200 = vmatprep.subr.mxu0 0.0
        %1201 = vmatpush1.msra.mxu0 0.0
        %1202 = vmatprep.subr.mxu0 0.0
        %1203 = vmatpush1.msra.mxu0 0.0
        %1204 = vmatprep.subr.mxu0 0.0
        %1205 = vmatpush1.msra.mxu0 0.0
        %1206 = vmatprep.subr.mxu0 0.0
        %1207 = vmatpush1.msra.mxu0 0.0
        %1208 = vmatprep.subr.mxu0 0.0
        %1209 = vmatpush1.msra.mxu0 0.0
        %1210 = vmatprep.subr.mxu0 0.0
        %1211 = vmatpush1.msra.mxu0 0.0
        %1212 = vmatprep.subr.mxu0 0.0
        %1213 = vmatpush1.msra.mxu0 0.0
        %1214 = vmatprep.subr.mxu0 0.0
        %1215 = vmatpush1.msra.mxu0 0.0
        %1216 = vmatprep.subr.mxu0 0.0
        %1217 = vmatpush1.msra.mxu0 0.0
        %1218 = vmatprep.subr.mxu0 0.0
        %1219 = vmatpush1.msra.mxu0 0.0
        %1220 = vmatprep.subr.mxu0 0.0
        %1221 = vmatpush1.msra.mxu0 0.0
        %1222 = vmatprep.subr.mxu0 0.0
        %1223 = vmatpush1.msra.mxu0 0.0
        %1224 = vmatprep.subr.mxu0 0.0
        %1225 = vmatpush1.msra.mxu0 0.0
        %1226 = vmatprep.subr.mxu0 0.0
        %1227 = vmatpush1.msra.mxu0 0.0
        %1228 = vmatprep.subr.mxu0 0.0
        %1229 = vmatpush1.msra.mxu0 0.0
        %1230 = vmatprep.subr.mxu0 0.0
        %1231 = vmatpush1.msra.mxu0 0.0
        %1232 = vmatprep.subr.mxu0 0.0
        %1233 = vmatpush1.msra.mxu0 0.0
        %1234 = vmatprep.subr.mxu0 0.0
        %1235 = vmatpush1.msra.mxu0 0.0
        %1236 = vmatprep.subr.mxu0 0.0
        %1237 = vmatpush1.msra.mxu0 0.0
        %1238 = vmatprep.subr.mxu0 0.0
        %1239 = vmatpush1.msra.mxu0 0.0
        %1240 = vmatprep.subr.mxu0 0.0
        %1241 = vmatpush1.msra.mxu0 0.0
        %1242 = vmatprep.subr.mxu0 0.0
        %1243 = vmatpush1.msra.mxu0 0.0
        %1244 = vmatprep.mubr.f32.mxu0 0.0
        %1245 = vmatmul.mubr.f32.gmra.mrb[0].mxu0 %v1178
        %v1246 = vpop.f32.mrb[0].mxu0
        %v1247 = vadd.f32 0.0, %v1246
        %v1248 = vpop.f32.mrb[0].mxu0
        %1249 = vdwg.mxu0
        %1250 = vrot.lane.b32.xlu0 %v672, 64
        %v1251 = vpop.permute.xlu0 %1250
        %v1254 = vsel %vm675, %v1021, 0
        %1256 = vmatprep.subr.mxu0 0.0
        %1257 = vmatpush1.msra.mxu0 %v1251
        %1258 = vmatprep.subr.mxu0 0.0
        %1259 = vmatpush1.msra.mxu0 0.0
        %1260 = vmatprep.subr.mxu0 0.0
        %1261 = vmatpush1.msra.mxu0 0.0
        %1262 = vmatprep.subr.mxu0 0.0
        %1263 = vmatpush1.msra.mxu0 0.0
        %1264 = vmatprep.subr.mxu0 0.0
        %1265 = vmatpush1.msra.mxu0 0.0
        %1266 = vmatprep.subr.mxu0 0.0
        %1267 = vmatpush1.msra.mxu0 0.0
        %1268 = vmatprep.subr.mxu0 0.0
        %1269 = vmatpush1.msra.mxu0 0.0
        %1270 = vmatprep.subr.mxu0 0.0
        %1271 = vmatpush1.msra.mxu0 0.0
        %1272 = vmatprep.subr.mxu0 0.0
        %1273 = vmatpush1.msra.mxu0 0.0
        %1274 = vmatprep.subr.mxu0 0.0
        %1275 = vmatpush1.msra.mxu0 0.0
        %1276 = vmatprep.subr.mxu0 0.0
        %1277 = vmatpush1.msra.mxu0 0.0
        %1278 = vmatprep.subr.mxu0 0.0
        %1279 = vmatpush1.msra.mxu0 0.0
        %1280 = vmatprep.subr.mxu0 0.0
        %1281 = vmatpush1.msra.mxu0 0.0
        %1282 = vmatprep.subr.mxu0 0.0
        %1283 = vmatpush1.msra.mxu0 0.0
        %1284 = vmatprep.subr.mxu0 0.0
        %1285 = vmatpush1.msra.mxu0 0.0
        %1286 = vmatprep.subr.mxu0 0.0
        %1287 = vmatpush1.msra.mxu0 0.0
        %1288 = vmatprep.subr.mxu0 0.0
        %1289 = vmatpush1.msra.mxu0 0.0
        %1290 = vmatprep.subr.mxu0 0.0
        %1291 = vmatpush1.msra.mxu0 0.0
        %1292 = vmatprep.subr.mxu0 0.0
        %1293 = vmatpush1.msra.mxu0 0.0
        %1294 = vmatprep.subr.mxu0 0.0
        %1295 = vmatpush1.msra.mxu0 0.0
        %1296 = vmatprep.subr.mxu0 0.0
        %1297 = vmatpush1.msra.mxu0 0.0
        %1298 = vmatprep.subr.mxu0 0.0
        %1299 = vmatpush1.msra.mxu0 0.0
        %1300 = vmatprep.subr.mxu0 0.0
        %1301 = vmatpush1.msra.mxu0 0.0
        %1302 = vmatprep.subr.mxu0 0.0
        %1303 = vmatpush1.msra.mxu0 0.0
        %1304 = vmatprep.subr.mxu0 0.0
        %1305 = vmatpush1.msra.mxu0 0.0
        %1306 = vmatprep.subr.mxu0 0.0
        %1307 = vmatpush1.msra.mxu0 0.0
        %1308 = vmatprep.subr.mxu0 0.0
        %1309 = vmatpush1.msra.mxu0 0.0
        %1310 = vmatprep.subr.mxu0 0.0
        %1311 = vmatpush1.msra.mxu0 0.0
        %1312 = vmatprep.subr.mxu0 0.0
        %1313 = vmatpush1.msra.mxu0 0.0
        %1314 = vmatprep.subr.mxu0 0.0
        %1315 = vmatpush1.msra.mxu0 0.0
        %1316 = vmatprep.subr.mxu0 0.0
        %1317 = vmatpush1.msra.mxu0 0.0
        %1318 = vmatprep.subr.mxu0 0.0
        %1319 = vmatpush1.msra.mxu0 0.0
        %1320 = vmatprep.mubr.f32.mxu0 0.0
        %1321 = vmatmul.mubr.f32.gmra.mrb[0].mxu0 %v1254
        %v1322 = vpop.f32.mrb[0].mxu0
        %v1323 = vadd.f32 0.0, %v1322
        %v1324 = vpop.f32.mrb[0].mxu0
        %1325 = vdwg.mxu0
        %v1326 = vld [vmem:[%s5] sm:$0xff]
        %v1327 = vld [vmem:[%s5 + $0x8] sm:$0xff]
        %v1328 = vld [vmem:[%s5 + $0x10] sm:$0xff]
        %v1329 = vld [vmem:[%s5 + $0x18] sm:$0xff]
        %v1331 = vsel %vm675, %v1095, 0
        %1333 = vmatprep.subr.mxu0 0.0
        %1334 = vmatpush1.msra.mxu0 %v1326
        %1335 = vmatprep.subr.mxu0 0.0
        %1336 = vmatpush1.msra.mxu0 0.0
        %1337 = vmatprep.subr.mxu0 0.0
        %1338 = vmatpush1.msra.mxu0 0.0
        %1339 = vmatprep.subr.mxu0 0.0
        %1340 = vmatpush1.msra.mxu0 0.0
        %1341 = vmatprep.subr.mxu0 0.0
        %1342 = vmatpush1.msra.mxu0 0.0
        %1343 = vmatprep.subr.mxu0 0.0
        %1344 = vmatpush1.msra.mxu0 0.0
        %1345 = vmatprep.subr.mxu0 0.0
        %1346 = vmatpush1.msra.mxu0 0.0
        %1347 = vmatprep.subr.mxu0 0.0
        %1348 = vmatpush1.msra.mxu0 0.0
        %1349 = vmatprep.subr.mxu0 0.0
        %1350 = vmatpush1.msra.mxu0 0.0
        %1351 = vmatprep.subr.mxu0 0.0
        %1352 = vmatpush1.msra.mxu0 0.0
        %1353 = vmatprep.subr.mxu0 0.0
        %1354 = vmatpush1.msra.mxu0 0.0
        %1355 = vmatprep.subr.mxu0 0.0
        %1356 = vmatpush1.msra.mxu0 0.0
        %1357 = vmatprep.subr.mxu0 0.0
        %1358 = vmatpush1.msra.mxu0 0.0
        %1359 = vmatprep.subr.mxu0 0.0
        %1360 = vmatpush1.msra.mxu0 0.0
        %1361 = vmatprep.subr.mxu0 0.0
        %1362 = vmatpush1.msra.mxu0 0.0
        %1363 = vmatprep.subr.mxu0 0.0
        %1364 = vmatpush1.msra.mxu0 0.0
        %1365 = vmatprep.subr.mxu0 0.0
        %1366 = vmatpush1.msra.mxu0 0.0
        %1367 = vmatprep.subr.mxu0 0.0
        %1368 = vmatpush1.msra.mxu0 0.0
        %1369 = vmatprep.subr.mxu0 0.0
        %1370 = vmatpush1.msra.mxu0 0.0
        %1371 = vmatprep.subr.mxu0 0.0
        %1372 = vmatpush1.msra.mxu0 0.0
        %1373 = vmatprep.subr.mxu0 0.0
        %1374 = vmatpush1.msra.mxu0 0.0
        %1375 = vmatprep.subr.mxu0 0.0
        %1376 = vmatpush1.msra.mxu0 0.0
        %1377 = vmatprep.subr.mxu0 0.0
        %1378 = vmatpush1.msra.mxu0 0.0
        %1379 = vmatprep.subr.mxu0 0.0
        %1380 = vmatpush1.msra.mxu0 0.0
        %1381 = vmatprep.subr.mxu0 0.0
        %1382 = vmatpush1.msra.mxu0 0.0
        %1383 = vmatprep.subr.mxu0 0.0
        %1384 = vmatpush1.msra.mxu0 0.0
        %1385 = vmatprep.subr.mxu0 0.0
        %1386 = vmatpush1.msra.mxu0 0.0
        %1387 = vmatprep.subr.mxu0 0.0
        %1388 = vmatpush1.msra.mxu0 0.0
        %1389 = vmatprep.subr.mxu0 0.0
        %1390 = vmatpush1.msra.mxu0 0.0
        %1391 = vmatprep.subr.mxu0 0.0
        %1392 = vmatpush1.msra.mxu0 0.0
        %1393 = vmatprep.subr.mxu0 0.0
        %1394 = vmatpush1.msra.mxu0 0.0
        %1395 = vmatprep.subr.mxu0 0.0
        %1396 = vmatpush1.msra.mxu0 0.0
        %1397 = vmatprep.mubr.f32.mxu0 0.0
        %1398 = vmatmul.mubr.f32.gmra.mrb[0].mxu0 %v1331
        %v1399 = vpop.f32.mrb[0].mxu0
        %v1400 = vadd.f32 0.0, %v1399
        %v1401 = vpop.f32.mrb[0].mxu0
        %1402 = vdwg.mxu0
        %v1404 = vsel %vm675, %v1171, 0
        %1406 = vmatprep.subr.mxu0 0.0
        %1407 = vmatpush1.msra.mxu0 %v1327
        %1408 = vmatprep.subr.mxu0 0.0
        %1409 = vmatpush1.msra.mxu0 0.0
        %1410 = vmatprep.subr.mxu0 0.0
        %1411 = vmatpush1.msra.mxu0 0.0
        %1412 = vmatprep.subr.mxu0 0.0
        %1413 = vmatpush1.msra.mxu0 0.0
        %1414 = vmatprep.subr.mxu0 0.0
        %1415 = vmatpush1.msra.mxu0 0.0
        %1416 = vmatprep.subr.mxu0 0.0
        %1417 = vmatpush1.msra.mxu0 0.0
        %1418 = vmatprep.subr.mxu0 0.0
        %1419 = vmatpush1.msra.mxu0 0.0
        %1420 = vmatprep.subr.mxu0 0.0
        %1421 = vmatpush1.msra.mxu0 0.0
        %1422 = vmatprep.subr.mxu0 0.0
        %1423 = vmatpush1.msra.mxu0 0.0
        %1424 = vmatprep.subr.mxu0 0.0
        %1425 = vmatpush1.msra.mxu0 0.0
        %1426 = vmatprep.subr.mxu0 0.0
        %1427 = vmatpush1.msra.mxu0 0.0
        %1428 = vmatprep.subr.mxu0 0.0
        %1429 = vmatpush1.msra.mxu0 0.0
        %1430 = vmatprep.subr.mxu0 0.0
        %1431 = vmatpush1.msra.mxu0 0.0
        %1432 = vmatprep.subr.mxu0 0.0
        %1433 = vmatpush1.msra.mxu0 0.0
        %1434 = vmatprep.subr.mxu0 0.0
        %1435 = vmatpush1.msra.mxu0 0.0
        %1436 = vmatprep.subr.mxu0 0.0
        %1437 = vmatpush1.msra.mxu0 0.0
        %1438 = vmatprep.subr.mxu0 0.0
        %1439 = vmatpush1.msra.mxu0 0.0
        %1440 = vmatprep.subr.mxu0 0.0
        %1441 = vmatpush1.msra.mxu0 0.0
        %1442 = vmatprep.subr.mxu0 0.0
        %1443 = vmatpush1.msra.mxu0 0.0
        %1444 = vmatprep.subr.mxu0 0.0
        %1445 = vmatpush1.msra.mxu0 0.0
        %1446 = vmatprep.subr.mxu0 0.0
        %1447 = vmatpush1.msra.mxu0 0.0
        %1448 = vmatprep.subr.mxu0 0.0
        %1449 = vmatpush1.msra.mxu0 0.0
        %1450 = vmatprep.subr.mxu0 0.0
        %1451 = vmatpush1.msra.mxu0 0.0
        %1452 = vmatprep.subr.mxu0 0.0
        %1453 = vmatpush1.msra.mxu0 0.0
        %1454 = vmatprep.subr.mxu0 0.0
        %1455 = vmatpush1.msra.mxu0 0.0
        %1456 = vmatprep.subr.mxu0 0.0
        %1457 = vmatpush1.msra.mxu0 0.0
        %1458 = vmatprep.subr.mxu0 0.0
        %1459 = vmatpush1.msra.mxu0 0.0
        %1460 = vmatprep.subr.mxu0 0.0
        %1461 = vmatpush1.msra.mxu0 0.0
        %1462 = vmatprep.subr.mxu0 0.0
        %1463 = vmatpush1.msra.mxu0 0.0
        %1464 = vmatprep.subr.mxu0 0.0
        %1465 = vmatpush1.msra.mxu0 0.0
        %1466 = vmatprep.subr.mxu0 0.0
        %1467 = vmatpush1.msra.mxu0 0.0
        %1468 = vmatprep.subr.mxu0 0.0
        %1469 = vmatpush1.msra.mxu0 0.0
        %1470 = vmatprep.mubr.f32.mxu0 0.0
        %1471 = vmatmul.mubr.f32.gmra.mrb[0].mxu0 %v1404
        %v1472 = vpop.f32.mrb[0].mxu0
        %v1473 = vadd.f32 0.0, %v1472
        %v1474 = vpop.f32.mrb[0].mxu0
        %1475 = vdwg.mxu0
        %v1477 = vsel %vm675, %v1247, 0
        %1479 = vmatprep.subr.mxu0 0.0
        %1480 = vmatpush1.msra.mxu0 %v1328
        %1481 = vmatprep.subr.mxu0 0.0
        %1482 = vmatpush1.msra.mxu0 0.0
        %1483 = vmatprep.subr.mxu0 0.0
        %1484 = vmatpush1.msra.mxu0 0.0
        %1485 = vmatprep.subr.mxu0 0.0
        %1486 = vmatpush1.msra.mxu0 0.0
        %1487 = vmatprep.subr.mxu0 0.0
        %1488 = vmatpush1.msra.mxu0 0.0
        %1489 = vmatprep.subr.mxu0 0.0
        %1490 = vmatpush1.msra.mxu0 0.0
        %1491 = vmatprep.subr.mxu0 0.0
        %1492 = vmatpush1.msra.mxu0 0.0
        %1493 = vmatprep.subr.mxu0 0.0
        %1494 = vmatpush1.msra.mxu0 0.0
        %1495 = vmatprep.subr.mxu0 0.0
        %1496 = vmatpush1.msra.mxu0 0.0
        %1497 = vmatprep.subr.mxu0 0.0
        %1498 = vmatpush1.msra.mxu0 0.0
        %1499 = vmatprep.subr.mxu0 0.0
        %1500 = vmatpush1.msra.mxu0 0.0
        %1501 = vmatprep.subr.mxu0 0.0
        %1502 = vmatpush1.msra.mxu0 0.0
        %1503 = vmatprep.subr.mxu0 0.0
        %1504 = vmatpush1.msra.mxu0 0.0
        %1505 = vmatprep.subr.mxu0 0.0
        %1506 = vmatpush1.msra.mxu0 0.0
        %1507 = vmatprep.subr.mxu0 0.0
        %1508 = vmatpush1.msra.mxu0 0.0
        %1509 = vmatprep.subr.mxu0 0.0
        %1510 = vmatpush1.msra.mxu0 0.0
        %1511 = vmatprep.subr.mxu0 0.0
        %1512 = vmatpush1.msra.mxu0 0.0
        %1513 = vmatprep.subr.mxu0 0.0
        %1514 = vmatpush1.msra.mxu0 0.0
        %1515 = vmatprep.subr.mxu0 0.0
        %1516 = vmatpush1.msra.mxu0 0.0
        %1517 = vmatprep.subr.mxu0 0.0
        %1518 = vmatpush1.msra.mxu0 0.0
        %1519 = vmatprep.subr.mxu0 0.0
        %1520 = vmatpush1.msra.mxu0 0.0
        %1521 = vmatprep.subr.mxu0 0.0
        %1522 = vmatpush1.msra.mxu0 0.0
        %1523 = vmatprep.subr.mxu0 0.0
        %1524 = vmatpush1.msra.mxu0 0.0
        %1525 = vmatprep.subr.mxu0 0.0
        %1526 = vmatpush1.msra.mxu0 0.0
        %1527 = vmatprep.subr.mxu0 0.0
        %1528 = vmatpush1.msra.mxu0 0.0
        %1529 = vmatprep.subr.mxu0 0.0
        %1530 = vmatpush1.msra.mxu0 0.0
        %1531 = vmatprep.subr.mxu0 0.0
        %1532 = vmatpush1.msra.mxu0 0.0
        %1533 = vmatprep.subr.mxu0 0.0
        %1534 = vmatpush1.msra.mxu0 0.0
        %1535 = vmatprep.subr.mxu0 0.0
        %1536 = vmatpush1.msra.mxu0 0.0
        %1537 = vmatprep.subr.mxu0 0.0
        %1538 = vmatpush1.msra.mxu0 0.0
        %1539 = vmatprep.subr.mxu0 0.0
        %1540 = vmatpush1.msra.mxu0 0.0
        %1541 = vmatprep.subr.mxu0 0.0
        %1542 = vmatpush1.msra.mxu0 0.0
        %1543 = vmatprep.mubr.f32.mxu0 0.0
        %1544 = vmatmul.mubr.f32.gmra.mrb[0].mxu0 %v1477
        %v1545 = vpop.f32.mrb[0].mxu0
        %v1546 = vadd.f32 0.0, %v1545
        %v1547 = vpop.f32.mrb[0].mxu0
        %1548 = vdwg.mxu0
        %v1550 = vsel %vm675, %v1323, 0
        %1552 = vmatprep.subr.mxu0 0.0
        %1553 = vmatpush1.msra.mxu0 %v1329
        %1554 = vmatprep.subr.mxu0 0.0
        %1555 = vmatpush1.msra.mxu0 0.0
        %1556 = vmatprep.subr.mxu0 0.0
        %1557 = vmatpush1.msra.mxu0 0.0
        %1558 = vmatprep.subr.mxu0 0.0
        %1559 = vmatpush1.msra.mxu0 0.0
        %1560 = vmatprep.subr.mxu0 0.0
        %1561 = vmatpush1.msra.mxu0 0.0
        %1562 = vmatprep.subr.mxu0 0.0
        %1563 = vmatpush1.msra.mxu0 0.0
        %1564 = vmatprep.subr.mxu0 0.0
        %1565 = vmatpush1.msra.mxu0 0.0
        %1566 = vmatprep.subr.mxu0 0.0
        %1567 = vmatpush1.msra.mxu0 0.0
        %1568 = vmatprep.subr.mxu0 0.0
        %1569 = vmatpush1.msra.mxu0 0.0
        %1570 = vmatprep.subr.mxu0 0.0
        %1571 = vmatpush1.msra.mxu0 0.0
        %1572 = vmatprep.subr.mxu0 0.0
        %1573 = vmatpush1.msra.mxu0 0.0
        %1574 = vmatprep.subr.mxu0 0.0
        %1575 = vmatpush1.msra.mxu0 0.0
        %1576 = vmatprep.subr.mxu0 0.0
        %1577 = vmatpush1.msra.mxu0 0.0
        %1578 = vmatprep.subr.mxu0 0.0
        %1579 = vmatpush1.msra.mxu0 0.0
        %1580 = vmatprep.subr.mxu0 0.0
        %1581 = vmatpush1.msra.mxu0 0.0
        %1582 = vmatprep.subr.mxu0 0.0
        %1583 = vmatpush1.msra.mxu0 0.0
        %1584 = vmatprep.subr.mxu0 0.0
        %1585 = vmatpush1.msra.mxu0 0.0
        %1586 = vmatprep.subr.mxu0 0.0
        %1587 = vmatpush1.msra.mxu0 0.0
        %1588 = vmatprep.subr.mxu0 0.0
        %1589 = vmatpush1.msra.mxu0 0.0
        %1590 = vmatprep.subr.mxu0 0.0
        %1591 = vmatpush1.msra.mxu0 0.0
        %1592 = vmatprep.subr.mxu0 0.0
        %1593 = vmatpush1.msra.mxu0 0.0
        %1594 = vmatprep.subr.mxu0 0.0
        %1595 = vmatpush1.msra.mxu0 0.0
        %1596 = vmatprep.subr.mxu0 0.0
        %1597 = vmatpush1.msra.mxu0 0.0
        %1598 = vmatprep.subr.mxu0 0.0
        %1599 = vmatpush1.msra.mxu0 0.0
        %1600 = vmatprep.subr.mxu0 0.0
        %1601 = vmatpush1.msra.mxu0 0.0
        %1602 = vmatprep.subr.mxu0 0.0
        %1603 = vmatpush1.msra.mxu0 0.0
        %1604 = vmatprep.subr.mxu0 0.0
        %1605 = vmatpush1.msra.mxu0 0.0
        %1606 = vmatprep.subr.mxu0 0.0
        %1607 = vmatpush1.msra.mxu0 0.0
        %1608 = vmatprep.subr.mxu0 0.0
        %1609 = vmatpush1.msra.mxu0 0.0
        %1610 = vmatprep.subr.mxu0 0.0
        %1611 = vmatpush1.msra.mxu0 0.0
        %1612 = vmatprep.subr.mxu0 0.0
        %1613 = vmatpush1.msra.mxu0 0.0
        %1614 = vmatprep.subr.mxu0 0.0
        %1615 = vmatpush1.msra.mxu0 0.0
        %1616 = vmatprep.mubr.f32.mxu0 0.0
        %1617 = vmatmul.mubr.f32.gmra.mrb[0].mxu0 %v1550
        %v1618 = vpop.f32.mrb[0].mxu0
        %v1619 = vadd.f32 0.0, %v1618
        %v1620 = vpop.f32.mrb[0].mxu0
        %1621 = vdwg.mxu0
        %v1622 = vsel %vm592, %v1400, 0.0
        %v1623 = vsel %vm592, %v1473, 0.0
        %v1624 = vadd.f32 %v1622, %v1623
        %v1625 = vsel %vm592, %v1546, 0.0
        %v1626 = vadd.f32 %v1624, %v1625
        %v1627 = vsel %vm592, %v1619, 0.0
        %v1628 = vadd.f32 %v1626, %v1627
        %v1629 = vld [vmem:[%s6] sm:$0x1]
        %v1631 = vlaneseq
        %v1632 = vshrl.u32 %v1631, 7
        %v1633 = vsub.s32 0, %v1632
        %v1634 = vrot.slane %v1629, %v1633
        %v1636 = vadd.f32 %v1628, %v1634
        %v1637 = vadd.f32 %v578, %v1636
        %v1638 = vld [vmem:[%s11] sm:$0x1]
        %v1639 = vld [vmem:[%s12] sm:$0x1]
        %v1640 = vsel %vm592, %v1637, 0.0
        %1641 = vadd.xlane.f32.xlu0 %v1640
        %v1642 = vpop.xlane.xlu0 %1641
        %v1643 = vrcp.pop 32.0
        %v1644 = vmul.f32 %v1642, %v1643
        %v1645 = vsub.f32 %v1637, %v1644
        %v1646 = vmul.f32 %v1645, %v1645
        %v1647 = vsel %vm592, %v1646, 0.0
        %1648 = vadd.xlane.f32.xlu0 %v1647
        %v1649 = vpop.xlane.xlu0 %1648
        %v1650 = vmul.f32 %v1649, %v1643
        %v1651 = vadd.f32 %v1650, 1e-05
        %v1652 = vrsqrt.pop %v1651
        %v1653 = vmul.f32 %v1645, %v1652
        %v1655 = vlaneseq
        %v1656 = vshrl.u32 %v1655, 7
        %v1657 = vsub.s32 0, %v1656
        %v1658 = vrot.slane %v1638, %v1657
        %v1660 = vmul.f32 %v1653, %v1658
        %v1662 = vlaneseq
        %v1663 = vshrl.u32 %v1662, 7
        %v1664 = vsub.s32 0, %v1663
        %v1665 = vrot.slane %v1639, %v1664
        %v1667 = vadd.f32 %v1660, %v1665
        %v1668 = vld [vmem:[%s7] sm:$0xff]
        %v1669 = vld [vmem:[%s7 + $0x8] sm:$0xff]
        %v1670 = vld [vmem:[%s7 + $0x10] sm:$0xff]
        %v1671 = vld [vmem:[%s7 + $0x18] sm:$0xff]
        %v1672 = vld [vmem:[%s8] sm:$0x1]
        %v1674 = vlaneseq
        %v1675 = vshrl.u32 %v1674, 7
        %v1676 = vsub.s32 0, %v1675
        %v1677 = vrot.slane %v1672, %v1676
        %v1680 = vsel %vm592, %v1667, 0
        %1682 = vmatprep.subr.mxu0 0.0
        %1683 = vmatpush1.msra.mxu0 %v1668
        %1684 = vmatprep.subr.mxu0 0.0
        %1685 = vmatpush1.msra.mxu0 %v1669
        %1686 = vmatprep.subr.mxu0 0.0
        %1687 = vmatpush1.msra.mxu0 %v1670
        %1688 = vmatprep.subr.mxu0 0.0
        %1689 = vmatpush1.msra.mxu0 %v1671
        %1690 = vmatprep.subr.mxu0 0.0
        %1691 = vmatpush1.msra.mxu0 0.0
        %1692 = vmatprep.subr.mxu0 0.0
        %1693 = vmatpush1.msra.mxu0 0.0
        %1694 = vmatprep.subr.mxu0 0.0
        %1695 = vmatpush1.msra.mxu0 0.0
        %1696 = vmatprep.subr.mxu0 0.0
        %1697 = vmatpush1.msra.mxu0 0.0
        %1698 = vmatprep.subr.mxu0 0.0
        %1699 = vmatpush1.msra.mxu0 0.0
        %1700 = vmatprep.subr.mxu0 0.0
        %1701 = vmatpush1.msra.mxu0 0.0
        %1702 = vmatprep.subr.mxu0 0.0
        %1703 = vmatpush1.msra.mxu0 0.0
        %1704 = vmatprep.subr.mxu0 0.0
        %1705 = vmatpush1.msra.mxu0 0.0
        %1706 = vmatprep.subr.mxu0 0.0
        %1707 = vmatpush1.msra.mxu0 0.0
        %1708 = vmatprep.subr.mxu0 0.0
        %1709 = vmatpush1.msra.mxu0 0.0
        %1710 = vmatprep.subr.mxu0 0.0
        %1711 = vmatpush1.msra.mxu0 0.0
        %1712 = vmatprep.subr.mxu0 0.0
        %1713 = vmatpush1.msra.mxu0 0.0
        %1714 = vmatprep.subr.mxu0 0.0
        %1715 = vmatpush1.msra.mxu0 0.0
        %1716 = vmatprep.subr.mxu0 0.0
        %1717 = vmatpush1.msra.mxu0 0.0
        %1718 = vmatprep.subr.mxu0 0.0
        %1719 = vmatpush1.msra.mxu0 0.0
        %1720 = vmatprep.subr.mxu0 0.0
        %1721 = vmatpush1.msra.mxu0 0.0
        %1722 = vmatprep.subr.mxu0 0.0
        %1723 = vmatpush1.msra.mxu0 0.0
        %1724 = vmatprep.subr.mxu0 0.0
        %1725 = vmatpush1.msra.mxu0 0.0
        %1726 = vmatprep.subr.mxu0 0.0
        %1727 = vmatpush1.msra.mxu0 0.0
        %1728 = vmatprep.subr.mxu0 0.0
        %1729 = vmatpush1.msra.mxu0 0.0
        %1730 = vmatprep.subr.mxu0 0.0
        %1731 = vmatpush1.msra.mxu0 0.0
        %1732 = vmatprep.subr.mxu0 0.0
        %1733 = vmatpush1.msra.mxu0 0.0
        %1734 = vmatprep.subr.mxu0 0.0
        %1735 = vmatpush1.msra.mxu0 0.0
        %1736 = vmatprep.subr.mxu0 0.0
        %1737 = vmatpush1.msra.mxu0 0.0
        %1738 = vmatprep.subr.mxu0 0.0
        %1739 = vmatpush1.msra.mxu0 0.0
        %1740 = vmatprep.subr.mxu0 0.0
        %1741 = vmatpush1.msra.mxu0 0.0
        %1742 = vmatprep.subr.mxu0 0.0
        %1743 = vmatpush1.msra.mxu0 0.0
        %1744 = vmatprep.subr.mxu0 0.0
        %1745 = vmatpush1.msra.mxu0 0.0
        %1746 = vmatprep.mubr.f32.mxu0 0.0
        %1747 = vmatmul.mubr.f32.gmra.mrb[0].mxu0 %v1680
        %v1748 = vpop.f32.mrb[0].mxu0
        %v1749 = vadd.f32 %v1677, %v1748
        %v1750 = vpop.f32.mrb[0].mxu0
        %1751 = vdwg.mxu0
        %v1752 = vmax.f32 %v1749, 0.0
        %v1753 = vld [vmem:[%s9] sm:$0xff]
        %v1754 = vld [vmem:[%s9 + $0x8] sm:$0xff]
        %v1755 = vld [vmem:[%s9 + $0x10] sm:$0xff]
        %v1756 = vld [vmem:[%s9 + $0x18] sm:$0xff]
        %v1757 = vld [vmem:[%s9 + $0x20] sm:$0xff]
        %v1758 = vld [vmem:[%s9 + $0x28] sm:$0xff]
        %v1759 = vld [vmem:[%s9 + $0x30] sm:$0xff]
        %v1760 = vld [vmem:[%s9 + $0x38] sm:$0xff]
        %v1761 = vld [vmem:[%s10] sm:$0x1]
        %v1763 = vlaneseq
        %v1764 = vshrl.u32 %v1763, 7
        %v1765 = vsub.s32 0, %v1764
        %v1766 = vrot.slane %v1761, %v1765
        %vm1768 = vcmask 523264
        %v1770 = vsel %vm1768, %v1752, 0
        %1772 = vmatprep.subr.mxu0 0.0
        %1773 = vmatpush1.msra.mxu0 %v1753
        %1774 = vmatprep.subr.mxu0 0.0
        %1775 = vmatpush1.msra.mxu0 %v1754
        %1776 = vmatprep.subr.mxu0 0.0
        %1777 = vmatpush1.msra.mxu0 %v1755
        %1778 = vmatprep.subr.mxu0 0.0
        %1779 = vmatpush1.msra.mxu0 %v1756
        %1780 = vmatprep.subr.mxu0 0.0
        %1781 = vmatpush1.msra.mxu0 %v1757
        %1782 = vmatprep.subr.mxu0 0.0
        %1783 = vmatpush1.msra.mxu0 %v1758
        %1784 = vmatprep.subr.mxu0 0.0
        %1785 = vmatpush1.msra.mxu0 %v1759
        %1786 = vmatprep.subr.mxu0 0.0
        %1787 = vmatpush1.msra.mxu0 %v1760
        %1788 = vmatprep.subr.mxu0 0.0
        %1789 = vmatpush1.msra.mxu0 0.0
        %1790 = vmatprep.subr.mxu0 0.0
        %1791 = vmatpush1.msra.mxu0 0.0
        %1792 = vmatprep.subr.mxu0 0.0
        %1793 = vmatpush1.msra.mxu0 0.0
        %1794 = vmatprep.subr.mxu0 0.0
        %1795 = vmatpush1.msra.mxu0 0.0
        %1796 = vmatprep.subr.mxu0 0.0
        %1797 = vmatpush1.msra.mxu0 0.0
        %1798 = vmatprep.subr.mxu0 0.0
        %1799 = vmatpush1.msra.mxu0 0.0
        %1800 = vmatprep.subr.mxu0 0.0
        %1801 = vmatpush1.msra.mxu0 0.0
        %1802 = vmatprep.subr.mxu0 0.0
        %1803 = vmatpush1.msra.mxu0 0.0
        %1804 = vmatprep.subr.mxu0 0.0
        %1805 = vmatpush1.msra.mxu0 0.0
        %1806 = vmatprep.subr.mxu0 0.0
        %1807 = vmatpush1.msra.mxu0 0.0
        %1808 = vmatprep.subr.mxu0 0.0
        %1809 = vmatpush1.msra.mxu0 0.0
        %1810 = vmatprep.subr.mxu0 0.0
        %1811 = vmatpush1.msra.mxu0 0.0
        %1812 = vmatprep.subr.mxu0 0.0
        %1813 = vmatpush1.msra.mxu0 0.0
        %1814 = vmatprep.subr.mxu0 0.0
        %1815 = vmatpush1.msra.mxu0 0.0
        %1816 = vmatprep.subr.mxu0 0.0
        %1817 = vmatpush1.msra.mxu0 0.0
        %1818 = vmatprep.subr.mxu0 0.0
        %1819 = vmatpush1.msra.mxu0 0.0
        %1820 = vmatprep.subr.mxu0 0.0
        %1821 = vmatpush1.msra.mxu0 0.0
        %1822 = vmatprep.subr.mxu0 0.0
        %1823 = vmatpush1.msra.mxu0 0.0
        %1824 = vmatprep.subr.mxu0 0.0
        %1825 = vmatpush1.msra.mxu0 0.0
        %1826 = vmatprep.subr.mxu0 0.0
        %1827 = vmatpush1.msra.mxu0 0.0
        %1828 = vmatprep.subr.mxu0 0.0
        %1829 = vmatpush1.msra.mxu0 0.0
        %1830 = vmatprep.subr.mxu0 0.0
        %1831 = vmatpush1.msra.mxu0 0.0
        %1832 = vmatprep.subr.mxu0 0.0
        %1833 = vmatpush1.msra.mxu0 0.0
        %1834 = vmatprep.subr.mxu0 0.0
        %1835 = vmatpush1.msra.mxu0 0.0
        %1836 = vmatprep.mubr.f32.mxu0 0.0
        %1837 = vmatmul.mubr.f32.gmra.mrb[0].mxu0 %v1770
        %v1838 = vpop.f32.mrb[0].mxu0
        %v1839 = vadd.f32 %v1766, %v1838
        %v1840 = vpop.f32.mrb[0].mxu0
        %1841 = vdwg.mxu0
        %v1842 = vadd.f32 %v1667, %v1839
        %v1843 = vld [vmem:[%s13] sm:$0x1]
        %v1844 = vld [vmem:[%s14] sm:$0x1]
        %v1845 = vsel %vm592, %v1842, 0.0
        %1846 = vadd.xlane.f32.xlu0 %v1845
        %v1847 = vpop.xlane.xlu0 %1846
        %v1848 = vmul.f32 %v1847, %v1643
        %v1849 = vsub.f32 %v1842, %v1848
        %v1850 = vmul.f32 %v1849, %v1849
        %v1851 = vsel %vm592, %v1850, 0.0
        %1852 = vadd.xlane.f32.xlu0 %v1851
        %v1853 = vpop.xlane.xlu0 %1852
        %v1854 = vmul.f32 %v1853, %v1643
        %v1855 = vadd.f32 %v1854, 1e-05
        %v1856 = vrsqrt.pop %v1855
        %v1857 = vmul.f32 %v1849, %v1856
        %v1859 = vlaneseq
        %v1860 = vshrl.u32 %v1859, 7
        %v1861 = vsub.s32 0, %v1860
        %v1862 = vrot.slane %v1843, %v1861
        %v1864 = vmul.f32 %v1857, %v1862
        %v1866 = vlaneseq
        %v1867 = vshrl.u32 %v1866, 7
        %v1868 = vsub.s32 0, %v1867
        %v1869 = vrot.slane %v1844, %v1868
        %v1871 = vadd.f32 %v1864, %v1869
        %s1872 = scalar_lea.vmem %s3, 32
        %v1873 = vld [vmem:[%s1872] sm:$0xff]
        %v1874 = vld [vmem:[%s1872 + $0x8] sm:$0xff]
        %v1875 = vld [vmem:[%s1872 + $0x10] sm:$0xff]
        %v1876 = vld [vmem:[%s1872 + $0x18] sm:$0xff]
        %s1877 = scalar_lea.vmem %s4, 1
        %v1878 = vld [vmem:[%s1877] sm:$0x1]
        %v1880 = vlaneseq
        %v1881 = vshrl.u32 %v1880, 7
        %v1882 = vsub.s32 0, %v1881
        %v1883 = vrot.slane %v1878, %v1882
        %v1886 = vsel %vm592, %v1871, 0
        %1888 = vmatprep.subr.mxu0 0.0
        %1889 = vmatpush1.msra.mxu0 %v1873
        %1890 = vmatprep.subr.mxu0 0.0
        %1891 = vmatpush1.msra.mxu0 %v1874
        %1892 = vmatprep.subr.mxu0 0.0
        %1893 = vmatpush1.msra.mxu0 %v1875
        %1894 = vmatprep.subr.mxu0 0.0
        %1895 = vmatpush1.msra.mxu0 %v1876
        %1896 = vmatprep.subr.mxu0 0.0
        %1897 = vmatpush1.msra.mxu0 0.0
        %1898 = vmatprep.subr.mxu0 0.0
        %1899 = vmatpush1.msra.mxu0 0.0
        %1900 = vmatprep.subr.mxu0 0.0
        %1901 = vmatpush1.msra.mxu0 0.0
        %1902 = vmatprep.subr.mxu0 0.0
        %1903 = vmatpush1.msra.mxu0 0.0
        %1904 = vmatprep.subr.mxu0 0.0
        %1905 = vmatpush1.msra.mxu0 0.0
        %1906 = vmatprep.subr.mxu0 0.0
        %1907 = vmatpush1.msra.mxu0 0.0
        %1908 = vmatprep.subr.mxu0 0.0
        %1909 = vmatpush1.msra.mxu0 0.0
        %1910 = vmatprep.subr.mxu0 0.0
        %1911 = vmatpush1.msra.mxu0 0.0
        %1912 = vmatprep.subr.mxu0 0.0
        %1913 = vmatpush1.msra.mxu0 0.0
        %1914 = vmatprep.subr.mxu0 0.0
        %1915 = vmatpush1.msra.mxu0 0.0
        %1916 = vmatprep.subr.mxu0 0.0
        %1917 = vmatpush1.msra.mxu0 0.0
        %1918 = vmatprep.subr.mxu0 0.0
        %1919 = vmatpush1.msra.mxu0 0.0
        %1920 = vmatprep.subr.mxu0 0.0
        %1921 = vmatpush1.msra.mxu0 0.0
        %1922 = vmatprep.subr.mxu0 0.0
        %1923 = vmatpush1.msra.mxu0 0.0
        %1924 = vmatprep.subr.mxu0 0.0
        %1925 = vmatpush1.msra.mxu0 0.0
        %1926 = vmatprep.subr.mxu0 0.0
        %1927 = vmatpush1.msra.mxu0 0.0
        %1928 = vmatprep.subr.mxu0 0.0
        %1929 = vmatpush1.msra.mxu0 0.0
        %1930 = vmatprep.subr.mxu0 0.0
        %1931 = vmatpush1.msra.mxu0 0.0
        %1932 = vmatprep.subr.mxu0 0.0
        %1933 = vmatpush1.msra.mxu0 0.0
        %1934 = vmatprep.subr.mxu0 0.0
        %1935 = vmatpush1.msra.mxu0 0.0
        %1936 = vmatprep.subr.mxu0 0.0
        %1937 = vmatpush1.msra.mxu0 0.0
        %1938 = vmatprep.subr.mxu0 0.0
        %1939 = vmatpush1.msra.mxu0 0.0
        %1940 = vmatprep.subr.mxu0 0.0
        %1941 = vmatpush1.msra.mxu0 0.0
        %1942 = vmatprep.subr.mxu0 0.0
        %1943 = vmatpush1.msra.mxu0 0.0
        %1944 = vmatprep.subr.mxu0 0.0
        %1945 = vmatpush1.msra.mxu0 0.0
        %1946 = vmatprep.subr.mxu0 0.0
        %1947 = vmatpush1.msra.mxu0 0.0
        %1948 = vmatprep.subr.mxu0 0.0
        %1949 = vmatpush1.msra.mxu0 0.0
        %1950 = vmatprep.subr.mxu0 0.0
        %1951 = vmatpush1.msra.mxu0 0.0
        %1952 = vmatprep.mubr.f32.mxu0 0.0
        %1953 = vmatmul.mubr.f32.gmra.mrb[0].mxu0 %v1886
        %v1954 = vpop.f32.mrb[0].mxu0
        %v1955 = vadd.f32 %v1883, %v1954
        %v1956 = vpop.f32.mrb[0].mxu0
        %1957 = vdwg.mxu0
        %1959 = vrot.lane.b32.xlu0 %v1955, 120
        %v1960 = vpop.permute.xlu0 %1959
        %1961 = vrot.lane.b32.xlu0 %v1955, 112
        %v1962 = vpop.permute.xlu0 %1961
        %1963 = vrot.lane.b32.xlu0 %v1955, 104
        %v1964 = vpop.permute.xlu0 %1963
        %1965 = vrot.lane.b32.xlu0 %v1955, 96
        %v1966 = vpop.permute.xlu0 %1965
        %v1967 = vsel %vm675, %v1955, 0
        %v1969 = vsel %vm675, %v1966, 0
        %1971 = vmatprep.subr.mxu0 0.0
        %1972 = vmatpush1.xpose.msra.mxu0 %v1969
        %1973 = vmatprep.subr.mxu0 0.0
        %1974 = vmatpush1.xpose.msra.mxu0 0.0
        %1975 = vmatprep.subr.mxu0 0.0
        %1976 = vmatpush1.xpose.msra.mxu0 0.0
        %1977 = vmatprep.subr.mxu0 0.0
        %1978 = vmatpush1.xpose.msra.mxu0 0.0
        %1979 = vmatprep.subr.mxu0 0.0
        %1980 = vmatpush1.xpose.msra.mxu0 0.0
        %1981 = vmatprep.subr.mxu0 0.0
        %1982 = vmatpush1.xpose.msra.mxu0 0.0
        %1983 = vmatprep.subr.mxu0 0.0
        %1984 = vmatpush1.xpose.msra.mxu0 0.0
        %1985 = vmatprep.subr.mxu0 0.0
        %1986 = vmatpush1.xpose.msra.mxu0 0.0
        %1987 = vmatprep.subr.mxu0 0.0
        %1988 = vmatpush1.xpose.msra.mxu0 0.0
        %1989 = vmatprep.subr.mxu0 0.0
        %1990 = vmatpush1.xpose.msra.mxu0 0.0
        %1991 = vmatprep.subr.mxu0 0.0
        %1992 = vmatpush1.xpose.msra.mxu0 0.0
        %1993 = vmatprep.subr.mxu0 0.0
        %1994 = vmatpush1.xpose.msra.mxu0 0.0
        %1995 = vmatprep.subr.mxu0 0.0
        %1996 = vmatpush1.xpose.msra.mxu0 0.0
        %1997 = vmatprep.subr.mxu0 0.0
        %1998 = vmatpush1.xpose.msra.mxu0 0.0
        %1999 = vmatprep.subr.mxu0 0.0
        %2000 = vmatpush1.xpose.msra.mxu0 0.0
        %2001 = vmatprep.subr.mxu0 0.0
        %2002 = vmatpush1.xpose.msra.mxu0 0.0
        %2003 = vmatprep.subr.mxu0 0.0
        %2004 = vmatpush1.xpose.msra.mxu0 0.0
        %2005 = vmatprep.subr.mxu0 0.0
        %2006 = vmatpush1.xpose.msra.mxu0 0.0
        %2007 = vmatprep.subr.mxu0 0.0
        %2008 = vmatpush1.xpose.msra.mxu0 0.0
        %2009 = vmatprep.subr.mxu0 0.0
        %2010 = vmatpush1.xpose.msra.mxu0 0.0
        %2011 = vmatprep.subr.mxu0 0.0
        %2012 = vmatpush1.xpose.msra.mxu0 0.0
        %2013 = vmatprep.subr.mxu0 0.0
        %2014 = vmatpush1.xpose.msra.mxu0 0.0
        %2015 = vmatprep.subr.mxu0 0.0
        %2016 = vmatpush1.xpose.msra.mxu0 0.0
        %2017 = vmatprep.subr.mxu0 0.0
        %2018 = vmatpush1.xpose.msra.mxu0 0.0
        %2019 = vmatprep.subr.mxu0 0.0
        %2020 = vmatpush1.xpose.msra.mxu0 0.0
        %2021 = vmatprep.subr.mxu0 0.0
        %2022 = vmatpush1.xpose.msra.mxu0 0.0
        %2023 = vmatprep.subr.mxu0 0.0
        %2024 = vmatpush1.xpose.msra.mxu0 0.0
        %2025 = vmatprep.subr.mxu0 0.0
        %2026 = vmatpush1.xpose.msra.mxu0 0.0
        %2027 = vmatprep.subr.mxu0 0.0
        %2028 = vmatpush1.xpose.msra.mxu0 0.0
        %2029 = vmatprep.subr.mxu0 0.0
        %2030 = vmatpush1.xpose.msra.mxu0 0.0
        %2031 = vmatprep.subr.mxu0 0.0
        %2032 = vmatpush1.xpose.msra.mxu0 0.0
        %2033 = vmatprep.subr.mxu0 0.0
        %2034 = vmatpush1.xpose.msra.mxu0 0.0
        %2035 = vmatprep.mubr.f32.mxu0 0.0
        %2036 = vmatmul.mubr.f32.gmra.mrb[0].mxu0 %v1967
        %v2037 = vpop.f32.mrb[0].mxu0
        %v2038 = vadd.f32 0.0, %v2037
        %v2039 = vpop.f32.mrb[0].mxu0
        %2040 = vdwg.mxu0
        %2041 = vrot.lane.b32.xlu0 %v1960, 96
        %v2042 = vpop.permute.xlu0 %2041
        %v2043 = vsel %vm675, %v1960, 0
        %v2045 = vsel %vm675, %v2042, 0
        %2047 = vmatprep.subr.mxu0 0.0
        %2048 = vmatpush1.xpose.msra.mxu0 %v2045
        %2049 = vmatprep.subr.mxu0 0.0
        %2050 = vmatpush1.xpose.msra.mxu0 0.0
        %2051 = vmatprep.subr.mxu0 0.0
        %2052 = vmatpush1.xpose.msra.mxu0 0.0
        %2053 = vmatprep.subr.mxu0 0.0
        %2054 = vmatpush1.xpose.msra.mxu0 0.0
        %2055 = vmatprep.subr.mxu0 0.0
        %2056 = vmatpush1.xpose.msra.mxu0 0.0
        %2057 = vmatprep.subr.mxu0 0.0
        %2058 = vmatpush1.xpose.msra.mxu0 0.0
        %2059 = vmatprep.subr.mxu0 0.0
        %2060 = vmatpush1.xpose.msra.mxu0 0.0
        %2061 = vmatprep.subr.mxu0 0.0
        %2062 = vmatpush1.xpose.msra.mxu0 0.0
        %2063 = vmatprep.subr.mxu0 0.0
        %2064 = vmatpush1.xpose.msra.mxu0 0.0
        %2065 = vmatprep.subr.mxu0 0.0
        %2066 = vmatpush1.xpose.msra.mxu0 0.0
        %2067 = vmatprep.subr.mxu0 0.0
        %2068 = vmatpush1.xpose.msra.mxu0 0.0
        %2069 = vmatprep.subr.mxu0 0.0
        %2070 = vmatpush1.xpose.msra.mxu0 0.0
        %2071 = vmatprep.subr.mxu0 0.0
        %2072 = vmatpush1.xpose.msra.mxu0 0.0
        %2073 = vmatprep.subr.mxu0 0.0
        %2074 = vmatpush1.xpose.msra.mxu0 0.0
        %2075 = vmatprep.subr.mxu0 0.0
        %2076 = vmatpush1.xpose.msra.mxu0 0.0
        %2077 = vmatprep.subr.mxu0 0.0
        %2078 = vmatpush1.xpose.msra.mxu0 0.0
        %2079 = vmatprep.subr.mxu0 0.0
        %2080 = vmatpush1.xpose.msra.mxu0 0.0
        %2081 = vmatprep.subr.mxu0 0.0
        %2082 = vmatpush1.xpose.msra.mxu0 0.0
        %2083 = vmatprep.subr.mxu0 0.0
        %2084 = vmatpush1.xpose.msra.mxu0 0.0
        %2085 = vmatprep.subr.mxu0 0.0
        %2086 = vmatpush1.xpose.msra.mxu0 0.0
        %2087 = vmatprep.subr.mxu0 0.0
        %2088 = vmatpush1.xpose.msra.mxu0 0.0
        %2089 = vmatprep.subr.mxu0 0.0
        %2090 = vmatpush1.xpose.msra.mxu0 0.0
        %2091 = vmatprep.subr.mxu0 0.0
        %2092 = vmatpush1.xpose.msra.mxu0 0.0
        %2093 = vmatprep.subr.mxu0 0.0
        %2094 = vmatpush1.xpose.msra.mxu0 0.0
        %2095 = vmatprep.subr.mxu0 0.0
        %2096 = vmatpush1.xpose.msra.mxu0 0.0
        %2097 = vmatprep.subr.mxu0 0.0
        %2098 = vmatpush1.xpose.msra.mxu0 0.0
        %2099 = vmatprep.subr.mxu0 0.0
        %2100 = vmatpush1.xpose.msra.mxu0 0.0
        %2101 = vmatprep.subr.mxu0 0.0
        %2102 = vmatpush1.xpose.msra.mxu0 0.0
        %2103 = vmatprep.subr.mxu0 0.0
        %2104 = vmatpush1.xpose.msra.mxu0 0.0
        %2105 = vmatprep.subr.mxu0 0.0
        %2106 = vmatpush1.xpose.msra.mxu0 0.0
        %2107 = vmatprep.subr.mxu0 0.0
        %2108 = vmatpush1.xpose.msra.mxu0 0.0
        %2109 = vmatprep.subr.mxu0 0.0
        %2110 = vmatpush1.xpose.msra.mxu0 0.0
        %2111 = vmatprep.mubr.f32.mxu0 0.0
        %2112 = vmatmul.mubr.f32.gmra.mrb[0].mxu0 %v2043
        %v2113 = vpop.f32.mrb[0].mxu0
        %v2114 = vadd.f32 0.0, %v2113
        %v2115 = vpop.f32.mrb[0].mxu0
        %2116 = vdwg.mxu0
        %2117 = vrot.lane.b32.xlu0 %v1962, 96
        %v2118 = vpop.permute.xlu0 %2117
        %v2119 = vsel %vm675, %v1962, 0
        %v2121 = vsel %vm675, %v2118, 0
        %2123 = vmatprep.subr.mxu0 0.0
        %2124 = vmatpush1.xpose.msra.mxu0 %v2121
        %2125 = vmatprep.subr.mxu0 0.0
        %2126 = vmatpush1.xpose.msra.mxu0 0.0
        %2127 = vmatprep.subr.mxu0 0.0
        %2128 = vmatpush1.xpose.msra.mxu0 0.0
        %2129 = vmatprep.subr.mxu0 0.0
        %2130 = vmatpush1.xpose.msra.mxu0 0.0
        %2131 = vmatprep.subr.mxu0 0.0
        %2132 = vmatpush1.xpose.msra.mxu0 0.0
        %2133 = vmatprep.subr.mxu0 0.0
        %2134 = vmatpush1.xpose.msra.mxu0 0.0
        %2135 = vmatprep.subr.mxu0 0.0
        %2136 = vmatpush1.xpose.msra.mxu0 0.0
        %2137 = vmatprep.subr.mxu0 0.0
        %2138 = vmatpush1.xpose.msra.mxu0 0.0
        %2139 = vmatprep.subr.mxu0 0.0
        %2140 = vmatpush1.xpose.msra.mxu0 0.0
        %2141 = vmatprep.subr.mxu0 0.0
        %2142 = vmatpush1.xpose.msra.mxu0 0.0
        %2143 = vmatprep.subr.mxu0 0.0
        %2144 = vmatpush1.xpose.msra.mxu0 0.0
        %2145 = vmatprep.subr.mxu0 0.0
        %2146 = vmatpush1.xpose.msra.mxu0 0.0
        %2147 = vmatprep.subr.mxu0 0.0
        %2148 = vmatpush1.xpose.msra.mxu0 0.0
        %2149 = vmatprep.subr.mxu0 0.0
        %2150 = vmatpush1.xpose.msra.mxu0 0.0
        %2151 = vmatprep.subr.mxu0 0.0
        %2152 = vmatpush1.xpose.msra.mxu0 0.0
        %2153 = vmatprep.subr.mxu0 0.0
        %2154 = vmatpush1.xpose.msra.mxu0 0.0
        %2155 = vmatprep.subr.mxu0 0.0
        %2156 = vmatpush1.xpose.msra.mxu0 0.0
        %2157 = vmatprep.subr.mxu0 0.0
        %2158 = vmatpush1.xpose.msra.mxu0 0.0
        %2159 = vmatprep.subr.mxu0 0.0
        %2160 = vmatpush1.xpose.msra.mxu0 0.0
        %2161 = vmatprep.subr.mxu0 0.0
        %2162 = vmatpush1.xpose.msra.mxu0 0.0
        %2163 = vmatprep.subr.mxu0 0.0
        %2164 = vmatpush1.xpose.msra.mxu0 0.0
        %2165 = vmatprep.subr.mxu0 0.0
        %2166 = vmatpush1.xpose.msra.mxu0 0.0
        %2167 = vmatprep.subr.mxu0 0.0
        %2168 = vmatpush1.xpose.msra.mxu0 0.0
        %2169 = vmatprep.subr.mxu0 0.0
        %2170 = vmatpush1.xpose.msra.mxu0 0.0
        %2171 = vmatprep.subr.mxu0 0.0
        %2172 = vmatpush1.xpose.msra.mxu0 0.0
        %2173 = vmatprep.subr.mxu0 0.0
        %2174 = vmatpush1.xpose.msra.mxu0 0.0
        %2175 = vmatprep.subr.mxu0 0.0
        %2176 = vmatpush1.xpose.msra.mxu0 0.0
        %2177 = vmatprep.subr.mxu0 0.0
        %2178 = vmatpush1.xpose.msra.mxu0 0.0
        %2179 = vmatprep.subr.mxu0 0.0
        %2180 = vmatpush1.xpose.msra.mxu0 0.0
        %2181 = vmatprep.subr.mxu0 0.0
        %2182 = vmatpush1.xpose.msra.mxu0 0.0
        %2183 = vmatprep.subr.mxu0 0.0
        %2184 = vmatpush1.xpose.msra.mxu0 0.0
        %2185 = vmatprep.subr.mxu0 0.0
        %2186 = vmatpush1.xpose.msra.mxu0 0.0
        %2187 = vmatprep.mubr.f32.mxu0 0.0
        %2188 = vmatmul.mubr.f32.gmra.mrb[0].mxu0 %v2119
        %v2189 = vpop.f32.mrb[0].mxu0
        %v2190 = vadd.f32 0.0, %v2189
        %v2191 = vpop.f32.mrb[0].mxu0
        %2192 = vdwg.mxu0
        %2193 = vrot.lane.b32.xlu0 %v1964, 96
        %v2194 = vpop.permute.xlu0 %2193
        %v2195 = vsel %vm675, %v1964, 0
        %v2197 = vsel %vm675, %v2194, 0
        %2199 = vmatprep.subr.mxu0 0.0
        %2200 = vmatpush1.xpose.msra.mxu0 %v2197
        %2201 = vmatprep.subr.mxu0 0.0
        %2202 = vmatpush1.xpose.msra.mxu0 0.0
        %2203 = vmatprep.subr.mxu0 0.0
        %2204 = vmatpush1.xpose.msra.mxu0 0.0
        %2205 = vmatprep.subr.mxu0 0.0
        %2206 = vmatpush1.xpose.msra.mxu0 0.0
        %2207 = vmatprep.subr.mxu0 0.0
        %2208 = vmatpush1.xpose.msra.mxu0 0.0
        %2209 = vmatprep.subr.mxu0 0.0
        %2210 = vmatpush1.xpose.msra.mxu0 0.0
        %2211 = vmatprep.subr.mxu0 0.0
        %2212 = vmatpush1.xpose.msra.mxu0 0.0
        %2213 = vmatprep.subr.mxu0 0.0
        %2214 = vmatpush1.xpose.msra.mxu0 0.0
        %2215 = vmatprep.subr.mxu0 0.0
        %2216 = vmatpush1.xpose.msra.mxu0 0.0
        %2217 = vmatprep.subr.mxu0 0.0
        %2218 = vmatpush1.xpose.msra.mxu0 0.0
        %2219 = vmatprep.subr.mxu0 0.0
        %2220 = vmatpush1.xpose.msra.mxu0 0.0
        %2221 = vmatprep.subr.mxu0 0.0
        %2222 = vmatpush1.xpose.msra.mxu0 0.0
        %2223 = vmatprep.subr.mxu0 0.0
        %2224 = vmatpush1.xpose.msra.mxu0 0.0
        %2225 = vmatprep.subr.mxu0 0.0
        %2226 = vmatpush1.xpose.msra.mxu0 0.0
        %2227 = vmatprep.subr.mxu0 0.0
        %2228 = vmatpush1.xpose.msra.mxu0 0.0
        %2229 = vmatprep.subr.mxu0 0.0
        %2230 = vmatpush1.xpose.msra.mxu0 0.0
        %2231 = vmatprep.subr.mxu0 0.0
        %2232 = vmatpush1.xpose.msra.mxu0 0.0
        %2233 = vmatprep.subr.mxu0 0.0
        %2234 = vmatpush1.xpose.msra.mxu0 0.0
        %2235 = vmatprep.subr.mxu0 0.0
        %2236 = vmatpush1.xpose.msra.mxu0 0.0
        %2237 = vmatprep.subr.mxu0 0.0
        %2238 = vmatpush1.xpose.msra.mxu0 0.0
        %2239 = vmatprep.subr.mxu0 0.0
        %2240 = vmatpush1.xpose.msra.mxu0 0.0
        %2241 = vmatprep.subr.mxu0 0.0
        %2242 = vmatpush1.xpose.msra.mxu0 0.0
        %2243 = vmatprep.subr.mxu0 0.0
        %2244 = vmatpush1.xpose.msra.mxu0 0.0
        %2245 = vmatprep.subr.mxu0 0.0
        %2246 = vmatpush1.xpose.msra.mxu0 0.0
        %2247 = vmatprep.subr.mxu0 0.0
        %2248 = vmatpush1.xpose.msra.mxu0 0.0
        %2249 = vmatprep.subr.mxu0 0.0
        %2250 = vmatpush1.xpose.msra.mxu0 0.0
        %2251 = vmatprep.subr.mxu0 0.0
        %2252 = vmatpush1.xpose.msra.mxu0 0.0
        %2253 = vmatprep.subr.mxu0 0.0
        %2254 = vmatpush1.xpose.msra.mxu0 0.0
        %2255 = vmatprep.subr.mxu0 0.0
        %2256 = vmatpush1.xpose.msra.mxu0 0.0
        %2257 = vmatprep.subr.mxu0 0.0
        %2258 = vmatpush1.xpose.msra.mxu0 0.0
        %2259 = vmatprep.subr.mxu0 0.0
        %2260 = vmatpush1.xpose.msra.mxu0 0.0
        %2261 = vmatprep.subr.mxu0 0.0
        %2262 = vmatpush1.xpose.msra.mxu0 0.0
        %2263 = vmatprep.mubr.f32.mxu0 0.0
        %2264 = vmatmul.mubr.f32.gmra.mrb[0].mxu0 %v2195
        %v2265 = vpop.f32.mrb[0].mxu0
        %v2266 = vadd.f32 0.0, %v2265
        %v2267 = vpop.f32.mrb[0].mxu0
        %2268 = vdwg.mxu0
        %v2269 = vsel %vm675, %v2038, -inf
        %2270 = vmax.xlane.f32.xlu0 %v2269
        %v2271 = vpop.xlane.xlu0 %2270
        %v2272 = vsel %vm675, %v2114, -inf
        %2273 = vmax.xlane.f32.xlu0 %v2272
        %v2274 = vpop.xlane.xlu0 %2273
        %v2275 = vsel %vm675, %v2190, -inf
        %2276 = vmax.xlane.f32.xlu0 %v2275
        %v2277 = vpop.xlane.xlu0 %2276
        %v2278 = vsel %vm675, %v2266, -inf
        %2279 = vmax.xlane.f32.xlu0 %v2278
        %v2280 = vpop.xlane.xlu0 %2279
        %v2281 = vsub.f32 %v2038, %v2271
        %v2282 = vsub.f32 %v2114, %v2274
        %v2283 = vsub.f32 %v2190, %v2277
        %v2284 = vsub.f32 %v2266, %v2280
        %v2285 = vmul.f32 %v2281, 1.442695
        %v2286 = vpow.pop %v2285
        %v2287 = vmul.f32 %v2282, 1.442695
        %v2288 = vpow.pop %v2287
        %v2289 = vmul.f32 %v2283, 1.442695
        %v2290 = vpow.pop %v2289
        %v2291 = vmul.f32 %v2284, 1.442695
        %v2292 = vpow.pop %v2291
        %v2293 = vsel %vm675, %v2286, 0.0
        %2294 = vadd.xlane.f32.xlu0 %v2293
        %v2295 = vpop.xlane.xlu0 %2294
        %v2296 = vsel %vm675, %v2288, 0.0
        %2297 = vadd.xlane.f32.xlu0 %v2296
        %v2298 = vpop.xlane.xlu0 %2297
        %v2299 = vsel %vm675, %v2290, 0.0
        %2300 = vadd.xlane.f32.xlu0 %v2299
        %v2301 = vpop.xlane.xlu0 %2300
        %v2302 = vsel %vm675, %v2292, 0.0
        %2303 = vadd.xlane.f32.xlu0 %v2302
        %v2304 = vpop.xlane.xlu0 %2303
        %v2305 = vrcp.pop %v2295
        %v2306 = vrcp.pop %v2298
        %v2307 = vrcp.pop %v2301
        %v2308 = vrcp.pop %v2304
        %v2309 = vmul.f32 %v2286, %v2305
        %v2310 = vmul.f32 %v2288, %v2306
        %v2311 = vmul.f32 %v2290, %v2307
        %v2312 = vmul.f32 %v2292, %v2308
        %2313 = vrot.lane.b32.xlu0 %v1955, 64
        %v2314 = vpop.permute.xlu0 %2313
        %v2317 = vsel %vm675, %v2309, 0
        %2319 = vmatprep.subr.mxu0 0.0
        %2320 = vmatpush1.msra.mxu0 %v2314
        %2321 = vmatprep.subr.mxu0 0.0
        %2322 = vmatpush1.msra.mxu0 0.0
        %2323 = vmatprep.subr.mxu0 0.0
        %2324 = vmatpush1.msra.mxu0 0.0
        %2325 = vmatprep.subr.mxu0 0.0
        %2326 = vmatpush1.msra.mxu0 0.0
        %2327 = vmatprep.subr.mxu0 0.0
        %2328 = vmatpush1.msra.mxu0 0.0
        %2329 = vmatprep.subr.mxu0 0.0
        %2330 = vmatpush1.msra.mxu0 0.0
        %2331 = vmatprep.subr.mxu0 0.0
        %2332 = vmatpush1.msra.mxu0 0.0
        %2333 = vmatprep.subr.mxu0 0.0
        %2334 = vmatpush1.msra.mxu0 0.0
        %2335 = vmatprep.subr.mxu0 0.0
        %2336 = vmatpush1.msra.mxu0 0.0
        %2337 = vmatprep.subr.mxu0 0.0
        %2338 = vmatpush1.msra.mxu0 0.0
        %2339 = vmatprep.subr.mxu0 0.0
        %2340 = vmatpush1.msra.mxu0 0.0
        %2341 = vmatprep.subr.mxu0 0.0
        %2342 = vmatpush1.msra.mxu0 0.0
        %2343 = vmatprep.subr.mxu0 0.0
        %2344 = vmatpush1.msra.mxu0 0.0
        %2345 = vmatprep.subr.mxu0 0.0
        %2346 = vmatpush1.msra.mxu0 0.0
        %2347 = vmatprep.subr.mxu0 0.0
        %2348 = vmatpush1.msra.mxu0 0.0
        %2349 = vmatprep.subr.mxu0 0.0
        %2350 = vmatpush1.msra.mxu0 0.0
        %2351 = vmatprep.subr.mxu0 0.0
        %2352 = vmatpush1.msra.mxu0 0.0
        %2353 = vmatprep.subr.mxu0 0.0
        %2354 = vmatpush1.msra.mxu0 0.0
        %2355 = vmatprep.subr.mxu0 0.0
        %2356 = vmatpush1.msra.mxu0 0.0
        %2357 = vmatprep.subr.mxu0 0.0
        %2358 = vmatpush1.msra.mxu0 0.0
        %2359 = vmatprep.subr.mxu0 0.0
        %2360 = vmatpush1.msra.mxu0 0.0
        %2361 = vmatprep.subr.mxu0 0.0
        %2362 = vmatpush1.msra.mxu0 0.0
        %2363 = vmatprep.subr.mxu0 0.0
        %2364 = vmatpush1.msra.mxu0 0.0
        %2365 = vmatprep.subr.mxu0 0.0
        %2366 = vmatpush1.msra.mxu0 0.0
        %2367 = vmatprep.subr.mxu0 0.0
        %2368 = vmatpush1.msra.mxu0 0.0
        %2369 = vmatprep.subr.mxu0 0.0
        %2370 = vmatpush1.msra.mxu0 0.0
        %2371 = vmatprep.subr.mxu0 0.0
        %2372 = vmatpush1.msra.mxu0 0.0
        %2373 = vmatprep.subr.mxu0 0.0
        %2374 = vmatpush1.msra.mxu0 0.0
        %2375 = vmatprep.subr.mxu0 0.0
        %2376 = vmatpush1.msra.mxu0 0.0
        %2377 = vmatprep.subr.mxu0 0.0
        %2378 = vmatpush1.msra.mxu0 0.0
        %2379 = vmatprep.subr.mxu0 0.0
        %2380 = vmatpush1.msra.mxu0 0.0
        %2381 = vmatprep.subr.mxu0 0.0
        %2382 = vmatpush1.msra.mxu0 0.0
        %2383 = vmatprep.mubr.f32.mxu0 0.0
        %2384 = vmatmul.mubr.f32.gmra.mrb[0].mxu0 %v2317
        %v2385 = vpop.f32.mrb[0].mxu0
        %v2386 = vadd.f32 0.0, %v2385
        %v2387 = vpop.f32.mrb[0].mxu0
        %2388 = vdwg.mxu0
        %2389 = vrot.lane.b32.xlu0 %v1960, 64
        %v2390 = vpop.permute.xlu0 %2389
        %v2393 = vsel %vm675, %v2310, 0
        %2395 = vmatprep.subr.mxu0 0.0
        %2396 = vmatpush1.msra.mxu0 %v2390
        %2397 = vmatprep.subr.mxu0 0.0
        %2398 = vmatpush1.msra.mxu0 0.0
        %2399 = vmatprep.subr.mxu0 0.0
        %2400 = vmatpush1.msra.mxu0 0.0
        %2401 = vmatprep.subr.mxu0 0.0
        %2402 = vmatpush1.msra.mxu0 0.0
        %2403 = vmatprep.subr.mxu0 0.0
        %2404 = vmatpush1.msra.mxu0 0.0
        %2405 = vmatprep.subr.mxu0 0.0
        %2406 = vmatpush1.msra.mxu0 0.0
        %2407 = vmatprep.subr.mxu0 0.0
        %2408 = vmatpush1.msra.mxu0 0.0
        %2409 = vmatprep.subr.mxu0 0.0
        %2410 = vmatpush1.msra.mxu0 0.0
        %2411 = vmatprep.subr.mxu0 0.0
        %2412 = vmatpush1.msra.mxu0 0.0
        %2413 = vmatprep.subr.mxu0 0.0
        %2414 = vmatpush1.msra.mxu0 0.0
        %2415 = vmatprep.subr.mxu0 0.0
        %2416 = vmatpush1.msra.mxu0 0.0
        %2417 = vmatprep.subr.mxu0 0.0
        %2418 = vmatpush1.msra.mxu0 0.0
        %2419 = vmatprep.subr.mxu0 0.0
        %2420 = vmatpush1.msra.mxu0 0.0
        %2421 = vmatprep.subr.mxu0 0.0
        %2422 = vmatpush1.msra.mxu0 0.0
        %2423 = vmatprep.subr.mxu0 0.0
        %2424 = vmatpush1.msra.mxu0 0.0
        %2425 = vmatprep.subr.mxu0 0.0
        %2426 = vmatpush1.msra.mxu0 0.0
        %2427 = vmatprep.subr.mxu0 0.0
        %2428 = vmatpush1.msra.mxu0 0.0
        %2429 = vmatprep.subr.mxu0 0.0
        %2430 = vmatpush1.msra.mxu0 0.0
        %2431 = vmatprep.subr.mxu0 0.0
        %2432 = vmatpush1.msra.mxu0 0.0
        %2433 = vmatprep.subr.mxu0 0.0
        %2434 = vmatpush1.msra.mxu0 0.0
        %2435 = vmatprep.subr.mxu0 0.0
        %2436 = vmatpush1.msra.mxu0 0.0
        %2437 = vmatprep.subr.mxu0 0.0
        %2438 = vmatpush1.msra.mxu0 0.0
        %2439 = vmatprep.subr.mxu0 0.0
        %2440 = vmatpush1.msra.mxu0 0.0
        %2441 = vmatprep.subr.mxu0 0.0
        %2442 = vmatpush1.msra.mxu0 0.0
        %2443 = vmatprep.subr.mxu0 0.0
        %2444 = vmatpush1.msra.mxu0 0.0
        %2445 = vmatprep.subr.mxu0 0.0
        %2446 = vmatpush1.msra.mxu0 0.0
        %2447 = vmatprep.subr.mxu0 0.0
        %2448 = vmatpush1.msra.mxu0 0.0
        %2449 = vmatprep.subr.mxu0 0.0
        %2450 = vmatpush1.msra.mxu0 0.0
        %2451 = vmatprep.subr.mxu0 0.0
        %2452 = vmatpush1.msra.mxu0 0.0
        %2453 = vmatprep.subr.mxu0 0.0
        %2454 = vmatpush1.msra.mxu0 0.0
        %2455 = vmatprep.subr.mxu0 0.0
        %2456 = vmatpush1.msra.mxu0 0.0
        %2457 = vmatprep.subr.mxu0 0.0
        %2458 = vmatpush1.msra.mxu0 0.0
        %2459 = vmatprep.mubr.f32.mxu0 0.0
        %2460 = vmatmul.mubr.f32.gmra.mrb[0].mxu0 %v2393
        %v2461 = vpop.f32.mrb[0].mxu0
        %v2462 = vadd.f32 0.0, %v2461
        %v2463 = vpop.f32.mrb[0].mxu0
        %2464 = vdwg.mxu0
        %2465 = vrot.lane.b32.xlu0 %v1962, 64
        %v2466 = vpop.permute.xlu0 %2465
        %v2469 = vsel %vm675, %v2311, 0
        %2471 = vmatprep.subr.mxu0 0.0
        %2472 = vmatpush1.msra.mxu0 %v2466
        %2473 = vmatprep.subr.mxu0 0.0
        %2474 = vmatpush1.msra.mxu0 0.0
        %2475 = vmatprep.subr.mxu0 0.0
        %2476 = vmatpush1.msra.mxu0 0.0
        %2477 = vmatprep.subr.mxu0 0.0
        %2478 = vmatpush1.msra.mxu0 0.0
        %2479 = vmatprep.subr.mxu0 0.0
        %2480 = vmatpush1.msra.mxu0 0.0
        %2481 = vmatprep.subr.mxu0 0.0
        %2482 = vmatpush1.msra.mxu0 0.0
        %2483 = vmatprep.subr.mxu0 0.0
        %2484 = vmatpush1.msra.mxu0 0.0
        %2485 = vmatprep.subr.mxu0 0.0
        %2486 = vmatpush1.msra.mxu0 0.0
        %2487 = vmatprep.subr.mxu0 0.0
        %2488 = vmatpush1.msra.mxu0 0.0
        %2489 = vmatprep.subr.mxu0 0.0
        %2490 = vmatpush1.msra.mxu0 0.0
        %2491 = vmatprep.subr.mxu0 0.0
        %2492 = vmatpush1.msra.mxu0 0.0
        %2493 = vmatprep.subr.mxu0 0.0
        %2494 = vmatpush1.msra.mxu0 0.0
        %2495 = vmatprep.subr.mxu0 0.0
        %2496 = vmatpush1.msra.mxu0 0.0
        %2497 = vmatprep.subr.mxu0 0.0
        %2498 = vmatpush1.msra.mxu0 0.0
        %2499 = vmatprep.subr.mxu0 0.0
        %2500 = vmatpush1.msra.mxu0 0.0
        %2501 = vmatprep.subr.mxu0 0.0
        %2502 = vmatpush1.msra.mxu0 0.0
        %2503 = vmatprep.subr.mxu0 0.0
        %2504 = vmatpush1.msra.mxu0 0.0
        %2505 = vmatprep.subr.mxu0 0.0
        %2506 = vmatpush1.msra.mxu0 0.0
        %2507 = vmatprep.subr.mxu0 0.0
        %2508 = vmatpush1.msra.mxu0 0.0
        %2509 = vmatprep.subr.mxu0 0.0
        %2510 = vmatpush1.msra.mxu0 0.0
        %2511 = vmatprep.subr.mxu0 0.0
        %2512 = vmatpush1.msra.mxu0 0.0
        %2513 = vmatprep.subr.mxu0 0.0
        %2514 = vmatpush1.msra.mxu0 0.0
        %2515 = vmatprep.subr.mxu0 0.0
        %2516 = vmatpush1.msra.mxu0 0.0
        %2517 = vmatprep.subr.mxu0 0.0
        %2518 = vmatpush1.msra.mxu0 0.0
        %2519 = vmatprep.subr.mxu0 0.0
        %2520 = vmatpush1.msra.mxu0 0.0
        %2521 = vmatprep.subr.mxu0 0.0
        %2522 = vmatpush1.msra.mxu0 0.0
        %2523 = vmatprep.subr.mxu0 0.0
        %2524 = vmatpush1.msra.mxu0 0.0
        %2525 = vmatprep.subr.mxu0 0.0
        %2526 = vmatpush1.msra.mxu0 0.0
        %2527 = vmatprep.subr.mxu0 0.0
        %2528 = vmatpush1.msra.mxu0 0.0
        %2529 = vmatprep.subr.mxu0 0.0
        %2530 = vmatpush1.msra.mxu0 0.0
        %2531 = vmatprep.subr.mxu0 0.0
        %2532 = vmatpush1.msra.mxu0 0.0
        %2533 = vmatprep.subr.mxu0 0.0
        %2534 = vmatpush1.msra.mxu0 0.0
        %2535 = vmatprep.mubr.f32.mxu0 0.0
        %2536 = vmatmul.mubr.f32.gmra.mrb[0].mxu0 %v2469
        %v2537 = vpop.f32.mrb[0].mxu0
        %v2538 = vadd.f32 0.0, %v2537
        %v2539 = vpop.f32.mrb[0].mxu0
        %2540 = vdwg.mxu0
        %2541 = vrot.lane.b32.xlu0 %v1964, 64
        %v2542 = vpop.permute.xlu0 %2541
        %v2545 = vsel %vm675, %v2312, 0
        %2547 = vmatprep.subr.mxu0 0.0
        %2548 = vmatpush1.msra.mxu0 %v2542
        %2549 = vmatprep.subr.mxu0 0.0
        %2550 = vmatpush1.msra.mxu0 0.0
        %2551 = vmatprep.subr.mxu0 0.0
        %2552 = vmatpush1.msra.mxu0 0.0
        %2553 = vmatprep.subr.mxu0 0.0
        %2554 = vmatpush1.msra.mxu0 0.0
        %2555 = vmatprep.subr.mxu0 0.0
        %2556 = vmatpush1.msra.mxu0 0.0
        %2557 = vmatprep.subr.mxu0 0.0
        %2558 = vmatpush1.msra.mxu0 0.0
        %2559 = vmatprep.subr.mxu0 0.0
        %2560 = vmatpush1.msra.mxu0 0.0
        %2561 = vmatprep.subr.mxu0 0.0
        %2562 = vmatpush1.msra.mxu0 0.0
        %2563 = vmatprep.subr.mxu0 0.0
        %2564 = vmatpush1.msra.mxu0 0.0
        %2565 = vmatprep.subr.mxu0 0.0
        %2566 = vmatpush1.msra.mxu0 0.0
        %2567 = vmatprep.subr.mxu0 0.0
        %2568 = vmatpush1.msra.mxu0 0.0
        %2569 = vmatprep.subr.mxu0 0.0
        %2570 = vmatpush1.msra.mxu0 0.0
        %2571 = vmatprep.subr.mxu0 0.0
        %2572 = vmatpush1.msra.mxu0 0.0
        %2573 = vmatprep.subr.mxu0 0.0
        %2574 = vmatpush1.msra.mxu0 0.0
        %2575 = vmatprep.subr.mxu0 0.0
        %2576 = vmatpush1.msra.mxu0 0.0
        %2577 = vmatprep.subr.mxu0 0.0
        %2578 = vmatpush1.msra.mxu0 0.0
        %2579 = vmatprep.subr.mxu0 0.0
        %2580 = vmatpush1.msra.mxu0 0.0
        %2581 = vmatprep.subr.mxu0 0.0
        %2582 = vmatpush1.msra.mxu0 0.0
        %2583 = vmatprep.subr.mxu0 0.0
        %2584 = vmatpush1.msra.mxu0 0.0
        %2585 = vmatprep.subr.mxu0 0.0
        %2586 = vmatpush1.msra.mxu0 0.0
        %2587 = vmatprep.subr.mxu0 0.0
        %2588 = vmatpush1.msra.mxu0 0.0
        %2589 = vmatprep.subr.mxu0 0.0
        %2590 = vmatpush1.msra.mxu0 0.0
        %2591 = vmatprep.subr.mxu0 0.0
        %2592 = vmatpush1.msra.mxu0 0.0
        %2593 = vmatprep.subr.mxu0 0.0
        %2594 = vmatpush1.msra.mxu0 0.0
        %2595 = vmatprep.subr.mxu0 0.0
        %2596 = vmatpush1.msra.mxu0 0.0
        %2597 = vmatprep.subr.mxu0 0.0
        %2598 = vmatpush1.msra.mxu0 0.0
        %2599 = vmatprep.subr.mxu0 0.0
        %2600 = vmatpush1.msra.mxu0 0.0
        %2601 = vmatprep.subr.mxu0 0.0
        %2602 = vmatpush1.msra.mxu0 0.0
        %2603 = vmatprep.subr.mxu0 0.0
        %2604 = vmatpush1.msra.mxu0 0.0
        %2605 = vmatprep.subr.mxu0 0.0
        %2606 = vmatpush1.msra.mxu0 0.0
        %2607 = vmatprep.subr.mxu0 0.0
        %2608 = vmatpush1.msra.mxu0 0.0
        %2609 = vmatprep.subr.mxu0 0.0
        %2610 = vmatpush1.msra.mxu0 0.0
        %2611 = vmatprep.mubr.f32.mxu0 0.0
        %2612 = vmatmul.mubr.f32.gmra.mrb[0].mxu0 %v2545
        %v2613 = vpop.f32.mrb[0].mxu0
        %v2614 = vadd.f32 0.0, %v2613
        %v2615 = vpop.f32.mrb[0].mxu0
        %2616 = vdwg.mxu0
        %s2617 = scalar_lea.vmem %s5, 32
        %v2618 = vld [vmem:[%s2617] sm:$0xff]
        %v2619 = vld [vmem:[%s2617 + $0x8] sm:$0xff]
        %v2620 = vld [vmem:[%s2617 + $0x10] sm:$0xff]
        %v2621 = vld [vmem:[%s2617 + $0x18] sm:$0xff]
        %v2623 = vsel %vm675, %v2386, 0
        %2625 = vmatprep.subr.mxu0 0.0
        %2626 = vmatpush1.msra.mxu0 %v2618
        %2627 = vmatprep.subr.mxu0 0.0
        %2628 = vmatpush1.msra.mxu0 0.0
        %2629 = vmatprep.subr.mxu0 0.0
        %2630 = vmatpush1.msra.mxu0 0.0
        %2631 = vmatprep.subr.mxu0 0.0
        %2632 = vmatpush1.msra.mxu0 0.0
        %2633 = vmatprep.subr.mxu0 0.0
        %2634 = vmatpush1.msra.mxu0 0.0
        %2635 = vmatprep.subr.mxu0 0.0
        %2636 = vmatpush1.msra.mxu0 0.0
        %2637 = vmatprep.subr.mxu0 0.0
        %2638 = vmatpush1.msra.mxu0 0.0
        %2639 = vmatprep.subr.mxu0 0.0
        %2640 = vmatpush1.msra.mxu0 0.0
        %2641 = vmatprep.subr.mxu0 0.0
        %2642 = vmatpush1.msra.mxu0 0.0
        %2643 = vmatprep.subr.mxu0 0.0
        %2644 = vmatpush1.msra.mxu0 0.0
        %2645 = vmatprep.subr.mxu0 0.0
        %2646 = vmatpush1.msra.mxu0 0.0
        %2647 = vmatprep.subr.mxu0 0.0
        %2648 = vmatpush1.msra.mxu0 0.0
        %2649 = vmatprep.subr.mxu0 0.0
        %2650 = vmatpush1.msra.mxu0 0.0
        %2651 = vmatprep.subr.mxu0 0.0
        %2652 = vmatpush1.msra.mxu0 0.0
        %2653 = vmatprep.subr.mxu0 0.0
        %2654 = vmatpush1.msra.mxu0 0.0
        %2655 = vmatprep.subr.mxu0 0.0
        %2656 = vmatpush1.msra.mxu0 0.0
        %2657 = vmatprep.subr.mxu0 0.0
        %2658 = vmatpush1.msra.mxu0 0.0
        %2659 = vmatprep.subr.mxu0 0.0
        %2660 = vmatpush1.msra.mxu0 0.0
        %2661 = vmatprep.subr.mxu0 0.0
        %2662 = vmatpush1.msra.mxu0 0.0
        %2663 = vmatprep.subr.mxu0 0.0
        %2664 = vmatpush1.msra.mxu0 0.0
        %2665 = vmatprep.subr.mxu0 0.0
        %2666 = vmatpush1.msra.mxu0 0.0
        %2667 = vmatprep.subr.mxu0 0.0
        %2668 = vmatpush1.msra.mxu0 0.0
        %2669 = vmatprep.subr.mxu0 0.0
        %2670 = vmatpush1.msra.mxu0 0.0
        %2671 = vmatprep.subr.mxu0 0.0
        %2672 = vmatpush1.msra.mxu0 0.0
        %2673 = vmatprep.subr.mxu0 0.0
        %2674 = vmatpush1.msra.mxu0 0.0
        %2675 = vmatprep.subr.mxu0 0.0
        %2676 = vmatpush1.msra.mxu0 0.0
        %2677 = vmatprep.subr.mxu0 0.0
        %2678 = vmatpush1.msra.mxu0 0.0
        %2679 = vmatprep.subr.mxu0 0.0
        %2680 = vmatpush1.msra.mxu0 0.0
        %2681 = vmatprep.subr.mxu0 0.0
        %2682 = vmatpush1.msra.mxu0 0.0
        %2683 = vmatprep.subr.mxu0 0.0
        %2684 = vmatpush1.msra.mxu0 0.0
        %2685 = vmatprep.subr.mxu0 0.0
        %2686 = vmatpush1.msra.mxu0 0.0
        %2687 = vmatprep.subr.mxu0 0.0
        %2688 = vmatpush1.msra.mxu0 0.0
        %2689 = vmatprep.mubr.f32.mxu0 0.0
        %2690 = vmatmul.mubr.f32.gmra.mrb[0].mxu0 %v2623
        %v2691 = vpop.f32.mrb[0].mxu0
        %v2692 = vadd.f32 0.0, %v2691
        %v2693 = vpop.f32.mrb[0].mxu0
        %2694 = vdwg.mxu0
        %v2696 = vsel %vm675, %v2462, 0
        %2698 = vmatprep.subr.mxu0 0.0
        %2699 = vmatpush1.msra.mxu0 %v2619
        %2700 = vmatprep.subr.mxu0 0.0
        %2701 = vmatpush1.msra.mxu0 0.0
        %2702 = vmatprep.subr.mxu0 0.0
        %2703 = vmatpush1.msra.mxu0 0.0
        %2704 = vmatprep.subr.mxu0 0.0
        %2705 = vmatpush1.msra.mxu0 0.0
        %2706 = vmatprep.subr.mxu0 0.0
        %2707 = vmatpush1.msra.mxu0 0.0
        %2708 = vmatprep.subr.mxu0 0.0
        %2709 = vmatpush1.msra.mxu0 0.0
        %2710 = vmatprep.subr.mxu0 0.0
        %2711 = vmatpush1.msra.mxu0 0.0
        %2712 = vmatprep.subr.mxu0 0.0
        %2713 = vmatpush1.msra.mxu0 0.0
        %2714 = vmatprep.subr.mxu0 0.0
        %2715 = vmatpush1.msra.mxu0 0.0
        %2716 = vmatprep.subr.mxu0 0.0
        %2717 = vmatpush1.msra.mxu0 0.0
        %2718 = vmatprep.subr.mxu0 0.0
        %2719 = vmatpush1.msra.mxu0 0.0
        %2720 = vmatprep.subr.mxu0 0.0
        %2721 = vmatpush1.msra.mxu0 0.0
        %2722 = vmatprep.subr.mxu0 0.0
        %2723 = vmatpush1.msra.mxu0 0.0
        %2724 = vmatprep.subr.mxu0 0.0
        %2725 = vmatpush1.msra.mxu0 0.0
        %2726 = vmatprep.subr.mxu0 0.0
        %2727 = vmatpush1.msra.mxu0 0.0
        %2728 = vmatprep.subr.mxu0 0.0
        %2729 = vmatpush1.msra.mxu0 0.0
        %2730 = vmatprep.subr.mxu0 0.0
        %2731 = vmatpush1.msra.mxu0 0.0
        %2732 = vmatprep.subr.mxu0 0.0
        %2733 = vmatpush1.msra.mxu0 0.0
        %2734 = vmatprep.subr.mxu0 0.0
        %2735 = vmatpush1.msra.mxu0 0.0
        %2736 = vmatprep.subr.mxu0 0.0
        %2737 = vmatpush1.msra.mxu0 0.0
        %2738 = vmatprep.subr.mxu0 0.0
        %2739 = vmatpush1.msra.mxu0 0.0
        %2740 = vmatprep.subr.mxu0 0.0
        %2741 = vmatpush1.msra.mxu0 0.0
        %2742 = vmatprep.subr.mxu0 0.0
        %2743 = vmatpush1.msra.mxu0 0.0
        %2744 = vmatprep.subr.mxu0 0.0
        %2745 = vmatpush1.msra.mxu0 0.0
        %2746 = vmatprep.subr.mxu0 0.0
        %2747 = vmatpush1.msra.mxu0 0.0
        %2748 = vmatprep.subr.mxu0 0.0
        %2749 = vmatpush1.msra.mxu0 0.0
        %2750 = vmatprep.subr.mxu0 0.0
        %2751 = vmatpush1.msra.mxu0 0.0
        %2752 = vmatprep.subr.mxu0 0.0
        %2753 = vmatpush1.msra.mxu0 0.0
        %2754 = vmatprep.subr.mxu0 0.0
        %2755 = vmatpush1.msra.mxu0 0.0
        %2756 = vmatprep.subr.mxu0 0.0
        %2757 = vmatpush1.msra.mxu0 0.0
        %2758 = vmatprep.subr.mxu0 0.0
        %2759 = vmatpush1.msra.mxu0 0.0
        %2760 = vmatprep.subr.mxu0 0.0
        %2761 = vmatpush1.msra.mxu0 0.0
        %2762 = vmatprep.mubr.f32.mxu0 0.0
        %2763 = vmatmul.mubr.f32.gmra.mrb[0].mxu0 %v2696
        %v2764 = vpop.f32.mrb[0].mxu0
        %v2765 = vadd.f32 0.0, %v2764
        %v2766 = vpop.f32.mrb[0].mxu0
        %2767 = vdwg.mxu0
        %v2769 = vsel %vm675, %v2538, 0
        %2771 = vmatprep.subr.mxu0 0.0
        %2772 = vmatpush1.msra.mxu0 %v2620
        %2773 = vmatprep.subr.mxu0 0.0
        %2774 = vmatpush1.msra.mxu0 0.0
        %2775 = vmatprep.subr.mxu0 0.0
        %2776 = vmatpush1.msra.mxu0 0.0
        %2777 = vmatprep.subr.mxu0 0.0
        %2778 = vmatpush1.msra.mxu0 0.0
        %2779 = vmatprep.subr.mxu0 0.0
        %2780 = vmatpush1.msra.mxu0 0.0
        %2781 = vmatprep.subr.mxu0 0.0
        %2782 = vmatpush1.msra.mxu0 0.0
        %2783 = vmatprep.subr.mxu0 0.0
        %2784 = vmatpush1.msra.mxu0 0.0
        %2785 = vmatprep.subr.mxu0 0.0
        %2786 = vmatpush1.msra.mxu0 0.0
        %2787 = vmatprep.subr.mxu0 0.0
        %2788 = vmatpush1.msra.mxu0 0.0
        %2789 = vmatprep.subr.mxu0 0.0
        %2790 = vmatpush1.msra.mxu0 0.0
        %2791 = vmatprep.subr.mxu0 0.0
        %2792 = vmatpush1.msra.mxu0 0.0
        %2793 = vmatprep.subr.mxu0 0.0
        %2794 = vmatpush1.msra.mxu0 0.0
        %2795 = vmatprep.subr.mxu0 0.0
        %2796 = vmatpush1.msra.mxu0 0.0
        %2797 = vmatprep.subr.mxu0 0.0
        %2798 = vmatpush1.msra.mxu0 0.0
        %2799 = vmatprep.subr.mxu0 0.0
        %2800 = vmatpush1.msra.mxu0 0.0
        %2801 = vmatprep.subr.mxu0 0.0
        %2802 = vmatpush1.msra.mxu0 0.0
        %2803 = vmatprep.subr.mxu0 0.0
        %2804 = vmatpush1.msra.mxu0 0.0
        %2805 = vmatprep.subr.mxu0 0.0
        %2806 = vmatpush1.msra.mxu0 0.0
        %2807 = vmatprep.subr.mxu0 0.0
        %2808 = vmatpush1.msra.mxu0 0.0
        %2809 = vmatprep.subr.mxu0 0.0
        %2810 = vmatpush1.msra.mxu0 0.0
        %2811 = vmatprep.subr.mxu0 0.0
        %2812 = vmatpush1.msra.mxu0 0.0
        %2813 = vmatprep.subr.mxu0 0.0
        %2814 = vmatpush1.msra.mxu0 0.0
        %2815 = vmatprep.subr.mxu0 0.0
        %2816 = vmatpush1.msra.mxu0 0.0
        %2817 = vmatprep.subr.mxu0 0.0
        %2818 = vmatpush1.msra.mxu0 0.0
        %2819 = vmatprep.subr.mxu0 0.0
        %2820 = vmatpush1.msra.mxu0 0.0
        %2821 = vmatprep.subr.mxu0 0.0
        %2822 = vmatpush1.msra.mxu0 0.0
        %2823 = vmatprep.subr.mxu0 0.0
        %2824 = vmatpush1.msra.mxu0 0.0
        %2825 = vmatprep.subr.mxu0 0.0
        %2826 = vmatpush1.msra.mxu0 0.0
        %2827 = vmatprep.subr.mxu0 0.0
        %2828 = vmatpush1.msra.mxu0 0.0
        %2829 = vmatprep.subr.mxu0 0.0
        %2830 = vmatpush1.msra.mxu0 0.0
        %2831 = vmatprep.subr.mxu0 0.0
        %2832 = vmatpush1.msra.mxu0 0.0
        %2833 = vmatprep.subr.mxu0 0.0
        %2834 = vmatpush1.msra.mxu0 0.0
        %2835 = vmatprep.mubr.f32.mxu0 0.0
        %2836 = vmatmul.mubr.f32.gmra.mrb[0].mxu0 %v2769
        %v2837 = vpop.f32.mrb[0].mxu0
        %v2838 = vadd.f32 0.0, %v2837
        %v2839 = vpop.f32.mrb[0].mxu0
        %2840 = vdwg.mxu0
        %v2842 = vsel %vm675, %v2614, 0
        %2844 = vmatprep.subr.mxu0 0.0
        %2845 = vmatpush1.msra.mxu0 %v2621
        %2846 = vmatprep.subr.mxu0 0.0
        %2847 = vmatpush1.msra.mxu0 0.0
        %2848 = vmatprep.subr.mxu0 0.0
        %2849 = vmatpush1.msra.mxu0 0.0
        %2850 = vmatprep.subr.mxu0 0.0
        %2851 = vmatpush1.msra.mxu0 0.0
        %2852 = vmatprep.subr.mxu0 0.0
        %2853 = vmatpush1.msra.mxu0 0.0
        %2854 = vmatprep.subr.mxu0 0.0
        %2855 = vmatpush1.msra.mxu0 0.0
        %2856 = vmatprep.subr.mxu0 0.0
        %2857 = vmatpush1.msra.mxu0 0.0
        %2858 = vmatprep.subr.mxu0 0.0
        %2859 = vmatpush1.msra.mxu0 0.0
        %2860 = vmatprep.subr.mxu0 0.0
        %2861 = vmatpush1.msra.mxu0 0.0
        %2862 = vmatprep.subr.mxu0 0.0
        %2863 = vmatpush1.msra.mxu0 0.0
        %2864 = vmatprep.subr.mxu0 0.0
        %2865 = vmatpush1.msra.mxu0 0.0
        %2866 = vmatprep.subr.mxu0 0.0
        %2867 = vmatpush1.msra.mxu0 0.0
        %2868 = vmatprep.subr.mxu0 0.0
        %2869 = vmatpush1.msra.mxu0 0.0
        %2870 = vmatprep.subr.mxu0 0.0
        %2871 = vmatpush1.msra.mxu0 0.0
        %2872 = vmatprep.subr.mxu0 0.0
        %2873 = vmatpush1.msra.mxu0 0.0
        %2874 = vmatprep.subr.mxu0 0.0
        %2875 = vmatpush1.msra.mxu0 0.0
        %2876 = vmatprep.subr.mxu0 0.0
        %2877 = vmatpush1.msra.mxu0 0.0
        %2878 = vmatprep.subr.mxu0 0.0
        %2879 = vmatpush1.msra.mxu0 0.0
        %2880 = vmatprep.subr.mxu0 0.0
        %2881 = vmatpush1.msra.mxu0 0.0
        %2882 = vmatprep.subr.mxu0 0.0
        %2883 = vmatpush1.msra.mxu0 0.0
        %2884 = vmatprep.subr.mxu0 0.0
        %2885 = vmatpush1.msra.mxu0 0.0
        %2886 = vmatprep.subr.mxu0 0.0
        %2887 = vmatpush1.msra.mxu0 0.0
        %2888 = vmatprep.subr.mxu0 0.0
        %2889 = vmatpush1.msra.mxu0 0.0
        %2890 = vmatprep.subr.mxu0 0.0
        %2891 = vmatpush1.msra.mxu0 0.0
        %2892 = vmatprep.subr.mxu0 0.0
        %2893 = vmatpush1.msra.mxu0 0.0
        %2894 = vmatprep.subr.mxu0 0.0
        %2895 = vmatpush1.msra.mxu0 0.0
        %2896 = vmatprep.subr.mxu0 0.0
        %2897 = vmatpush1.msra.mxu0 0.0
        %2898 = vmatprep.subr.mxu0 0.0
        %2899 = vmatpush1.msra.mxu0 0.0
        %2900 = vmatprep.subr.mxu0 0.0
        %2901 = vmatpush1.msra.mxu0 0.0
        %2902 = vmatprep.subr.mxu0 0.0
        %2903 = vmatpush1.msra.mxu0 0.0
        %2904 = vmatprep.subr.mxu0 0.0
        %2905 = vmatpush1.msra.mxu0 0.0
        %2906 = vmatprep.subr.mxu0 0.0
        %2907 = vmatpush1.msra.mxu0 0.0
        %2908 = vmatprep.mubr.f32.mxu0 0.0
        %2909 = vmatmul.mubr.f32.gmra.mrb[0].mxu0 %v2842
        %v2910 = vpop.f32.mrb[0].mxu0
        %v2911 = vadd.f32 0.0, %v2910
        %v2912 = vpop.f32.mrb[0].mxu0
        %2913 = vdwg.mxu0
        %v2914 = vsel %vm592, %v2692, 0.0
        %v2915 = vsel %vm592, %v2765, 0.0
        %v2916 = vadd.f32 %v2914, %v2915
        %v2917 = vsel %vm592, %v2838, 0.0
        %v2918 = vadd.f32 %v2916, %v2917
        %v2919 = vsel %vm592, %v2911, 0.0
        %v2920 = vadd.f32 %v2918, %v2919
        %s2921 = scalar_lea.vmem %s6, 1
        %v2922 = vld [vmem:[%s2921] sm:$0x1]
        %v2924 = vlaneseq
        %v2925 = vshrl.u32 %v2924, 7
        %v2926 = vsub.s32 0, %v2925
        %v2927 = vrot.slane %v2922, %v2926
        %v2929 = vadd.f32 %v2920, %v2927
        %v2930 = vadd.f32 %v1871, %v2929
        %s2931 = scalar_lea.vmem %s11, 1
        %v2932 = vld [vmem:[%s2931] sm:$0x1]
        %s2933 = scalar_lea.vmem %s12, 1
        %v2934 = vld [vmem:[%s2933] sm:$0x1]
        %v2935 = vsel %vm592, %v2930, 0.0
        %2936 = vadd.xlane.f32.xlu0 %v2935
        %v2937 = vpop.xlane.xlu0 %2936
        %v2938 = vmul.f32 %v2937, %v1643
        %v2939 = vsub.f32 %v2930, %v2938
        %v2940 = vmul.f32 %v2939, %v2939
        %v2941 = vsel %vm592, %v2940, 0.0
        %2942 = vadd.xlane.f32.xlu0 %v2941
        %v2943 = vpop.xlane.xlu0 %2942
        %v2944 = vmul.f32 %v2943, %v1643
        %v2945 = vadd.f32 %v2944, 1e-05
        %v2946 = vrsqrt.pop %v2945
        %v2947 = vmul.f32 %v2939, %v2946
        %v2949 = vlaneseq
        %v2950 = vshrl.u32 %v2949, 7
        %v2951 = vsub.s32 0, %v2950
        %v2952 = vrot.slane %v2932, %v2951
        %v2954 = vmul.f32 %v2947, %v2952
        %v2956 = vlaneseq
        %v2957 = vshrl.u32 %v2956, 7
        %v2958 = vsub.s32 0, %v2957
        %v2959 = vrot.slane %v2934, %v2958
        %v2961 = vadd.f32 %v2954, %v2959
        %s2962 = scalar_lea.vmem %s7, 32
        %v2963 = vld [vmem:[%s2962] sm:$0xff]
        %v2964 = vld [vmem:[%s2962 + $0x8] sm:$0xff]
        %v2965 = vld [vmem:[%s2962 + $0x10] sm:$0xff]
        %v2966 = vld [vmem:[%s2962 + $0x18] sm:$0xff]
        %s2967 = scalar_lea.vmem %s8, 1
        %v2968 = vld [vmem:[%s2967] sm:$0x1]
        %v2970 = vlaneseq
        %v2971 = vshrl.u32 %v2970, 7
        %v2972 = vsub.s32 0, %v2971
        %v2973 = vrot.slane %v2968, %v2972
        %v2976 = vsel %vm592, %v2961, 0
        %2978 = vmatprep.subr.mxu0 0.0
        %2979 = vmatpush1.msra.mxu0 %v2963
        %2980 = vmatprep.subr.mxu0 0.0
        %2981 = vmatpush1.msra.mxu0 %v2964
        %2982 = vmatprep.subr.mxu0 0.0
        %2983 = vmatpush1.msra.mxu0 %v2965
        %2984 = vmatprep.subr.mxu0 0.0
        %2985 = vmatpush1.msra.mxu0 %v2966
        %2986 = vmatprep.subr.mxu0 0.0
        %2987 = vmatpush1.msra.mxu0 0.0
        %2988 = vmatprep.subr.mxu0 0.0
        %2989 = vmatpush1.msra.mxu0 0.0
        %2990 = vmatprep.subr.mxu0 0.0
        %2991 = vmatpush1.msra.mxu0 0.0
        %2992 = vmatprep.subr.mxu0 0.0
        %2993 = vmatpush1.msra.mxu0 0.0
        %2994 = vmatprep.subr.mxu0 0.0
        %2995 = vmatpush1.msra.mxu0 0.0
        %2996 = vmatprep.subr.mxu0 0.0
        %2997 = vmatpush1.msra.mxu0 0.0
        %2998 = vmatprep.subr.mxu0 0.0
        %2999 = vmatpush1.msra.mxu0 0.0
        %3000 = vmatprep.subr.mxu0 0.0
        %3001 = vmatpush1.msra.mxu0 0.0
        %3002 = vmatprep.subr.mxu0 0.0
        %3003 = vmatpush1.msra.mxu0 0.0
        %3004 = vmatprep.subr.mxu0 0.0
        %3005 = vmatpush1.msra.mxu0 0.0
        %3006 = vmatprep.subr.mxu0 0.0
        %3007 = vmatpush1.msra.mxu0 0.0
        %3008 = vmatprep.subr.mxu0 0.0
        %3009 = vmatpush1.msra.mxu0 0.0
        %3010 = vmatprep.subr.mxu0 0.0
        %3011 = vmatpush1.msra.mxu0 0.0
        %3012 = vmatprep.subr.mxu0 0.0
        %3013 = vmatpush1.msra.mxu0 0.0
        %3014 = vmatprep.subr.mxu0 0.0
        %3015 = vmatpush1.msra.mxu0 0.0
        %3016 = vmatprep.subr.mxu0 0.0
        %3017 = vmatpush1.msra.mxu0 0.0
        %3018 = vmatprep.subr.mxu0 0.0
        %3019 = vmatpush1.msra.mxu0 0.0
        %3020 = vmatprep.subr.mxu0 0.0
        %3021 = vmatpush1.msra.mxu0 0.0
        %3022 = vmatprep.subr.mxu0 0.0
        %3023 = vmatpush1.msra.mxu0 0.0
        %3024 = vmatprep.subr.mxu0 0.0
        %3025 = vmatpush1.msra.mxu0 0.0
        %3026 = vmatprep.subr.mxu0 0.0
        %3027 = vmatpush1.msra.mxu0 0.0
        %3028 = vmatprep.subr.mxu0 0.0
        %3029 = vmatpush1.msra.mxu0 0.0
        %3030 = vmatprep.subr.mxu0 0.0
        %3031 = vmatpush1.msra.mxu0 0.0
        %3032 = vmatprep.subr.mxu0 0.0
        %3033 = vmatpush1.msra.mxu0 0.0
        %3034 = vmatprep.subr.mxu0 0.0
        %3035 = vmatpush1.msra.mxu0 0.0
        %3036 = vmatprep.subr.mxu0 0.0
        %3037 = vmatpush1.msra.mxu0 0.0
        %3038 = vmatprep.subr.mxu0 0.0
        %3039 = vmatpush1.msra.mxu0 0.0
        %3040 = vmatprep.subr.mxu0 0.0
        %3041 = vmatpush1.msra.mxu0 0.0
        %3042 = vmatprep.mubr.f32.mxu0 0.0
        %3043 = vmatmul.mubr.f32.gmra.mrb[0].mxu0 %v2976
        %v3044 = vpop.f32.mrb[0].mxu0
        %v3045 = vadd.f32 %v2973, %v3044
        %v3046 = vpop.f32.mrb[0].mxu0
        %3047 = vdwg.mxu0
        %v3048 = vmax.f32 %v3045, 0.0
        %s3049 = scalar_lea.vmem %s9, 64
        %v3050 = vld [vmem:[%s3049] sm:$0xff]
        %v3051 = vld [vmem:[%s3049 + $0x8] sm:$0xff]
        %v3052 = vld [vmem:[%s3049 + $0x10] sm:$0xff]
        %v3053 = vld [vmem:[%s3049 + $0x18] sm:$0xff]
        %v3054 = vld [vmem:[%s3049 + $0x20] sm:$0xff]
        %v3055 = vld [vmem:[%s3049 + $0x28] sm:$0xff]
        %v3056 = vld [vmem:[%s3049 + $0x30] sm:$0xff]
        %v3057 = vld [vmem:[%s3049 + $0x38] sm:$0xff]
        %s3058 = scalar_lea.vmem %s10, 1
        %v3059 = vld [vmem:[%s3058] sm:$0x1]
        %v3061 = vlaneseq
        %v3062 = vshrl.u32 %v3061, 7
        %v3063 = vsub.s32 0, %v3062
        %v3064 = vrot.slane %v3059, %v3063
        %v3067 = vsel %vm1768, %v3048, 0
        %3069 = vmatprep.subr.mxu0 0.0
        %3070 = vmatpush1.msra.mxu0 %v3050
        %3071 = vmatprep.subr.mxu0 0.0
        %3072 = vmatpush1.msra.mxu0 %v3051
        %3073 = vmatprep.subr.mxu0 0.0
        %3074 = vmatpush1.msra.mxu0 %v3052
        %3075 = vmatprep.subr.mxu0 0.0
        %3076 = vmatpush1.msra.mxu0 %v3053
        %3077 = vmatprep.subr.mxu0 0.0
        %3078 = vmatpush1.msra.mxu0 %v3054
        %3079 = vmatprep.subr.mxu0 0.0
        %3080 = vmatpush1.msra.mxu0 %v3055
        %3081 = vmatprep.subr.mxu0 0.0
        %3082 = vmatpush1.msra.mxu0 %v3056
        %3083 = vmatprep.subr.mxu0 0.0
        %3084 = vmatpush1.msra.mxu0 %v3057
        %3085 = vmatprep.subr.mxu0 0.0
        %3086 = vmatpush1.msra.mxu0 0.0
        %3087 = vmatprep.subr.mxu0 0.0
        %3088 = vmatpush1.msra.mxu0 0.0
        %3089 = vmatprep.subr.mxu0 0.0
        %3090 = vmatpush1.msra.mxu0 0.0
        %3091 = vmatprep.subr.mxu0 0.0
        %3092 = vmatpush1.msra.mxu0 0.0
        %3093 = vmatprep.subr.mxu0 0.0
        %3094 = vmatpush1.msra.mxu0 0.0
        %3095 = vmatprep.subr.mxu0 0.0
        %3096 = vmatpush1.msra.mxu0 0.0
        %3097 = vmatprep.subr.mxu0 0.0
        %3098 = vmatpush1.msra.mxu0 0.0
        %3099 = vmatprep.subr.mxu0 0.0
        %3100 = vmatpush1.msra.mxu0 0.0
        %3101 = vmatprep.subr.mxu0 0.0
        %3102 = vmatpush1.msra.mxu0 0.0
        %3103 = vmatprep.subr.mxu0 0.0
        %3104 = vmatpush1.msra.mxu0 0.0
        %3105 = vmatprep.subr.mxu0 0.0
        %3106 = vmatpush1.msra.mxu0 0.0
        %3107 = vmatprep.subr.mxu0 0.0
        %3108 = vmatpush1.msra.mxu0 0.0
        %3109 = vmatprep.subr.mxu0 0.0
        %3110 = vmatpush1.msra.mxu0 0.0
        %3111 = vmatprep.subr.mxu0 0.0
        %3112 = vmatpush1.msra.mxu0 0.0
        %3113 = vmatprep.subr.mxu0 0.0
        %3114 = vmatpush1.msra.mxu0 0.0
        %3115 = vmatprep.subr.mxu0 0.0
        %3116 = vmatpush1.msra.mxu0 0.0
        %3117 = vmatprep.subr.mxu0 0.0
        %3118 = vmatpush1.msra.mxu0 0.0
        %3119 = vmatprep.subr.mxu0 0.0
        %3120 = vmatpush1.msra.mxu0 0.0
        %3121 = vmatprep.subr.mxu0 0.0
        %3122 = vmatpush1.msra.mxu0 0.0
        %3123 = vmatprep.subr.mxu0 0.0
        %3124 = vmatpush1.msra.mxu0 0.0
        %3125 = vmatprep.subr.mxu0 0.0
        %3126 = vmatpush1.msra.mxu0 0.0
        %3127 = vmatprep.subr.mxu0 0.0
        %3128 = vmatpush1.msra.mxu0 0.0
        %3129 = vmatprep.subr.mxu0 0.0
        %3130 = vmatpush1.msra.mxu0 0.0
        %3131 = vmatprep.subr.mxu0 0.0
        %3132 = vmatpush1.msra.mxu0 0.0
        %3133 = vmatprep.mubr.f32.mxu0 0.0
        %3134 = vmatmul.mubr.f32.gmra.mrb[0].mxu0 %v3067
        %v3135 = vpop.f32.mrb[0].mxu0
        %v3136 = vadd.f32 %v3064, %v3135
        %v3137 = vpop.f32.mrb[0].mxu0
        %3138 = vdwg.mxu0
        %v3139 = vadd.f32 %v2961, %v3136
        %s3140 = scalar_lea.vmem %s13, 1
        %v3141 = vld [vmem:[%s3140] sm:$0x1]
        %s3142 = scalar_lea.vmem %s14, 1
        %v3143 = vld [vmem:[%s3142] sm:$0x1]
        %v3144 = vsel %vm592, %v3139, 0.0
        %3145 = vadd.xlane.f32.xlu0 %v3144
        %v3146 = vpop.xlane.xlu0 %3145
        %v3147 = vmul.f32 %v3146, %v1643
        %v3148 = vsub.f32 %v3139, %v3147
        %v3149 = vmul.f32 %v3148, %v3148
        %v3150 = vsel %vm592, %v3149, 0.0
        %3151 = vadd.xlane.f32.xlu0 %v3150
        %v3152 = vpop.xlane.xlu0 %3151
        %v3153 = vmul.f32 %v3152, %v1643
        %v3154 = vadd.f32 %v3153, 1e-05
        %v3155 = vrsqrt.pop %v3154
        %v3156 = vmul.f32 %v3148, %v3155
        %v3158 = vlaneseq
        %v3159 = vshrl.u32 %v3158, 7
        %v3160 = vsub.s32 0, %v3159
        %v3161 = vrot.slane %v3141, %v3160
        %v3163 = vmul.f32 %v3156, %v3161
        %v3165 = vlaneseq
        %v3166 = vshrl.u32 %v3165, 7
        %v3167 = vsub.s32 0, %v3166
        %v3168 = vrot.slane %v3143, %v3167
        %v3170 = vadd.f32 %v3163, %v3168
        %3171 = vst.msk [vmem:[%s452] sm:$0xff] %vm592, %v3170
        %s3172 = sand.u32 %s337, 1
        %s3173 = scalar_lea.sflag [#allocation5], %s3172
        %s3174 = sand.u32 %s337, 1
        %s3175 = smul.addr %s3174, 8
        %s3176 = scalar_lea.vmem [#allocation4], %s3175
        // Predicated region
        $region77: #{tpu_custom_call.1} parent=75 // pred_check
          %p3177 = pneg %p347
        $region78: #{tpu_custom_call.1} parent=75 // pred_check_branch
          %3179 = sbr.rel (%p3177) target = $region80
        $region79: #{tpu_custom_call.1} parent=75 // pred_region
          %s3181 = ssub.s32 128, 128
          %3182 = vsyncadd %s3173, %s3181
          %s3183 = smul.addr %s35, 128
          %s3184 = scalar_lea.hbm %s15, %s3183
          %s3186 = sshll.u32 %s3176, 4
          %s3187 = int_to_ptr.vmem [resolvable:$true] %s3186
          %3189 = dma.vmem_to_hbm [thread:$0]  %s3187, 128, %s3184, %s3173
        $region80: #{tpu_custom_call.1} parent=75 // pred_fallthru
          _
      $region76: #{tpu_custom_call.1} parent=5 // pred_fallthru
        _
      %p3190 = scmp.le.s32.totalorder 2, %s30
      // Predicated region
      $region81: #{tpu_custom_call.1} parent=5 // pred_check
        %p3191 = pneg %p3190
      $region82: #{tpu_custom_call.1} parent=5 // pred_check_branch
        %3193 = sbr.rel (%p3191) target = $region84
      $region83: #{tpu_custom_call.1} parent=5 // pred_region
        %s3194 = ssub.s32 %s30, 2
        // Predicated region
        $region85: #{tpu_custom_call.1} parent=83 // pred_check
          %p3195 = pneg %p353
        $region86: #{tpu_custom_call.1} parent=83 // pred_check_branch
          %3197 = sbr.rel (%p3195) target = $region88
        $region87: #{tpu_custom_call.1} parent=83 // pred_region
          %s3198 = sand.u32 %s338, 1
          %s3199 = scalar_lea.sflag [#allocation5], %s3198
          %s3200 = sand.u32 %s338, 1
          %s3201 = smul.addr %s3200, 8
          %s3202 = scalar_lea.vmem [#allocation4], %s3201
          %3203 = dma.done %s3199, 128
        $region88: #{tpu_custom_call.1} parent=83 // pred_fallthru
          _
      $region84: #{tpu_custom_call.1} parent=5 // pred_fallthru
        _
    $region6: #{tpu_custom_call.1} parent=1 // loop_footer
      %s34 = sadd.s32 1, %s30
    $region7: #{tpu_custom_call.1} parent=1 // loop_footer_branch
      %29 = sbr.rel target = $region3
    $region8: #{tpu_custom_call.1} parent=1 // loop_exit
      _
    %3204 = vsyncpa [#allocation5], 1
    %s3205 = scalar_lea.sflag [#allocation5], 1
    %3206 = vsyncpa %s3205, 1

</llo_original>
